<compile_context>
chip_gen: v7x
topology: tpu7x:2x2x1
jax: 0.10.0
libtpu: 0.0.40
codegen_flags: <defaults>
</compile_context>

<pallas_src>
import numpy as np

import jax
import jax.numpy as jnp
from jax.experimental import pallas as pl
from jax.experimental.pallas import tpu as pltpu


# ------------------------------ in-kernel ops -------------------------------

def _dot(a, b):
    # NOTE: default MXU precision (same as the previously validated version).
    # For bit-level parity with PyTorch fp32 convs/linears, pass
    # precision=jax.lax.Precision.HIGHEST here.
    return jnp.dot(a, b, preferred_element_type=jnp.float32)


def _conv_slab(y, m_ref, b_ref, *, kh, h_out):
    """VALID 5x5 conv on a (H, W*Cin) slab via banded-weight matmuls + ReLU."""
    acc = _dot(y[0:h_out, :], m_ref[0])
    for i in range(1, kh):
        acc = acc + _dot(y[i:i + h_out, :], m_ref[i])
    return jnp.maximum(acc + b_ref[...], 0.0)


def _pool(y, pe_ref, po_ref, qe_ref, qo_ref):
    """2x2 / stride-2 max pool on a (H, W*C) slab via 0/1 selection matmuls."""
    # lane (W) direction: max over even/odd columns, compacted by Q matrices
    z = jnp.maximum(_dot(y, qe_ref[...]), _dot(y, qo_ref[...]))
    # sublane (H) direction: max over even/odd rows, compacted by P matrices
    return jnp.maximum(_dot(pe_ref[...], z), _dot(po_ref[...], z))


def _lenet5_kernel(x_ref,
                   m1_ref, b1_ref, p1e_ref, p1o_ref, q1e_ref, q1o_ref,
                   m3_ref, b3_ref, p2e_ref, p2o_ref, q2e_ref, q2o_ref,
                   m5_ref, b5_ref,
                   w6_ref, b6_ref, w7_ref, b7_ref,
                   o_ref):
    # --- C1: 5x5 conv, 3->6, + ReLU.  x_ref[0] is one NCHW image (3, 32, 32).
    # Output slab: (28, 28*6) with lane index = w*6 + c.
    acc = None
    for ci in range(3):
        xc = x_ref[0, ci]                                    # (32, 32)
        for i in range(5):
            d = _dot(xc[i:i + 28, :], m1_ref[ci * 5 + i])    # (28, 168)
            acc = d if acc is None else acc + d
    y = jnp.maximum(acc + b1_ref[...], 0.0)                  # (28, 168)

    # --- S2: 2x2/2 max pool -> (14, 14*6)
    y = _pool(y, p1e_ref, p1o_ref, q1e_ref, q1o_ref)

    # --- C3: 5x5 conv, 6->16, + ReLU -> (10, 10*16)
    y = _conv_slab(y, m3_ref, b3_ref, kh=5, h_out=10)

    # --- S4: 2x2/2 max pool -> (5, 5*16)
    y = _pool(y, p2e_ref, p2o_ref, q2e_ref, q2o_ref)

    # --- C5: 5x5 conv, 16->120, + ReLU -> (1, 120)
    y = _conv_slab(y, m5_ref, b5_ref, kh=5, h_out=1)

    # --- F6 + ReLU -> (1, 84);  F7 -> (1, 10)
    y = jnp.maximum(_dot(y, w6_ref[...]) + b6_ref[...], 0.0)
    y = _dot(y, w7_ref[...]) + b7_ref[...]
    o_ref[0] = y


# --------------------------- one-time weight prep ----------------------------

def _conv1_toeplitz(w, w_in):
    """Per-channel banded conv1 matrices: (Cin*KH, W_in, W_out*Cout)."""
    cout, cin, kh, kw = w.shape
    w_out = w_in - kw + 1
    m = np.zeros((cin * kh, w_in, w_out * cout), np.float32)
    for ci in range(cin):
        for i in range(kh):
            for j in range(kw):
                for wo in range(w_out):
                    m[ci * kh + i, wo + j, wo * cout:(wo + 1) * cout] = w[:, ci, i, j]
    return m


def _slab_toeplitz(w, w_in):
    """Banded conv matrices for (H, W*Cin) slab inputs: (KH, W_in*Cin, W_out*Cout)."""
    cout, cin, kh, kw = w.shape
    w_out = w_in - kw + 1
    m = np.zeros((kh, w_in * cin, w_out * cout), np.float32)
    for i in range(kh):
        for j in range(kw):
            for wo in range(w_out):
                m[i, (wo + j) * cin:(wo + j + 1) * cin,
                     wo * cout:(wo + 1) * cout] = w[:, :, i, j].T
    return m


def _pool_selectors(h, w, c):
    """0/1 selection matrices for 2x2/stride-2 max pooling on a (H, W*C) slab."""
    hh, hw = h // 2, w // 2
    p_e = np.zeros((hh, h), np.float32)
    p_o = np.zeros((hh, h), np.float32)
    p_e[np.arange(hh), 2 * np.arange(hh)] = 1.0
    p_o[np.arange(hh), 2 * np.arange(hh) + 1] = 1.0
    q_e = np.zeros((w * c, hw * c), np.float32)
    q_o = np.zeros((w * c, hw * c), np.float32)
    for q in range(hw):
        for ch in range(c):
            q_e[(2 * q) * c + ch, q * c + ch] = 1.0
            q_o[(2 * q + 1) * c + ch, q * c + ch] = 1.0
    return p_e, p_o, q_e, q_o


def init_lenet5_params(key):
    """Deterministic init mimicking PyTorch default U(-1/sqrt(fan_in), ...)."""
    def uniform(k, shape, fan_in):
        bound = 1.0 / float(fan_in) ** 0.5
        return jax.random.uniform(k, shape, jnp.float32, -bound, bound)

    ks = jax.random.split(key, 10)
    return {
        "c1_w": uniform(ks[0], (6, 3, 5, 5), 3 * 25),
        "c1_b": uniform(ks[1], (6,), 3 * 25),
        "c3_w": uniform(ks[2], (16, 6, 5, 5), 6 * 25),
        "c3_b": uniform(ks[3], (16,), 6 * 25),
        "c5_w": uniform(ks[4], (120, 16, 5, 5), 16 * 25),
        "c5_b": uniform(ks[5], (120,), 16 * 25),
        "f6_w": uniform(ks[6], (84, 120), 120),
        "f6_b": uniform(ks[7], (84,), 120),
        "f7_w": uniform(ks[8], (10, 84), 84),
        "f7_b": uniform(ks[9], (10,), 84),
    }


_CONST_KEYS = ("m1", "b1", "p1e", "p1o", "q1e", "q1o",
               "m3", "b3", "p2e", "p2o", "q2e", "q2o",
               "m5", "b5", "w6", "b6", "w7", "b7")


def prepare_lenet5(params):
    """One-time host-side prep: banded conv mats, pool selectors, FC transposes."""
    f32 = lambda a: np.asarray(a, np.float32)

    m1 = _conv1_toeplitz(f32(params["c1_w"]), w_in=32)     # (15, 32, 168)
    m3 = _slab_toeplitz(f32(params["c3_w"]), w_in=14)       # (5, 84, 160)
    m5 = _slab_toeplitz(f32(params["c5_w"]), w_in=5)        # (5, 80, 120)

    p1e, p1o, q1e, q1o = _pool_selectors(h=28, w=28, c=6)
    p2e, p2o, q2e, q2o = _pool_selectors(h=10, w=10, c=16)

    prepped = {
        "m1": m1, "b1": np.tile(f32(params["c1_b"]), 28)[None, :],
        "p1e": p1e, "p1o": p1o, "q1e": q1e, "q1o": q1o,
        "m3": m3, "b3": np.tile(f32(params["c3_b"]), 10)[None, :],
        "p2e": p2e, "p2o": p2o, "q2e": q2e, "q2o": q2o,
        "m5": m5, "b5": f32(params["c5_b"])[None, :],
        "w6": f32(params["f6_w"]).T.copy(), "b6": f32(params["f6_b"])[None, :],
        "w7": f32(params["f7_w"]).T.copy(), "b7": f32(params["f7_b"])[None, :],
    }
    return {k: jnp.asarray(v) for k, v in prepped.items()}


# --------------------------------- forward ----------------------------------

def lenet5_forward(prepped, x_nchw):
    """LeNet5 forward.  x_nchw: (N, 3, 32, 32) -> logits (N, 10)."""
    N = x_nchw.shape[0]
    x = x_nchw.astype(jnp.float32)
    consts = [prepped[k] for k in _CONST_KEYS]

    def const_spec(a):
        nd = a.ndim
        return pl.BlockSpec(a.shape, lambda n, _nd=nd: (0,) * _nd)

    out = pl.pallas_call(
        _lenet5_kernel,
        out_shape=jax.ShapeDtypeStruct((N, 1, 10), jnp.float32),
        grid=(N,),
        in_specs=[pl.BlockSpec((1, 3, 32, 32), lambda n: (n, 0, 0, 0))]
                 + [const_spec(a) for a in consts],
        out_specs=pl.BlockSpec((1, 1, 10), lambda n: (n, 0, 0)),
        compiler_params=pltpu.CompilerParams(
            dimension_semantics=("parallel",)),
    )(x, *consts)
    return out.reshape(N, 10)


if __name__ == "__main__":
    key = jax.random.PRNGKey(0)
    k_params, k_x = jax.random.split(key)

    params = init_lenet5_params(k_params)
    prepped = prepare_lenet5(params)

    # LeNet5 requires 3x32x32 input; small batch = 2.
    x = jax.random.normal(k_x, (2, 3, 32, 32), jnp.float32)

    logits = jax.block_until_ready(jax.jit(lenet5_forward)(prepped, x))
    assert logits.shape == (2, 10) and logits.dtype == jnp.float32
    assert bool(jnp.all(jnp.isfinite(logits)))
    print("KERNEL_OK")
</pallas_src>

<mosaic_0001>
module attributes {stable_mosaic.version = 11 : i64} {
  func.func @_lenet5_kernel(%arg0: i32, %arg1: memref<1x3x32x32xf32, #tpu.memory_space<vmem>>, %arg2: memref<15x32x168xf32, #tpu.memory_space<vmem>>, %arg3: memref<1x168xf32, #tpu.memory_space<vmem>>, %arg4: memref<14x28xf32, #tpu.memory_space<vmem>>, %arg5: memref<14x28xf32, #tpu.memory_space<vmem>>, %arg6: memref<168x84xf32, #tpu.memory_space<vmem>>, %arg7: memref<168x84xf32, #tpu.memory_space<vmem>>, %arg8: memref<5x84x160xf32, #tpu.memory_space<vmem>>, %arg9: memref<1x160xf32, #tpu.memory_space<vmem>>, %arg10: memref<5x10xf32, #tpu.memory_space<vmem>>, %arg11: memref<5x10xf32, #tpu.memory_space<vmem>>, %arg12: memref<160x80xf32, #tpu.memory_space<vmem>>, %arg13: memref<160x80xf32, #tpu.memory_space<vmem>>, %arg14: memref<5x80x120xf32, #tpu.memory_space<vmem>>, %arg15: memref<1x120xf32, #tpu.memory_space<vmem>>, %arg16: memref<120x84xf32, #tpu.memory_space<vmem>>, %arg17: memref<1x84xf32, #tpu.memory_space<vmem>>, %arg18: memref<84x10xf32, #tpu.memory_space<vmem>>, %arg19: memref<1x10xf32, #tpu.memory_space<vmem>>, %arg20: memref<1x1x10xf32, #tpu.memory_space<vmem>>) attributes {dimension_semantics = [#tpu.dimension_semantics<parallel>], iteration_bounds = array<i64: 2>, scalar_prefetch = 0 : i64, scratch_operands = 0 : i64, tpu.core_type = #tpu.core_type<tc>, window_params = [{transform_indices = @transform_0, window_bounds = array<i64: 1, 3, 32, 32>}, {pipeline_mode = #tpu.pipeline_mode<synchronous>, transform_indices = @transform_1, window_bounds = array<i64: 15, 32, 168>}, {pipeline_mode = #tpu.pipeline_mode<synchronous>, transform_indices = @transform_2, window_bounds = array<i64: 1, 168>}, {pipeline_mode = #tpu.pipeline_mode<synchronous>, transform_indices = @transform_3, window_bounds = array<i64: 14, 28>}, {pipeline_mode = #tpu.pipeline_mode<synchronous>, transform_indices = @transform_4, window_bounds = array<i64: 14, 28>}, {pipeline_mode = #tpu.pipeline_mode<synchronous>, transform_indices = @transform_5, window_bounds = array<i64: 168, 84>}, {pipeline_mode = #tpu.pipeline_mode<synchronous>, transform_indices = @transform_6, window_bounds = array<i64: 168, 84>}, {pipeline_mode = #tpu.pipeline_mode<synchronous>, transform_indices = @transform_7, window_bounds = array<i64: 5, 84, 160>}, {pipeline_mode = #tpu.pipeline_mode<synchronous>, transform_indices = @transform_8, window_bounds = array<i64: 1, 160>}, {pipeline_mode = #tpu.pipeline_mode<synchronous>, transform_indices = @transform_9, window_bounds = array<i64: 5, 10>}, {pipeline_mode = #tpu.pipeline_mode<synchronous>, transform_indices = @transform_10, window_bounds = array<i64: 5, 10>}, {pipeline_mode = #tpu.pipeline_mode<synchronous>, transform_indices = @transform_11, window_bounds = array<i64: 160, 80>}, {pipeline_mode = #tpu.pipeline_mode<synchronous>, transform_indices = @transform_12, window_bounds = array<i64: 160, 80>}, {pipeline_mode = #tpu.pipeline_mode<synchronous>, transform_indices = @transform_13, window_bounds = array<i64: 5, 80, 120>}, {pipeline_mode = #tpu.pipeline_mode<synchronous>, transform_indices = @transform_14, window_bounds = array<i64: 1, 120>}, {pipeline_mode = #tpu.pipeline_mode<synchronous>, transform_indices = @transform_15, window_bounds = array<i64: 120, 84>}, {pipeline_mode = #tpu.pipeline_mode<synchronous>, transform_indices = @transform_16, window_bounds = array<i64: 1, 84>}, {pipeline_mode = #tpu.pipeline_mode<synchronous>, transform_indices = @transform_17, window_bounds = array<i64: 84, 10>}, {pipeline_mode = #tpu.pipeline_mode<synchronous>, transform_indices = @transform_18, window_bounds = array<i64: 1, 10>}, {transform_indices = @transform_19, window_bounds = array<i64: 1, 1, 10>}]} {
    %c0 = arith.constant 0 : index
    %c0_0 = arith.constant 0 : index
    %c0_1 = arith.constant 0 : index
    %c0_2 = arith.constant 0 : index
    %0 = vector.load %arg1[%c0, %c0_0, %c0_1, %c0_2] : memref<1x3x32x32xf32, #tpu.memory_space<vmem>>, vector<1x1x32x32xf32>
    %1 = vector.shape_cast %0 : vector<1x1x32x32xf32> to vector<32x32xf32>
    %2 = vector.extract_strided_slice %1 {offsets = [0, 0], sizes = [28, 32], strides = [1, 1]} : vector<32x32xf32> to vector<28x32xf32>
    %c0_3 = arith.constant 0 : index
    %c0_4 = arith.constant 0 : index
    %c0_5 = arith.constant 0 : index
    %3 = vector.load %arg2[%c0_3, %c0_4, %c0_5] : memref<15x32x168xf32, #tpu.memory_space<vmem>>, vector<1x32x168xf32>
    %4 = vector.shape_cast %3 : vector<1x32x168xf32> to vector<32x168xf32>
    %cst = arith.constant dense<0.000000e+00> : vector<28x168xf32>
    %5 = tpu.matmul %2, %4, %cst {dimension_numbers = #tpu.dot_dimension_numbers<[1], [0], [0], [1], [0, 0, 1, 1], [], []>} : vector<28x32xf32>, vector<32x168xf32>, vector<28x168xf32> -> vector<28x168xf32>
    %6 = vector.extract_strided_slice %1 {offsets = [1, 0], sizes = [28, 32], strides = [1, 1]} : vector<32x32xf32> to vector<28x32xf32>
    %c1 = arith.constant 1 : index
    %c0_6 = arith.constant 0 : index
    %c0_7 = arith.constant 0 : index
    %7 = vector.load %arg2[%c1, %c0_6, %c0_7] : memref<15x32x168xf32, #tpu.memory_space<vmem>>, vector<1x32x168xf32>
    %8 = vector.shape_cast %7 : vector<1x32x168xf32> to vector<32x168xf32>
    %cst_8 = arith.constant dense<0.000000e+00> : vector<28x168xf32>
    %9 = tpu.matmul %6, %8, %cst_8 {dimension_numbers = #tpu.dot_dimension_numbers<[1], [0], [0], [1], [0, 0, 1, 1], [], []>} : vector<28x32xf32>, vector<32x168xf32>, vector<28x168xf32> -> vector<28x168xf32>
    %10 = arith.addf %5, %9 : vector<28x168xf32>
    %11 = vector.extract_strided_slice %1 {offsets = [2, 0], sizes = [28, 32], strides = [1, 1]} : vector<32x32xf32> to vector<28x32xf32>
    %c2 = arith.constant 2 : index
    %c0_9 = arith.constant 0 : index
    %c0_10 = arith.constant 0 : index
    %12 = vector.load %arg2[%c2, %c0_9, %c0_10] : memref<15x32x168xf32, #tpu.memory_space<vmem>>, vector<1x32x168xf32>
    %13 = vector.shape_cast %12 : vector<1x32x168xf32> to vector<32x168xf32>
    %cst_11 = arith.constant dense<0.000000e+00> : vector<28x168xf32>
    %14 = tpu.matmul %11, %13, %cst_11 {dimension_numbers = #tpu.dot_dimension_numbers<[1], [0], [0], [1], [0, 0, 1, 1], [], []>} : vector<28x32xf32>, vector<32x168xf32>, vector<28x168xf32> -> vector<28x168xf32>
    %15 = arith.addf %10, %14 : vector<28x168xf32>
    %16 = vector.extract_strided_slice %1 {offsets = [3, 0], sizes = [28, 32], strides = [1, 1]} : vector<32x32xf32> to vector<28x32xf32>
    %c3 = arith.constant 3 : index
    %c0_12 = arith.constant 0 : index
    %c0_13 = arith.constant 0 : index
    %17 = vector.load %arg2[%c3, %c0_12, %c0_13] : memref<15x32x168xf32, #tpu.memory_space<vmem>>, vector<1x32x168xf32>
    %18 = vector.shape_cast %17 : vector<1x32x168xf32> to vector<32x168xf32>
    %cst_14 = arith.constant dense<0.000000e+00> : vector<28x168xf32>
    %19 = tpu.matmul %16, %18, %cst_14 {dimension_numbers = #tpu.dot_dimension_numbers<[1], [0], [0], [1], [0, 0, 1, 1], [], []>} : vector<28x32xf32>, vector<32x168xf32>, vector<28x168xf32> -> vector<28x168xf32>
    %20 = arith.addf %15, %19 : vector<28x168xf32>
    %21 = vector.extract_strided_slice %1 {offsets = [4, 0], sizes = [28, 32], strides = [1, 1]} : vector<32x32xf32> to vector<28x32xf32>
    %c4 = arith.constant 4 : index
    %c0_15 = arith.constant 0 : index
    %c0_16 = arith.constant 0 : index
    %22 = vector.load %arg2[%c4, %c0_15, %c0_16] : memref<15x32x168xf32, #tpu.memory_space<vmem>>, vector<1x32x168xf32>
    %23 = vector.shape_cast %22 : vector<1x32x168xf32> to vector<32x168xf32>
    %cst_17 = arith.constant dense<0.000000e+00> : vector<28x168xf32>
    %24 = tpu.matmul %21, %23, %cst_17 {dimension_numbers = #tpu.dot_dimension_numbers<[1], [0], [0], [1], [0, 0, 1, 1], [], []>} : vector<28x32xf32>, vector<32x168xf32>, vector<28x168xf32> -> vector<28x168xf32>
    %25 = arith.addf %20, %24 : vector<28x168xf32>
    %c0_18 = arith.constant 0 : index
    %c1_19 = arith.constant 1 : index
    %c0_20 = arith.constant 0 : index
    %c0_21 = arith.constant 0 : index
    %26 = vector.load %arg1[%c0_18, %c1_19, %c0_20, %c0_21] : memref<1x3x32x32xf32, #tpu.memory_space<vmem>>, vector<1x1x32x32xf32>
    %27 = vector.shape_cast %26 : vector<1x1x32x32xf32> to vector<32x32xf32>
    %28 = vector.extract_strided_slice %27 {offsets = [0, 0], sizes = [28, 32], strides = [1, 1]} : vector<32x32xf32> to vector<28x32xf32>
    %c5 = arith.constant 5 : index
    %c0_22 = arith.constant 0 : index
    %c0_23 = arith.constant 0 : index
    %29 = vector.load %arg2[%c5, %c0_22, %c0_23] : memref<15x32x168xf32, #tpu.memory_space<vmem>>, vector<1x32x168xf32>
    %30 = vector.shape_cast %29 : vector<1x32x168xf32> to vector<32x168xf32>
    %cst_24 = arith.constant dense<0.000000e+00> : vector<28x168xf32>
    %31 = tpu.matmul %28, %30, %cst_24 {dimension_numbers = #tpu.dot_dimension_numbers<[1], [0], [0], [1], [0, 0, 1, 1], [], []>} : vector<28x32xf32>, vector<32x168xf32>, vector<28x168xf32> -> vector<28x168xf32>
    %32 = arith.addf %25, %31 : vector<28x168xf32>
    %33 = vector.extract_strided_slice %27 {offsets = [1, 0], sizes = [28, 32], strides = [1, 1]} : vector<32x32xf32> to vector<28x32xf32>
    %c6 = arith.constant 6 : index
    %c0_25 = arith.constant 0 : index
    %c0_26 = arith.constant 0 : index
    %34 = vector.load %arg2[%c6, %c0_25, %c0_26] : memref<15x32x168xf32, #tpu.memory_space<vmem>>, vector<1x32x168xf32>
    %35 = vector.shape_cast %34 : vector<1x32x168xf32> to vector<32x168xf32>
    %cst_27 = arith.constant dense<0.000000e+00> : vector<28x168xf32>
    %36 = tpu.matmul %33, %35, %cst_27 {dimension_numbers = #tpu.dot_dimension_numbers<[1], [0], [0], [1], [0, 0, 1, 1], [], []>} : vector<28x32xf32>, vector<32x168xf32>, vector<28x168xf32> -> vector<28x168xf32>
    %37 = arith.addf %32, %36 : vector<28x168xf32>
    %38 = vector.extract_strided_slice %27 {offsets = [2, 0], sizes = [28, 32], strides = [1, 1]} : vector<32x32xf32> to vector<28x32xf32>
    %c7 = arith.constant 7 : index
    %c0_28 = arith.constant 0 : index
    %c0_29 = arith.constant 0 : index
    %39 = vector.load %arg2[%c7, %c0_28, %c0_29] : memref<15x32x168xf32, #tpu.memory_space<vmem>>, vector<1x32x168xf32>
    %40 = vector.shape_cast %39 : vector<1x32x168xf32> to vector<32x168xf32>
    %cst_30 = arith.constant dense<0.000000e+00> : vector<28x168xf32>
    %41 = tpu.matmul %38, %40, %cst_30 {dimension_numbers = #tpu.dot_dimension_numbers<[1], [0], [0], [1], [0, 0, 1, 1], [], []>} : vector<28x32xf32>, vector<32x168xf32>, vector<28x168xf32> -> vector<28x168xf32>
    %42 = arith.addf %37, %41 : vector<28x168xf32>
    %43 = vector.extract_strided_slice %27 {offsets = [3, 0], sizes = [28, 32], strides = [1, 1]} : vector<32x32xf32> to vector<28x32xf32>
    %c8 = arith.constant 8 : index
    %c0_31 = arith.constant 0 : index
    %c0_32 = arith.constant 0 : index
    %44 = vector.load %arg2[%c8, %c0_31, %c0_32] : memref<15x32x168xf32, #tpu.memory_space<vmem>>, vector<1x32x168xf32>
    %45 = vector.shape_cast %44 : vector<1x32x168xf32> to vector<32x168xf32>
    %cst_33 = arith.constant dense<0.000000e+00> : vector<28x168xf32>
    %46 = tpu.matmul %43, %45, %cst_33 {dimension_numbers = #tpu.dot_dimension_numbers<[1], [0], [0], [1], [0, 0, 1, 1], [], []>} : vector<28x32xf32>, vector<32x168xf32>, vector<28x168xf32> -> vector<28x168xf32>
    %47 = arith.addf %42, %46 : vector<28x168xf32>
    %48 = vector.extract_strided_slice %27 {offsets = [4, 0], sizes = [28, 32], strides = [1, 1]} : vector<32x32xf32> to vector<28x32xf32>
    %c9 = arith.constant 9 : index
    %c0_34 = arith.constant 0 : index
    %c0_35 = arith.constant 0 : index
    %49 = vector.load %arg2[%c9, %c0_34, %c0_35] : memref<15x32x168xf32, #tpu.memory_space<vmem>>, vector<1x32x168xf32>
    %50 = vector.shape_cast %49 : vector<1x32x168xf32> to vector<32x168xf32>
    %cst_36 = arith.constant dense<0.000000e+00> : vector<28x168xf32>
    %51 = tpu.matmul %48, %50, %cst_36 {dimension_numbers = #tpu.dot_dimension_numbers<[1], [0], [0], [1], [0, 0, 1, 1], [], []>} : vector<28x32xf32>, vector<32x168xf32>, vector<28x168xf32> -> vector<28x168xf32>
    %52 = arith.addf %47, %51 : vector<28x168xf32>
    %c0_37 = arith.constant 0 : index
    %c2_38 = arith.constant 2 : index
    %c0_39 = arith.constant 0 : index
    %c0_40 = arith.constant 0 : index
    %53 = vector.load %arg1[%c0_37, %c2_38, %c0_39, %c0_40] : memref<1x3x32x32xf32, #tpu.memory_space<vmem>>, vector<1x1x32x32xf32>
    %54 = vector.shape_cast %53 : vector<1x1x32x32xf32> to vector<32x32xf32>
    %55 = vector.extract_strided_slice %54 {offsets = [0, 0], sizes = [28, 32], strides = [1, 1]} : vector<32x32xf32> to vector<28x32xf32>
    %c10 = arith.constant 10 : index
    %c0_41 = arith.constant 0 : index
    %c0_42 = arith.constant 0 : index
    %56 = vector.load %arg2[%c10, %c0_41, %c0_42] : memref<15x32x168xf32, #tpu.memory_space<vmem>>, vector<1x32x168xf32>
    %57 = vector.shape_cast %56 : vector<1x32x168xf32> to vector<32x168xf32>
    %cst_43 = arith.constant dense<0.000000e+00> : vector<28x168xf32>
    %58 = tpu.matmul %55, %57, %cst_43 {dimension_numbers = #tpu.dot_dimension_numbers<[1], [0], [0], [1], [0, 0, 1, 1], [], []>} : vector<28x32xf32>, vector<32x168xf32>, vector<28x168xf32> -> vector<28x168xf32>
    %59 = arith.addf %52, %58 : vector<28x168xf32>
    %60 = vector.extract_strided_slice %54 {offsets = [1, 0], sizes = [28, 32], strides = [1, 1]} : vector<32x32xf32> to vector<28x32xf32>
    %c11 = arith.constant 11 : index
    %c0_44 = arith.constant 0 : index
    %c0_45 = arith.constant 0 : index
    %61 = vector.load %arg2[%c11, %c0_44, %c0_45] : memref<15x32x168xf32, #tpu.memory_space<vmem>>, vector<1x32x168xf32>
    %62 = vector.shape_cast %61 : vector<1x32x168xf32> to vector<32x168xf32>
    %cst_46 = arith.constant dense<0.000000e+00> : vector<28x168xf32>
    %63 = tpu.matmul %60, %62, %cst_46 {dimension_numbers = #tpu.dot_dimension_numbers<[1], [0], [0], [1], [0, 0, 1, 1], [], []>} : vector<28x32xf32>, vector<32x168xf32>, vector<28x168xf32> -> vector<28x168xf32>
    %64 = arith.addf %59, %63 : vector<28x168xf32>
    %65 = vector.extract_strided_slice %54 {offsets = [2, 0], sizes = [28, 32], strides = [1, 1]} : vector<32x32xf32> to vector<28x32xf32>
    %c12 = arith.constant 12 : index
    %c0_47 = arith.constant 0 : index
    %c0_48 = arith.constant 0 : index
    %66 = vector.load %arg2[%c12, %c0_47, %c0_48] : memref<15x32x168xf32, #tpu.memory_space<vmem>>, vector<1x32x168xf32>
    %67 = vector.shape_cast %66 : vector<1x32x168xf32> to vector<32x168xf32>
    %cst_49 = arith.constant dense<0.000000e+00> : vector<28x168xf32>
    %68 = tpu.matmul %65, %67, %cst_49 {dimension_numbers = #tpu.dot_dimension_numbers<[1], [0], [0], [1], [0, 0, 1, 1], [], []>} : vector<28x32xf32>, vector<32x168xf32>, vector<28x168xf32> -> vector<28x168xf32>
    %69 = arith.addf %64, %68 : vector<28x168xf32>
    %70 = vector.extract_strided_slice %54 {offsets = [3, 0], sizes = [28, 32], strides = [1, 1]} : vector<32x32xf32> to vector<28x32xf32>
    %c13 = arith.constant 13 : index
    %c0_50 = arith.constant 0 : index
    %c0_51 = arith.constant 0 : index
    %71 = vector.load %arg2[%c13, %c0_50, %c0_51] : memref<15x32x168xf32, #tpu.memory_space<vmem>>, vector<1x32x168xf32>
    %72 = vector.shape_cast %71 : vector<1x32x168xf32> to vector<32x168xf32>
    %cst_52 = arith.constant dense<0.000000e+00> : vector<28x168xf32>
    %73 = tpu.matmul %70, %72, %cst_52 {dimension_numbers = #tpu.dot_dimension_numbers<[1], [0], [0], [1], [0, 0, 1, 1], [], []>} : vector<28x32xf32>, vector<32x168xf32>, vector<28x168xf32> -> vector<28x168xf32>
    %74 = arith.addf %69, %73 : vector<28x168xf32>
    %75 = vector.extract_strided_slice %54 {offsets = [4, 0], sizes = [28, 32], strides = [1, 1]} : vector<32x32xf32> to vector<28x32xf32>
    %c14 = arith.constant 14 : index
    %c0_53 = arith.constant 0 : index
    %c0_54 = arith.constant 0 : index
    %76 = vector.load %arg2[%c14, %c0_53, %c0_54] : memref<15x32x168xf32, #tpu.memory_space<vmem>>, vector<1x32x168xf32>
    %77 = vector.shape_cast %76 : vector<1x32x168xf32> to vector<32x168xf32>
    %cst_55 = arith.constant dense<0.000000e+00> : vector<28x168xf32>
    %78 = tpu.matmul %75, %77, %cst_55 {dimension_numbers = #tpu.dot_dimension_numbers<[1], [0], [0], [1], [0, 0, 1, 1], [], []>} : vector<28x32xf32>, vector<32x168xf32>, vector<28x168xf32> -> vector<28x168xf32>
    %79 = arith.addf %74, %78 : vector<28x168xf32>
    %c0_56 = arith.constant 0 : index
    %c0_57 = arith.constant 0 : index
    %80 = vector.load %arg3[%c0_56, %c0_57] : memref<1x168xf32, #tpu.memory_space<vmem>>, vector<1x168xf32>
    %81 = vector.broadcast %80 : vector<1x168xf32> to vector<28x168xf32>
    %82 = arith.addf %79, %81 : vector<28x168xf32>
    %cst_58 = arith.constant 0.000000e+00 : f32
    %83 = vector.broadcast %cst_58 : f32 to vector<28x168xf32>
    %84 = arith.maximumf %82, %83 : vector<28x168xf32>
    %c0_59 = arith.constant 0 : index
    %c0_60 = arith.constant 0 : index
    %85 = vector.load %arg6[%c0_59, %c0_60] : memref<168x84xf32, #tpu.memory_space<vmem>>, vector<168x84xf32>
    %cst_61 = arith.constant dense<0.000000e+00> : vector<28x84xf32>
    %86 = tpu.matmul %84, %85, %cst_61 {dimension_numbers = #tpu.dot_dimension_numbers<[1], [0], [0], [1], [0, 0, 1, 1], [], []>} : vector<28x168xf32>, vector<168x84xf32>, vector<28x84xf32> -> vector<28x84xf32>
    %c0_62 = arith.constant 0 : index
    %c0_63 = arith.constant 0 : index
    %87 = vector.load %arg7[%c0_62, %c0_63] : memref<168x84xf32, #tpu.memory_space<vmem>>, vector<168x84xf32>
    %cst_64 = arith.constant dense<0.000000e+00> : vector<28x84xf32>
    %88 = tpu.matmul %84, %87, %cst_64 {dimension_numbers = #tpu.dot_dimension_numbers<[1], [0], [0], [1], [0, 0, 1, 1], [], []>} : vector<28x168xf32>, vector<168x84xf32>, vector<28x84xf32> -> vector<28x84xf32>
    %89 = arith.maximumf %86, %88 : vector<28x84xf32>
    %c0_65 = arith.constant 0 : index
    %c0_66 = arith.constant 0 : index
    %90 = vector.load %arg4[%c0_65, %c0_66] : memref<14x28xf32, #tpu.memory_space<vmem>>, vector<14x28xf32>
    %cst_67 = arith.constant dense<0.000000e+00> : vector<14x84xf32>
    %91 = tpu.matmul %90, %89, %cst_67 {dimension_numbers = #tpu.dot_dimension_numbers<[1], [0], [0], [1], [0, 0, 1, 1], [], []>} : vector<14x28xf32>, vector<28x84xf32>, vector<14x84xf32> -> vector<14x84xf32>
    %c0_68 = arith.constant 0 : index
    %c0_69 = arith.constant 0 : index
    %92 = vector.load %arg5[%c0_68, %c0_69] : memref<14x28xf32, #tpu.memory_space<vmem>>, vector<14x28xf32>
    %cst_70 = arith.constant dense<0.000000e+00> : vector<14x84xf32>
    %93 = tpu.matmul %92, %89, %cst_70 {dimension_numbers = #tpu.dot_dimension_numbers<[1], [0], [0], [1], [0, 0, 1, 1], [], []>} : vector<14x28xf32>, vector<28x84xf32>, vector<14x84xf32> -> vector<14x84xf32>
    %94 = arith.maximumf %91, %93 : vector<14x84xf32>
    %95 = vector.extract_strided_slice %94 {offsets = [0, 0], sizes = [10, 84], strides = [1, 1]} : vector<14x84xf32> to vector<10x84xf32>
    %c0_71 = arith.constant 0 : index
    %c0_72 = arith.constant 0 : index
    %c0_73 = arith.constant 0 : index
    %96 = vector.load %arg8[%c0_71, %c0_72, %c0_73] : memref<5x84x160xf32, #tpu.memory_space<vmem>>, vector<1x84x160xf32>
    %97 = vector.shape_cast %96 : vector<1x84x160xf32> to vector<84x160xf32>
    %cst_74 = arith.constant dense<0.000000e+00> : vector<10x160xf32>
    %98 = tpu.matmul %95, %97, %cst_74 {dimension_numbers = #tpu.dot_dimension_numbers<[1], [0], [0], [1], [0, 0, 1, 1], [], []>} : vector<10x84xf32>, vector<84x160xf32>, vector<10x160xf32> -> vector<10x160xf32>
    %99 = vector.extract_strided_slice %94 {offsets = [1, 0], sizes = [10, 84], strides = [1, 1]} : vector<14x84xf32> to vector<10x84xf32>
    %c1_75 = arith.constant 1 : index
    %c0_76 = arith.constant 0 : index
    %c0_77 = arith.constant 0 : index
    %100 = vector.load %arg8[%c1_75, %c0_76, %c0_77] : memref<5x84x160xf32, #tpu.memory_space<vmem>>, vector<1x84x160xf32>
    %101 = vector.shape_cast %100 : vector<1x84x160xf32> to vector<84x160xf32>
    %cst_78 = arith.constant dense<0.000000e+00> : vector<10x160xf32>
    %102 = tpu.matmul %99, %101, %cst_78 {dimension_numbers = #tpu.dot_dimension_numbers<[1], [0], [0], [1], [0, 0, 1, 1], [], []>} : vector<10x84xf32>, vector<84x160xf32>, vector<10x160xf32> -> vector<10x160xf32>
    %103 = arith.addf %98, %102 : vector<10x160xf32>
    %104 = vector.extract_strided_slice %94 {offsets = [2, 0], sizes = [10, 84], strides = [1, 1]} : vector<14x84xf32> to vector<10x84xf32>
    %c2_79 = arith.constant 2 : index
    %c0_80 = arith.constant 0 : index
    %c0_81 = arith.constant 0 : index
    %105 = vector.load %arg8[%c2_79, %c0_80, %c0_81] : memref<5x84x160xf32, #tpu.memory_space<vmem>>, vector<1x84x160xf32>
    %106 = vector.shape_cast %105 : vector<1x84x160xf32> to vector<84x160xf32>
    %cst_82 = arith.constant dense<0.000000e+00> : vector<10x160xf32>
    %107 = tpu.matmul %104, %106, %cst_82 {dimension_numbers = #tpu.dot_dimension_numbers<[1], [0], [0], [1], [0, 0, 1, 1], [], []>} : vector<10x84xf32>, vector<84x160xf32>, vector<10x160xf32> -> vector<10x160xf32>
    %108 = arith.addf %103, %107 : vector<10x160xf32>
    %109 = vector.extract_strided_slice %94 {offsets = [3, 0], sizes = [10, 84], strides = [1, 1]} : vector<14x84xf32> to vector<10x84xf32>
    %c3_83 = arith.constant 3 : index
    %c0_84 = arith.constant 0 : index
    %c0_85 = arith.constant 0 : index
    %110 = vector.load %arg8[%c3_83, %c0_84, %c0_85] : memref<5x84x160xf32, #tpu.memory_space<vmem>>, vector<1x84x160xf32>
    %111 = vector.shape_cast %110 : vector<1x84x160xf32> to vector<84x160xf32>
    %cst_86 = arith.constant dense<0.000000e+00> : vector<10x160xf32>
    %112 = tpu.matmul %109, %111, %cst_86 {dimension_numbers = #tpu.dot_dimension_numbers<[1], [0], [0], [1], [0, 0, 1, 1], [], []>} : vector<10x84xf32>, vector<84x160xf32>, vector<10x160xf32> -> vector<10x160xf32>
    %113 = arith.addf %108, %112 : vector<10x160xf32>
    %114 = vector.extract_strided_slice %94 {offsets = [4, 0], sizes = [10, 84], strides = [1, 1]} : vector<14x84xf32> to vector<10x84xf32>
    %c4_87 = arith.constant 4 : index
    %c0_88 = arith.constant 0 : index
    %c0_89 = arith.constant 0 : index
    %115 = vector.load %arg8[%c4_87, %c0_88, %c0_89] : memref<5x84x160xf32, #tpu.memory_space<vmem>>, vector<1x84x160xf32>
    %116 = vector.shape_cast %115 : vector<1x84x160xf32> to vector<84x160xf32>
    %cst_90 = arith.constant dense<0.000000e+00> : vector<10x160xf32>
    %117 = tpu.matmul %114, %116, %cst_90 {dimension_numbers = #tpu.dot_dimension_numbers<[1], [0], [0], [1], [0, 0, 1, 1], [], []>} : vector<10x84xf32>, vector<84x160xf32>, vector<10x160xf32> -> vector<10x160xf32>
    %118 = arith.addf %113, %117 : vector<10x160xf32>
    %c0_91 = arith.constant 0 : index
    %c0_92 = arith.constant 0 : index
    %119 = vector.load %arg9[%c0_91, %c0_92] : memref<1x160xf32, #tpu.memory_space<vmem>>, vector<1x160xf32>
    %120 = vector.broadcast %119 : vector<1x160xf32> to vector<10x160xf32>
    %121 = arith.addf %118, %120 : vector<10x160xf32>
    %cst_93 = arith.constant 0.000000e+00 : f32
    %122 = vector.broadcast %cst_93 : f32 to vector<10x160xf32>
    %123 = arith.maximumf %121, %122 : vector<10x160xf32>
    %c0_94 = arith.constant 0 : index
    %c0_95 = arith.constant 0 : index
    %124 = vector.load %arg12[%c0_94, %c0_95] : memref<160x80xf32, #tpu.memory_space<vmem>>, vector<160x80xf32>
    %cst_96 = arith.constant dense<0.000000e+00> : vector<10x80xf32>
    %125 = tpu.matmul %123, %124, %cst_96 {dimension_numbers = #tpu.dot_dimension_numbers<[1], [0], [0], [1], [0, 0, 1, 1], [], []>} : vector<10x160xf32>, vector<160x80xf32>, vector<10x80xf32> -> vector<10x80xf32>
    %c0_97 = arith.constant 0 : index
    %c0_98 = arith.constant 0 : index
    %126 = vector.load %arg13[%c0_97, %c0_98] : memref<160x80xf32, #tpu.memory_space<vmem>>, vector<160x80xf32>
    %cst_99 = arith.constant dense<0.000000e+00> : vector<10x80xf32>
    %127 = tpu.matmul %123, %126, %cst_99 {dimension_numbers = #tpu.dot_dimension_numbers<[1], [0], [0], [1], [0, 0, 1, 1], [], []>} : vector<10x160xf32>, vector<160x80xf32>, vector<10x80xf32> -> vector<10x80xf32>
    %128 = arith.maximumf %125, %127 : vector<10x80xf32>
    %c0_100 = arith.constant 0 : index
    %c0_101 = arith.constant 0 : index
    %129 = vector.load %arg10[%c0_100, %c0_101] : memref<5x10xf32, #tpu.memory_space<vmem>>, vector<5x10xf32>
    %cst_102 = arith.constant dense<0.000000e+00> : vector<5x80xf32>
    %130 = tpu.matmul %129, %128, %cst_102 {dimension_numbers = #tpu.dot_dimension_numbers<[1], [0], [0], [1], [0, 0, 1, 1], [], []>} : vector<5x10xf32>, vector<10x80xf32>, vector<5x80xf32> -> vector<5x80xf32>
    %c0_103 = arith.constant 0 : index
    %c0_104 = arith.constant 0 : index
    %131 = vector.load %arg11[%c0_103, %c0_104] : memref<5x10xf32, #tpu.memory_space<vmem>>, vector<5x10xf32>
    %cst_105 = arith.constant dense<0.000000e+00> : vector<5x80xf32>
    %132 = tpu.matmul %131, %128, %cst_105 {dimension_numbers = #tpu.dot_dimension_numbers<[1], [0], [0], [1], [0, 0, 1, 1], [], []>} : vector<5x10xf32>, vector<10x80xf32>, vector<5x80xf32> -> vector<5x80xf32>
    %133 = arith.maximumf %130, %132 : vector<5x80xf32>
    %134 = vector.extract_strided_slice %133 {offsets = [0, 0], sizes = [1, 80], strides = [1, 1]} : vector<5x80xf32> to vector<1x80xf32>
    %c0_106 = arith.constant 0 : index
    %c0_107 = arith.constant 0 : index
    %c0_108 = arith.constant 0 : index
    %135 = vector.load %arg14[%c0_106, %c0_107, %c0_108] : memref<5x80x120xf32, #tpu.memory_space<vmem>>, vector<1x80x120xf32>
    %136 = vector.shape_cast %135 : vector<1x80x120xf32> to vector<80x120xf32>
    %cst_109 = arith.constant dense<0.000000e+00> : vector<1x120xf32>
    %137 = tpu.matmul %134, %136, %cst_109 {dimension_numbers = #tpu.dot_dimension_numbers<[1], [0], [0], [1], [0, 0, 1, 1], [], []>} : vector<1x80xf32>, vector<80x120xf32>, vector<1x120xf32> -> vector<1x120xf32>
    %138 = vector.extract_strided_slice %133 {offsets = [1, 0], sizes = [1, 80], strides = [1, 1]} : vector<5x80xf32> to vector<1x80xf32>
    %c1_110 = arith.constant 1 : index
    %c0_111 = arith.constant 0 : index
    %c0_112 = arith.constant 0 : index
    %139 = vector.load %arg14[%c1_110, %c0_111, %c0_112] : memref<5x80x120xf32, #tpu.memory_space<vmem>>, vector<1x80x120xf32>
    %140 = vector.shape_cast %139 : vector<1x80x120xf32> to vector<80x120xf32>
    %cst_113 = arith.constant dense<0.000000e+00> : vector<1x120xf32>
    %141 = tpu.matmul %138, %140, %cst_113 {dimension_numbers = #tpu.dot_dimension_numbers<[1], [0], [0], [1], [0, 0, 1, 1], [], []>} : vector<1x80xf32>, vector<80x120xf32>, vector<1x120xf32> -> vector<1x120xf32>
    %142 = arith.addf %137, %141 : vector<1x120xf32>
    %143 = vector.extract_strided_slice %133 {offsets = [2, 0], sizes = [1, 80], strides = [1, 1]} : vector<5x80xf32> to vector<1x80xf32>
    %c2_114 = arith.constant 2 : index
    %c0_115 = arith.constant 0 : index
    %c0_116 = arith.constant 0 : index
    %144 = vector.load %arg14[%c2_114, %c0_115, %c0_116] : memref<5x80x120xf32, #tpu.memory_space<vmem>>, vector<1x80x120xf32>
    %145 = vector.shape_cast %144 : vector<1x80x120xf32> to vector<80x120xf32>
    %cst_117 = arith.constant dense<0.000000e+00> : vector<1x120xf32>
    %146 = tpu.matmul %143, %145, %cst_117 {dimension_numbers = #tpu.dot_dimension_numbers<[1], [0], [0], [1], [0, 0, 1, 1], [], []>} : vector<1x80xf32>, vector<80x120xf32>, vector<1x120xf32> -> vector<1x120xf32>
    %147 = arith.addf %142, %146 : vector<1x120xf32>
    %148 = vector.extract_strided_slice %133 {offsets = [3, 0], sizes = [1, 80], strides = [1, 1]} : vector<5x80xf32> to vector<1x80xf32>
    %c3_118 = arith.constant 3 : index
    %c0_119 = arith.constant 0 : index
    %c0_120 = arith.constant 0 : index
    %149 = vector.load %arg14[%c3_118, %c0_119, %c0_120] : memref<5x80x120xf32, #tpu.memory_space<vmem>>, vector<1x80x120xf32>
    %150 = vector.shape_cast %149 : vector<1x80x120xf32> to vector<80x120xf32>
    %cst_121 = arith.constant dense<0.000000e+00> : vector<1x120xf32>
    %151 = tpu.matmul %148, %150, %cst_121 {dimension_numbers = #tpu.dot_dimension_numbers<[1], [0], [0], [1], [0, 0, 1, 1], [], []>} : vector<1x80xf32>, vector<80x120xf32>, vector<1x120xf32> -> vector<1x120xf32>
    %152 = arith.addf %147, %151 : vector<1x120xf32>
    %153 = vector.extract_strided_slice %133 {offsets = [4, 0], sizes = [1, 80], strides = [1, 1]} : vector<5x80xf32> to vector<1x80xf32>
    %c4_122 = arith.constant 4 : index
    %c0_123 = arith.constant 0 : index
    %c0_124 = arith.constant 0 : index
    %154 = vector.load %arg14[%c4_122, %c0_123, %c0_124] : memref<5x80x120xf32, #tpu.memory_space<vmem>>, vector<1x80x120xf32>
    %155 = vector.shape_cast %154 : vector<1x80x120xf32> to vector<80x120xf32>
    %cst_125 = arith.constant dense<0.000000e+00> : vector<1x120xf32>
    %156 = tpu.matmul %153, %155, %cst_125 {dimension_numbers = #tpu.dot_dimension_numbers<[1], [0], [0], [1], [0, 0, 1, 1], [], []>} : vector<1x80xf32>, vector<80x120xf32>, vector<1x120xf32> -> vector<1x120xf32>
    %157 = arith.addf %152, %156 : vector<1x120xf32>
    %c0_126 = arith.constant 0 : index
    %c0_127 = arith.constant 0 : index
    %158 = vector.load %arg15[%c0_126, %c0_127] : memref<1x120xf32, #tpu.memory_space<vmem>>, vector<1x120xf32>
    %159 = arith.addf %157, %158 : vector<1x120xf32>
    %cst_128 = arith.constant 0.000000e+00 : f32
    %160 = vector.broadcast %cst_128 : f32 to vector<1x120xf32>
    %161 = arith.maximumf %159, %160 : vector<1x120xf32>
    %c0_129 = arith.constant 0 : index
    %c0_130 = arith.constant 0 : index
    %162 = vector.load %arg16[%c0_129, %c0_130] : memref<120x84xf32, #tpu.memory_space<vmem>>, vector<120x84xf32>
    %cst_131 = arith.constant dense<0.000000e+00> : vector<1x84xf32>
    %163 = tpu.matmul %161, %162, %cst_131 {dimension_numbers = #tpu.dot_dimension_numbers<[1], [0], [0], [1], [0, 0, 1, 1], [], []>} : vector<1x120xf32>, vector<120x84xf32>, vector<1x84xf32> -> vector<1x84xf32>
    %c0_132 = arith.constant 0 : index
    %c0_133 = arith.constant 0 : index
    %164 = vector.load %arg17[%c0_132, %c0_133] : memref<1x84xf32, #tpu.memory_space<vmem>>, vector<1x84xf32>
    %165 = arith.addf %163, %164 : vector<1x84xf32>
    %cst_134 = arith.constant 0.000000e+00 : f32
    %166 = vector.broadcast %cst_134 : f32 to vector<1x84xf32>
    %167 = arith.maximumf %165, %166 : vector<1x84xf32>
    %c0_135 = arith.constant 0 : index
    %c0_136 = arith.constant 0 : index
    %168 = vector.load %arg18[%c0_135, %c0_136] : memref<84x10xf32, #tpu.memory_space<vmem>>, vector<84x10xf32>
    %cst_137 = arith.constant dense<0.000000e+00> : vector<1x10xf32>
    %169 = tpu.matmul %167, %168, %cst_137 {dimension_numbers = #tpu.dot_dimension_numbers<[1], [0], [0], [1], [0, 0, 1, 1], [], []>} : vector<1x84xf32>, vector<84x10xf32>, vector<1x10xf32> -> vector<1x10xf32>
    %c0_138 = arith.constant 0 : index
    %c0_139 = arith.constant 0 : index
    %170 = vector.load %arg19[%c0_138, %c0_139] : memref<1x10xf32, #tpu.memory_space<vmem>>, vector<1x10xf32>
    %171 = arith.addf %169, %170 : vector<1x10xf32>
    %c0_140 = arith.constant 0 : index
    %c0_141 = arith.constant 0 : index
    %c0_142 = arith.constant 0 : index
    %172 = vector.load %arg20[%c0_140, %c0_141, %c0_142] : memref<1x1x10xf32, #tpu.memory_space<vmem>>, vector<1x1x10xf32>
    %173 = vector.shape_cast %172 : vector<1x1x10xf32> to vector<1x10xf32>
    %174 = vector.shape_cast %171 : vector<1x10xf32> to vector<1x1x10xf32>
    tpu.vector_store %arg20[%c0_140, %c0_141, %c0_142], %174 {strides = array<i32>} : memref<1x1x10xf32, #tpu.memory_space<vmem>>, vector<1x1x10xf32>,
    return
  }
  func.func @transform_0(%arg0: i32) -> (i32, i32, i32, i32) {
    %c0_i32 = arith.constant 0 : i32
    %c0_i32_0 = arith.constant 0 : i32
    %c0_i32_1 = arith.constant 0 : i32
    %c0_i32_2 = arith.constant 0 : i32
    return %arg0, %c0_i32, %c0_i32_0, %c0_i32_1 : i32, i32, i32, i32
  }
  func.func @transform_1(%arg0: i32) -> (i32, i32, i32) {
    %c0_i32 = arith.constant 0 : i32
    %c0_i32_0 = arith.constant 0 : i32
    %c0_i32_1 = arith.constant 0 : i32
    %c0_i32_2 = arith.constant 0 : i32
    return %c0_i32, %c0_i32_0, %c0_i32_1 : i32, i32, i32
  }
  func.func @transform_2(%arg0: i32) -> (i32, i32) {
    %c0_i32 = arith.constant 0 : i32
    %c0_i32_0 = arith.constant 0 : i32
    %c0_i32_1 = arith.constant 0 : i32
    return %c0_i32, %c0_i32_0 : i32, i32
  }
  func.func @transform_3(%arg0: i32) -> (i32, i32) {
    %c0_i32 = arith.constant 0 : i32
    %c0_i32_0 = arith.constant 0 : i32
    %c0_i32_1 = arith.constant 0 : i32
    return %c0_i32, %c0_i32_0 : i32, i32
  }
  func.func @transform_4(%arg0: i32) -> (i32, i32) {
    %c0_i32 = arith.constant 0 : i32
    %c0_i32_0 = arith.constant 0 : i32
    %c0_i32_1 = arith.constant 0 : i32
    return %c0_i32, %c0_i32_0 : i32, i32
  }
  func.func @transform_5(%arg0: i32) -> (i32, i32) {
    %c0_i32 = arith.constant 0 : i32
    %c0_i32_0 = arith.constant 0 : i32
    %c0_i32_1 = arith.constant 0 : i32
    return %c0_i32, %c0_i32_0 : i32, i32
  }
  func.func @transform_6(%arg0: i32) -> (i32, i32) {
    %c0_i32 = arith.constant 0 : i32
    %c0_i32_0 = arith.constant 0 : i32
    %c0_i32_1 = arith.constant 0 : i32
    return %c0_i32, %c0_i32_0 : i32, i32
  }
  func.func @transform_7(%arg0: i32) -> (i32, i32, i32) {
    %c0_i32 = arith.constant 0 : i32
    %c0_i32_0 = arith.constant 0 : i32
    %c0_i32_1 = arith.constant 0 : i32
    %c0_i32_2 = arith.constant 0 : i32
    return %c0_i32, %c0_i32_0, %c0_i32_1 : i32, i32, i32
  }
  func.func @transform_8(%arg0: i32) -> (i32, i32) {
    %c0_i32 = arith.constant 0 : i32
    %c0_i32_0 = arith.constant 0 : i32
    %c0_i32_1 = arith.constant 0 : i32
    return %c0_i32, %c0_i32_0 : i32, i32
  }
  func.func @transform_9(%arg0: i32) -> (i32, i32) {
    %c0_i32 = arith.constant 0 : i32
    %c0_i32_0 = arith.constant 0 : i32
    %c0_i32_1 = arith.constant 0 : i32
    return %c0_i32, %c0_i32_0 : i32, i32
  }
  func.func @transform_10(%arg0: i32) -> (i32, i32) {
    %c0_i32 = arith.constant 0 : i32
    %c0_i32_0 = arith.constant 0 : i32
    %c0_i32_1 = arith.constant 0 : i32
    return %c0_i32, %c0_i32_0 : i32, i32
  }
  func.func @transform_11(%arg0: i32) -> (i32, i32) {
    %c0_i32 = arith.constant 0 : i32
    %c0_i32_0 = arith.constant 0 : i32
    %c0_i32_1 = arith.constant 0 : i32
    return %c0_i32, %c0_i32_0 : i32, i32
  }
  func.func @transform_12(%arg0: i32) -> (i32, i32) {
    %c0_i32 = arith.constant 0 : i32
    %c0_i32_0 = arith.constant 0 : i32
    %c0_i32_1 = arith.constant 0 : i32
    return %c0_i32, %c0_i32_0 : i32, i32
  }
  func.func @transform_13(%arg0: i32) -> (i32, i32, i32) {
    %c0_i32 = arith.constant 0 : i32
    %c0_i32_0 = arith.constant 0 : i32
    %c0_i32_1 = arith.constant 0 : i32
    %c0_i32_2 = arith.constant 0 : i32
    return %c0_i32, %c0_i32_0, %c0_i32_1 : i32, i32, i32
  }
  func.func @transform_14(%arg0: i32) -> (i32, i32) {
    %c0_i32 = arith.constant 0 : i32
    %c0_i32_0 = arith.constant 0 : i32
    %c0_i32_1 = arith.constant 0 : i32
    return %c0_i32, %c0_i32_0 : i32, i32
  }
  func.func @transform_15(%arg0: i32) -> (i32, i32) {
    %c0_i32 = arith.constant 0 : i32
    %c0_i32_0 = arith.constant 0 : i32
    %c0_i32_1 = arith.constant 0 : i32
    return %c0_i32, %c0_i32_0 : i32, i32
  }
  func.func @transform_16(%arg0: i32) -> (i32, i32) {
    %c0_i32 = arith.constant 0 : i32
    %c0_i32_0 = arith.constant 0 : i32
    %c0_i32_1 = arith.constant 0 : i32
    return %c0_i32, %c0_i32_0 : i32, i32
  }
  func.func @transform_17(%arg0: i32) -> (i32, i32) {
    %c0_i32 = arith.constant 0 : i32
    %c0_i32_0 = arith.constant 0 : i32
    %c0_i32_1 = arith.constant 0 : i32
    return %c0_i32, %c0_i32_0 : i32, i32
  }
  func.func @transform_18(%arg0: i32) -> (i32, i32) {
    %c0_i32 = arith.constant 0 : i32
    %c0_i32_0 = arith.constant 0 : i32
    %c0_i32_1 = arith.constant 0 : i32
    return %c0_i32, %c0_i32_0 : i32, i32
  }
  func.func @transform_19(%arg0: i32) -> (i32, i32, i32) {
    %c0_i32 = arith.constant 0 : i32
    %c0_i32_0 = arith.constant 0 : i32
    %c0_i32_1 = arith.constant 0 : i32
    return %arg0, %c0_i32, %c0_i32_0 : i32, i32, i32
  }
}

</mosaic_0001>

<llo_original>
// kernel: lenet5_forward.1
$region0: #{lenet5_forward.1}
  #allocation0 [shape = 'u32[]', space=smem, size = 0x4, offset = 0x4, fixed_abs, tag = 'smem constant byte address 0x4 - core index']
  #allocation1 [shape = 'u32[144,128]{1,0:T(1,128)}', space=vmem, size = 0x12000, scoped, tag = 'internal scratch']
  %s0 = inlined_call_operand.vmem [shape: f32[2,3,32,32], index: 0, kind: input, shape index: {}]
  %s1 = inlined_call_operand.vmem [shape: f32[15,32,168], index: 1, kind: input, shape index: {}]
  %s2 = inlined_call_operand.vmem [shape: f32[1,168], index: 2, kind: input, shape index: {}]
  %s3 = inlined_call_operand.vmem [shape: f32[14,28], index: 3, kind: input, shape index: {}]
  %s4 = inlined_call_operand.vmem [shape: f32[14,28], index: 4, kind: input, shape index: {}]
  %s5 = inlined_call_operand.vmem [shape: f32[168,84], index: 5, kind: input, shape index: {}]
  %s6 = inlined_call_operand.vmem [shape: f32[168,84], index: 6, kind: input, shape index: {}]
  %s7 = inlined_call_operand.vmem [shape: f32[5,84,160], index: 7, kind: input, shape index: {}]
  %s8 = inlined_call_operand.vmem [shape: f32[1,160], index: 8, kind: input, shape index: {}]
  %s9 = inlined_call_operand.vmem [shape: f32[5,10], index: 9, kind: input, shape index: {}]
  %s10 = inlined_call_operand.vmem [shape: f32[5,10], index: 10, kind: input, shape index: {}]
  %s11 = inlined_call_operand.hbm [shape: f32[160,80], index: 11, kind: input, shape index: {}]
  %s12 = inlined_call_operand.hbm [shape: f32[160,80], index: 12, kind: input, shape index: {}]
  %s13 = inlined_call_operand.vmem [shape: f32[5,80,120], index: 13, kind: input, shape index: {}]
  %s14 = inlined_call_operand.vmem [shape: f32[1,120], index: 14, kind: input, shape index: {}]
  %s15 = inlined_call_operand.vmem [shape: f32[120,84], index: 15, kind: input, shape index: {}]
  %s16 = inlined_call_operand.vmem [shape: f32[1,84], index: 16, kind: input, shape index: {}]
  %s17 = inlined_call_operand.vmem [shape: f32[84,10], index: 17, kind: input, shape index: {}]
  %s18 = inlined_call_operand.vmem [shape: f32[1,10], index: 18, kind: input, shape index: {}]
  %s19 = inlined_call_operand.hbm [shape: f32[2,1,10], index: 19, kind: output, shape index: {}]
  %s20 = sld [smem:[#allocation0]]
  $region117: #{lenet5_forward.1} parent=0
    _
  %s22 = ssub.s32 1, %s20
  %s23 = scalar_select 0, %s22, %s20
  $region1: #{lenet5_forward.1} parent=0
    #allocation2 [shape = 'u8[81920]{0}', space=vmem, size = 0x14000, scoped, tag = 'input window, operand 11, single buffered']
    #allocation3 [shape = 's32[2]{0}', space=sflag, size = 0x8, scoped, tag = 'scoped memory for lenet5_forward.1']
    #allocation4 [shape = 's32[2]{0}', space=sflag, size = 0x8, scoped, tag = 'scoped memory for lenet5_forward.1']
    #allocation5 [shape = 'u8[81920]{0}', space=vmem, size = 0x14000, scoped, tag = 'input window, operand 12, single buffered']
    #allocation6 [shape = 's32[1]{0}', space=sflag, size = 0x4, scoped, tag = 'scoped memory for lenet5_forward.1']
    #allocation7 [shape = 'u8[1024]{0}', space=vmem, size = 0x400, scoped, tag = 'output window, operand 0']
    %24 = vsyncpa [#allocation3], 0
    %25 = vsyncpa [#allocation6], 0
    %26 = vsyncpa [#allocation4], 0
    %s27 = scalar_lea.sflag [#allocation4], 1
    %28 = vsyncpa %s27, 0
    loop: start=0, step=1, limit=4
    $region2: #{lenet5_forward.1} parent=1 // loop_pre_header
      _
    $region3: #{lenet5_forward.1} parent=1 // loop_header
      %s30 = sphi 0, %s34
      %p31 = scmp.ge.s32.totalorder %s30, 4
      %s40 = sphi 0, %s42
      %s43 = sphi 0, %s40
      %s44 = sphi 0, %s43
      %s60 = sphi 0, %s44
      %s64 = sphi 0, %s64
      %s66 = sphi 0, %s64
      %s67 = sphi 0, %s66
      %s81 = sphi 0, %s67
      %s85 = sphi 0, %s85
      %s87 = sphi 0, %s85
      %s88 = sphi 0, %s87
      %s102 = sphi 0, %s88
      %s106 = sphi 0, %s106
      %s108 = sphi 0, %s106
      %s109 = sphi 0, %s108
      %s123 = sphi 0, %s109
      %s127 = sphi 0, %s127
      %s129 = sphi 0, %s127
      %s130 = sphi 0, %s129
      %s144 = sphi 0, %s130
      %s148 = sphi 0, %s148
      %s150 = sphi 0, %s148
      %s151 = sphi 0, %s150
      %s165 = sphi 0, %s151
      %s169 = sphi 0, %s169
      %s171 = sphi 0, %s169
      %s172 = sphi 0, %s171
      %s186 = sphi 0, %s172
      %s190 = sphi 0, %s190
      %s192 = sphi 0, %s190
      %s193 = sphi 0, %s192
      %s207 = sphi 0, %s193
      %s211 = sphi 0, %s211
      %s213 = sphi 0, %s211
      %s214 = sphi 0, %s213
      %s228 = sphi 0, %s214
      %s232 = sphi 0, %s232
      %s234 = sphi 0, %s232
      %s235 = sphi 0, %s234
      %s249 = sphi 0, %s235
      %s253 = sphi 0, %s253
      %s255 = sphi 0, %s253
      %s256 = sphi 0, %s255
      %s270 = sphi 0, %s256
      %s274 = sphi 0, %s274
      %s276 = sphi 0, %s274
      %s277 = sphi 0, %s276
      %s291 = sphi 0, %s277
      %s295 = sphi 0, %s295
      %s297 = sphi 0, %s295
      %s298 = sphi 0, %s297
      %s312 = sphi 0, %s298
      %s316 = sphi 0, %s316
      %s318 = sphi 0, %s316
      %s319 = sphi 0, %s318
      %s333 = sphi 0, %s319
      %s337 = sphi 0, %s337
      %s339 = sphi 0, %s337
      %s340 = sphi 0, %s339
      %s354 = sphi 0, %s340
      %s358 = sphi 0, %s358
      %s360 = sphi 0, %s358
      %s361 = sphi 0, %s360
      %s375 = sphi 0, %s361
      %s379 = sphi 0, %s379
      %s381 = sphi 0, %s379
      %s382 = sphi 0, %s381
      %s396 = sphi 0, %s382
      %s400 = sphi 0, %s400
      %s402 = sphi 0, %s400
      %s403 = sphi 0, %s402
      %s417 = sphi 0, %s403
      %s421 = sphi 0, %s421
      %s423 = sphi 0, %s421
      %s424 = sphi 0, %s423
      %s438 = sphi 0, %s424
      %s444 = sphi 0, %s446
      %s447 = sphi 0, %s444
      %s448 = sphi 0, %s447
      %s464 = sphi 0, %s448
    $region4: #{lenet5_forward.1} parent=1 // loop_header_branch
      %33 = sbr.rel (%p31) target = $region8
    $region5: #{lenet5_forward.1} parent=1 // loop_body
      %s35 = ssub.s32 %s30, 1
      %s36 = ssub.s32 %s30, 2
      %s37 = sadd.s32 %s30, 1
      %s38 = ssub.s32 %s30, %s37
      %p39 = scmp.eq.s32.totalorder %s38, 0
      %s41 = sadd.s32 %s40, 1
      %s42 = scalar_select %p39, %s40, %s41
      %p45 = pneg %p39
      %p46 = scmp.eq.s32.totalorder %s30, 1
      %p47 = por %p45, %p46
      %p48 = scmp.ne.s32.totalorder %s40, %s43
      %p49 = scmp.eq.s32.totalorder %s30, 0
      %p50 = por %p48, %p49
      %p51 = scmp.ne.s32.totalorder %s40, %s43
      %p52 = scmp.eq.s32.totalorder %s35, 1
      %p53 = por %p51, %p52
      %p54 = scmp.ne.s32.totalorder %s43, %s44
      %p55 = scmp.eq.s32.totalorder %s35, 0
      %p56 = por %p54, %p55
      %p57 = scmp.ne.s32.totalorder %s43, %s44
      %p58 = scmp.eq.s32.totalorder %s36, 1
      %p59 = por %p57, %p58
      %p61 = scmp.ne.s32.totalorder %s44, %s60
      %p62 = scmp.eq.s32.totalorder %s36, 0
      %p63 = por %p61, %p62
      %s65 = sadd.s32 %s64, 1
      %p68 = scmp.eq.s32.totalorder %s30, 1
      %p69 = scmp.ne.s32.totalorder %s64, %s66
      %p70 = scmp.eq.s32.totalorder %s30, 0
      %p71 = por %p69, %p70
      %p72 = scmp.ne.s32.totalorder %s64, %s66
      %p73 = scmp.eq.s32.totalorder %s35, 1
      %p74 = por %p72, %p73
      %p75 = scmp.ne.s32.totalorder %s66, %s67
      %p76 = scmp.eq.s32.totalorder %s35, 0
      %p77 = por %p75, %p76
      %p78 = scmp.ne.s32.totalorder %s66, %s67
      %p79 = scmp.eq.s32.totalorder %s36, 1
      %p80 = por %p78, %p79
      %p82 = scmp.ne.s32.totalorder %s67, %s81
      %p83 = scmp.eq.s32.totalorder %s36, 0
      %p84 = por %p82, %p83
      %s86 = sadd.s32 %s85, 1
      %p89 = scmp.eq.s32.totalorder %s30, 1
      %p90 = scmp.ne.s32.totalorder %s85, %s87
      %p91 = scmp.eq.s32.totalorder %s30, 0
      %p92 = por %p90, %p91
      %p93 = scmp.ne.s32.totalorder %s85, %s87
      %p94 = scmp.eq.s32.totalorder %s35, 1
      %p95 = por %p93, %p94
      %p96 = scmp.ne.s32.totalorder %s87, %s88
      %p97 = scmp.eq.s32.totalorder %s35, 0
      %p98 = por %p96, %p97
      %p99 = scmp.ne.s32.totalorder %s87, %s88
      %p100 = scmp.eq.s32.totalorder %s36, 1
      %p101 = por %p99, %p100
      %p103 = scmp.ne.s32.totalorder %s88, %s102
      %p104 = scmp.eq.s32.totalorder %s36, 0
      %p105 = por %p103, %p104
      %s107 = sadd.s32 %s106, 1
      %p110 = scmp.eq.s32.totalorder %s30, 1
      %p111 = scmp.ne.s32.totalorder %s106, %s108
      %p112 = scmp.eq.s32.totalorder %s30, 0
      %p113 = por %p111, %p112
      %p114 = scmp.ne.s32.totalorder %s106, %s108
      %p115 = scmp.eq.s32.totalorder %s35, 1
      %p116 = por %p114, %p115
      %p117 = scmp.ne.s32.totalorder %s108, %s109
      %p118 = scmp.eq.s32.totalorder %s35, 0
      %p119 = por %p117, %p118
      %p120 = scmp.ne.s32.totalorder %s108, %s109
      %p121 = scmp.eq.s32.totalorder %s36, 1
      %p122 = por %p120, %p121
      %p124 = scmp.ne.s32.totalorder %s109, %s123
      %p125 = scmp.eq.s32.totalorder %s36, 0
      %p126 = por %p124, %p125
      %s128 = sadd.s32 %s127, 1
      %p131 = scmp.eq.s32.totalorder %s30, 1
      %p132 = scmp.ne.s32.totalorder %s127, %s129
      %p133 = scmp.eq.s32.totalorder %s30, 0
      %p134 = por %p132, %p133
      %p135 = scmp.ne.s32.totalorder %s127, %s129
      %p136 = scmp.eq.s32.totalorder %s35, 1
      %p137 = por %p135, %p136
      %p138 = scmp.ne.s32.totalorder %s129, %s130
      %p139 = scmp.eq.s32.totalorder %s35, 0
      %p140 = por %p138, %p139
      %p141 = scmp.ne.s32.totalorder %s129, %s130
      %p142 = scmp.eq.s32.totalorder %s36, 1
      %p143 = por %p141, %p142
      %p145 = scmp.ne.s32.totalorder %s130, %s144
      %p146 = scmp.eq.s32.totalorder %s36, 0
      %p147 = por %p145, %p146
      %s149 = sadd.s32 %s148, 1
      %p152 = scmp.eq.s32.totalorder %s30, 1
      %p153 = scmp.ne.s32.totalorder %s148, %s150
      %p154 = scmp.eq.s32.totalorder %s30, 0
      %p155 = por %p153, %p154
      %p156 = scmp.ne.s32.totalorder %s148, %s150
      %p157 = scmp.eq.s32.totalorder %s35, 1
      %p158 = por %p156, %p157
      %p159 = scmp.ne.s32.totalorder %s150, %s151
      %p160 = scmp.eq.s32.totalorder %s35, 0
      %p161 = por %p159, %p160
      %p162 = scmp.ne.s32.totalorder %s150, %s151
      %p163 = scmp.eq.s32.totalorder %s36, 1
      %p164 = por %p162, %p163
      %p166 = scmp.ne.s32.totalorder %s151, %s165
      %p167 = scmp.eq.s32.totalorder %s36, 0
      %p168 = por %p166, %p167
      %s170 = sadd.s32 %s169, 1
      %p173 = scmp.eq.s32.totalorder %s30, 1
      %p174 = scmp.ne.s32.totalorder %s169, %s171
      %p175 = scmp.eq.s32.totalorder %s30, 0
      %p176 = por %p174, %p175
      %p177 = scmp.ne.s32.totalorder %s169, %s171
      %p178 = scmp.eq.s32.totalorder %s35, 1
      %p179 = por %p177, %p178
      %p180 = scmp.ne.s32.totalorder %s171, %s172
      %p181 = scmp.eq.s32.totalorder %s35, 0
      %p182 = por %p180, %p181
      %p183 = scmp.ne.s32.totalorder %s171, %s172
      %p184 = scmp.eq.s32.totalorder %s36, 1
      %p185 = por %p183, %p184
      %p187 = scmp.ne.s32.totalorder %s172, %s186
      %p188 = scmp.eq.s32.totalorder %s36, 0
      %p189 = por %p187, %p188
      %s191 = sadd.s32 %s190, 1
      %p194 = scmp.eq.s32.totalorder %s30, 1
      %p195 = scmp.ne.s32.totalorder %s190, %s192
      %p196 = scmp.eq.s32.totalorder %s30, 0
      %p197 = por %p195, %p196
      %p198 = scmp.ne.s32.totalorder %s190, %s192
      %p199 = scmp.eq.s32.totalorder %s35, 1
      %p200 = por %p198, %p199
      %p201 = scmp.ne.s32.totalorder %s192, %s193
      %p202 = scmp.eq.s32.totalorder %s35, 0
      %p203 = por %p201, %p202
      %p204 = scmp.ne.s32.totalorder %s192, %s193
      %p205 = scmp.eq.s32.totalorder %s36, 1
      %p206 = por %p204, %p205
      %p208 = scmp.ne.s32.totalorder %s193, %s207
      %p209 = scmp.eq.s32.totalorder %s36, 0
      %p210 = por %p208, %p209
      %s212 = sadd.s32 %s211, 1
      %p215 = scmp.eq.s32.totalorder %s30, 1
      %p216 = scmp.ne.s32.totalorder %s211, %s213
      %p217 = scmp.eq.s32.totalorder %s30, 0
      %p218 = por %p216, %p217
      %p219 = scmp.ne.s32.totalorder %s211, %s213
      %p220 = scmp.eq.s32.totalorder %s35, 1
      %p221 = por %p219, %p220
      %p222 = scmp.ne.s32.totalorder %s213, %s214
      %p223 = scmp.eq.s32.totalorder %s35, 0
      %p224 = por %p222, %p223
      %p225 = scmp.ne.s32.totalorder %s213, %s214
      %p226 = scmp.eq.s32.totalorder %s36, 1
      %p227 = por %p225, %p226
      %p229 = scmp.ne.s32.totalorder %s214, %s228
      %p230 = scmp.eq.s32.totalorder %s36, 0
      %p231 = por %p229, %p230
      %s233 = sadd.s32 %s232, 1
      %p236 = scmp.eq.s32.totalorder %s30, 1
      %p237 = scmp.ne.s32.totalorder %s232, %s234
      %p238 = scmp.eq.s32.totalorder %s30, 0
      %p239 = por %p237, %p238
      %p240 = scmp.ne.s32.totalorder %s232, %s234
      %p241 = scmp.eq.s32.totalorder %s35, 1
      %p242 = por %p240, %p241
      %p243 = scmp.ne.s32.totalorder %s234, %s235
      %p244 = scmp.eq.s32.totalorder %s35, 0
      %p245 = por %p243, %p244
      %p246 = scmp.ne.s32.totalorder %s234, %s235
      %p247 = scmp.eq.s32.totalorder %s36, 1
      %p248 = por %p246, %p247
      %p250 = scmp.ne.s32.totalorder %s235, %s249
      %p251 = scmp.eq.s32.totalorder %s36, 0
      %p252 = por %p250, %p251
      %s254 = sadd.s32 %s253, 1
      %p257 = scmp.eq.s32.totalorder %s30, 1
      %p258 = scmp.ne.s32.totalorder %s253, %s255
      %p259 = scmp.eq.s32.totalorder %s30, 0
      %p260 = por %p258, %p259
      %p261 = scmp.ne.s32.totalorder %s253, %s255
      %p262 = scmp.eq.s32.totalorder %s35, 1
      %p263 = por %p261, %p262
      %p264 = scmp.ne.s32.totalorder %s255, %s256
      %p265 = scmp.eq.s32.totalorder %s35, 0
      %p266 = por %p264, %p265
      %p267 = scmp.ne.s32.totalorder %s255, %s256
      %p268 = scmp.eq.s32.totalorder %s36, 1
      %p269 = por %p267, %p268
      %p271 = scmp.ne.s32.totalorder %s256, %s270
      %p272 = scmp.eq.s32.totalorder %s36, 0
      %p273 = por %p271, %p272
      %s275 = sadd.s32 %s274, 1
      %p278 = scmp.eq.s32.totalorder %s30, 1
      %p279 = scmp.ne.s32.totalorder %s274, %s276
      %p280 = scmp.eq.s32.totalorder %s30, 0
      %p281 = por %p279, %p280
      %p282 = scmp.ne.s32.totalorder %s274, %s276
      %p283 = scmp.eq.s32.totalorder %s35, 1
      %p284 = por %p282, %p283
      %p285 = scmp.ne.s32.totalorder %s276, %s277
      %p286 = scmp.eq.s32.totalorder %s35, 0
      %p287 = por %p285, %p286
      %p288 = scmp.ne.s32.totalorder %s276, %s277
      %p289 = scmp.eq.s32.totalorder %s36, 1
      %p290 = por %p288, %p289
      %p292 = scmp.ne.s32.totalorder %s277, %s291
      %p293 = scmp.eq.s32.totalorder %s36, 0
      %p294 = por %p292, %p293
      %s296 = sadd.s32 %s295, 1
      %p299 = scmp.eq.s32.totalorder %s30, 1
      %p300 = scmp.ne.s32.totalorder %s295, %s297
      %p301 = scmp.eq.s32.totalorder %s30, 0
      %p302 = por %p300, %p301
      %p303 = scmp.ne.s32.totalorder %s295, %s297
      %p304 = scmp.eq.s32.totalorder %s35, 1
      %p305 = por %p303, %p304
      %p306 = scmp.ne.s32.totalorder %s297, %s298
      %p307 = scmp.eq.s32.totalorder %s35, 0
      %p308 = por %p306, %p307
      %p309 = scmp.ne.s32.totalorder %s297, %s298
      %p310 = scmp.eq.s32.totalorder %s36, 1
      %p311 = por %p309, %p310
      %p313 = scmp.ne.s32.totalorder %s298, %s312
      %p314 = scmp.eq.s32.totalorder %s36, 0
      %p315 = por %p313, %p314
      %s317 = sadd.s32 %s316, 1
      %p320 = scmp.eq.s32.totalorder %s30, 1
      %p321 = scmp.ne.s32.totalorder %s316, %s318
      %p322 = scmp.eq.s32.totalorder %s30, 0
      %p323 = por %p321, %p322
      %p324 = scmp.ne.s32.totalorder %s316, %s318
      %p325 = scmp.eq.s32.totalorder %s35, 1
      %p326 = por %p324, %p325
      %p327 = scmp.ne.s32.totalorder %s318, %s319
      %p328 = scmp.eq.s32.totalorder %s35, 0
      %p329 = por %p327, %p328
      %p330 = scmp.ne.s32.totalorder %s318, %s319
      %p331 = scmp.eq.s32.totalorder %s36, 1
      %p332 = por %p330, %p331
      %p334 = scmp.ne.s32.totalorder %s319, %s333
      %p335 = scmp.eq.s32.totalorder %s36, 0
      %p336 = por %p334, %p335
      %s338 = sadd.s32 %s337, 1
      %p341 = scmp.eq.s32.totalorder %s30, 1
      %p342 = scmp.ne.s32.totalorder %s337, %s339
      %p343 = scmp.eq.s32.totalorder %s30, 0
      %p344 = por %p342, %p343
      %p345 = scmp.ne.s32.totalorder %s337, %s339
      %p346 = scmp.eq.s32.totalorder %s35, 1
      %p347 = por %p345, %p346
      %p348 = scmp.ne.s32.totalorder %s339, %s340
      %p349 = scmp.eq.s32.totalorder %s35, 0
      %p350 = por %p348, %p349
      %p351 = scmp.ne.s32.totalorder %s339, %s340
      %p352 = scmp.eq.s32.totalorder %s36, 1
      %p353 = por %p351, %p352
      %p355 = scmp.ne.s32.totalorder %s340, %s354
      %p356 = scmp.eq.s32.totalorder %s36, 0
      %p357 = por %p355, %p356
      %s359 = sadd.s32 %s358, 1
      %p362 = scmp.eq.s32.totalorder %s30, 1
      %p363 = scmp.ne.s32.totalorder %s358, %s360
      %p364 = scmp.eq.s32.totalorder %s30, 0
      %p365 = por %p363, %p364
      %p366 = scmp.ne.s32.totalorder %s358, %s360
      %p367 = scmp.eq.s32.totalorder %s35, 1
      %p368 = por %p366, %p367
      %p369 = scmp.ne.s32.totalorder %s360, %s361
      %p370 = scmp.eq.s32.totalorder %s35, 0
      %p371 = por %p369, %p370
      %p372 = scmp.ne.s32.totalorder %s360, %s361
      %p373 = scmp.eq.s32.totalorder %s36, 1
      %p374 = por %p372, %p373
      %p376 = scmp.ne.s32.totalorder %s361, %s375
      %p377 = scmp.eq.s32.totalorder %s36, 0
      %p378 = por %p376, %p377
      %s380 = sadd.s32 %s379, 1
      %p383 = scmp.eq.s32.totalorder %s30, 1
      %p384 = scmp.ne.s32.totalorder %s379, %s381
      %p385 = scmp.eq.s32.totalorder %s30, 0
      %p386 = por %p384, %p385
      %p387 = scmp.ne.s32.totalorder %s379, %s381
      %p388 = scmp.eq.s32.totalorder %s35, 1
      %p389 = por %p387, %p388
      %p390 = scmp.ne.s32.totalorder %s381, %s382
      %p391 = scmp.eq.s32.totalorder %s35, 0
      %p392 = por %p390, %p391
      %p393 = scmp.ne.s32.totalorder %s381, %s382
      %p394 = scmp.eq.s32.totalorder %s36, 1
      %p395 = por %p393, %p394
      %p397 = scmp.ne.s32.totalorder %s382, %s396
      %p398 = scmp.eq.s32.totalorder %s36, 0
      %p399 = por %p397, %p398
      %s401 = sadd.s32 %s400, 1
      %p404 = scmp.eq.s32.totalorder %s30, 1
      %p405 = scmp.ne.s32.totalorder %s400, %s402
      %p406 = scmp.eq.s32.totalorder %s30, 0
      %p407 = por %p405, %p406
      %p408 = scmp.ne.s32.totalorder %s400, %s402
      %p409 = scmp.eq.s32.totalorder %s35, 1
      %p410 = por %p408, %p409
      %p411 = scmp.ne.s32.totalorder %s402, %s403
      %p412 = scmp.eq.s32.totalorder %s35, 0
      %p413 = por %p411, %p412
      %p414 = scmp.ne.s32.totalorder %s402, %s403
      %p415 = scmp.eq.s32.totalorder %s36, 1
      %p416 = por %p414, %p415
      %p418 = scmp.ne.s32.totalorder %s403, %s417
      %p419 = scmp.eq.s32.totalorder %s36, 0
      %p420 = por %p418, %p419
      %s422 = sadd.s32 %s421, 1
      %p425 = scmp.eq.s32.totalorder %s30, 1
      %p426 = scmp.ne.s32.totalorder %s421, %s423
      %p427 = scmp.eq.s32.totalorder %s30, 0
      %p428 = por %p426, %p427
      %p429 = scmp.ne.s32.totalorder %s421, %s423
      %p430 = scmp.eq.s32.totalorder %s35, 1
      %p431 = por %p429, %p430
      %p432 = scmp.ne.s32.totalorder %s423, %s424
      %p433 = scmp.eq.s32.totalorder %s35, 0
      %p434 = por %p432, %p433
      %p435 = scmp.ne.s32.totalorder %s423, %s424
      %p436 = scmp.eq.s32.totalorder %s36, 1
      %p437 = por %p435, %p436
      %p439 = scmp.ne.s32.totalorder %s424, %s438
      %p440 = scmp.eq.s32.totalorder %s36, 0
      %p441 = por %p439, %p440
      %s442 = ssub.s32 %s30, %s37
      %p443 = scmp.eq.s32.totalorder %s442, 0
      %s445 = sadd.s32 %s444, 1
      %s446 = scalar_select %p443, %s444, %s445
      %p449 = pneg %p443
      %p450 = scmp.eq.s32.totalorder %s30, 1
      %p451 = por %p449, %p450
      %p452 = scmp.ne.s32.totalorder %s444, %s447
      %p453 = scmp.eq.s32.totalorder %s30, 0
      %p454 = por %p452, %p453
      %p455 = scmp.ne.s32.totalorder %s444, %s447
      %p456 = scmp.eq.s32.totalorder %s35, 1
      %p457 = por %p455, %p456
      %p458 = scmp.ne.s32.totalorder %s447, %s448
      %p459 = scmp.eq.s32.totalorder %s35, 0
      %p460 = por %p458, %p459
      %p461 = scmp.ne.s32.totalorder %s447, %s448
      %p462 = scmp.eq.s32.totalorder %s36, 1
      %p463 = por %p461, %p462
      %p465 = scmp.ne.s32.totalorder %s448, %s464
      %p466 = scmp.eq.s32.totalorder %s36, 0
      %p467 = por %p465, %p466
      %p468 = scmp.le.s32.totalorder 1, %s30
      %p469 = scmp.lt.s32.totalorder %s30, 3
      %p470 = pnand %p468, %p469
      %p471 = pneg %p470
      // Predicated region
      $region9: #{lenet5_forward.1} parent=5 // pred_check
        _
      $region10: #{lenet5_forward.1} parent=5 // pred_check_branch
        %473 = sbr.rel (%p470) target = $region12
      $region11: #{lenet5_forward.1} parent=5 // pred_region
        %s474 = ssub.s32 %s30, 1
        // Predicated region
        $region13: #{lenet5_forward.1} parent=11 // pred_check
          %p475 = pneg %p77
        $region14: #{lenet5_forward.1} parent=11 // pred_check_branch
          %477 = sbr.rel (%p475) target = $region16
        $region15: #{lenet5_forward.1} parent=11 // pred_region
          _
        $region16: #{lenet5_forward.1} parent=11 // pred_fallthru
          _
        // Predicated region
        $region17: #{lenet5_forward.1} parent=11 // pred_check
          %p478 = pneg %p98
        $region18: #{lenet5_forward.1} parent=11 // pred_check_branch
          %480 = sbr.rel (%p478) target = $region20
        $region19: #{lenet5_forward.1} parent=11 // pred_region
          _
        $region20: #{lenet5_forward.1} parent=11 // pred_fallthru
          _
        // Predicated region
        $region21: #{lenet5_forward.1} parent=11 // pred_check
          %p481 = pneg %p119
        $region22: #{lenet5_forward.1} parent=11 // pred_check_branch
          %483 = sbr.rel (%p481) target = $region24
        $region23: #{lenet5_forward.1} parent=11 // pred_region
          _
        $region24: #{lenet5_forward.1} parent=11 // pred_fallthru
          _
        // Predicated region
        $region25: #{lenet5_forward.1} parent=11 // pred_check
          %p484 = pneg %p140
        $region26: #{lenet5_forward.1} parent=11 // pred_check_branch
          %486 = sbr.rel (%p484) target = $region28
        $region27: #{lenet5_forward.1} parent=11 // pred_region
          _
        $region28: #{lenet5_forward.1} parent=11 // pred_fallthru
          _
        // Predicated region
        $region29: #{lenet5_forward.1} parent=11 // pred_check
          %p487 = pneg %p161
        $region30: #{lenet5_forward.1} parent=11 // pred_check_branch
          %489 = sbr.rel (%p487) target = $region32
        $region31: #{lenet5_forward.1} parent=11 // pred_region
          _
        $region32: #{lenet5_forward.1} parent=11 // pred_fallthru
          _
        // Predicated region
        $region33: #{lenet5_forward.1} parent=11 // pred_check
          %p490 = pneg %p182
        $region34: #{lenet5_forward.1} parent=11 // pred_check_branch
          %492 = sbr.rel (%p490) target = $region36
        $region35: #{lenet5_forward.1} parent=11 // pred_region
          _
        $region36: #{lenet5_forward.1} parent=11 // pred_fallthru
          _
        // Predicated region
        $region37: #{lenet5_forward.1} parent=11 // pred_check
          %p493 = pneg %p203
        $region38: #{lenet5_forward.1} parent=11 // pred_check_branch
          %495 = sbr.rel (%p493) target = $region40
        $region39: #{lenet5_forward.1} parent=11 // pred_region
          _
        $region40: #{lenet5_forward.1} parent=11 // pred_fallthru
          _
        // Predicated region
        $region41: #{lenet5_forward.1} parent=11 // pred_check
          %p496 = pneg %p224
        $region42: #{lenet5_forward.1} parent=11 // pred_check_branch
          %498 = sbr.rel (%p496) target = $region44
        $region43: #{lenet5_forward.1} parent=11 // pred_region
          _
        $region44: #{lenet5_forward.1} parent=11 // pred_fallthru
          _
        // Predicated region
        $region45: #{lenet5_forward.1} parent=11 // pred_check
          %p499 = pneg %p245
        $region46: #{lenet5_forward.1} parent=11 // pred_check_branch
          %501 = sbr.rel (%p499) target = $region48
        $region47: #{lenet5_forward.1} parent=11 // pred_region
          _
        $region48: #{lenet5_forward.1} parent=11 // pred_fallthru
          _
        // Predicated region
        $region49: #{lenet5_forward.1} parent=11 // pred_check
          %p502 = pneg %p266
        $region50: #{lenet5_forward.1} parent=11 // pred_check_branch
          %504 = sbr.rel (%p502) target = $region52
        $region51: #{lenet5_forward.1} parent=11 // pred_region
          _
        $region52: #{lenet5_forward.1} parent=11 // pred_fallthru
          _
        // Predicated region
        $region53: #{lenet5_forward.1} parent=11 // pred_check
          %p505 = pneg %p287
        $region54: #{lenet5_forward.1} parent=11 // pred_check_branch
          %507 = sbr.rel (%p505) target = $region56
        $region55: #{lenet5_forward.1} parent=11 // pred_region
          %s509 = ssub.s32 2560, 2560
          %510 = vsyncadd [#allocation3], %s509
          %s511 = sshll.u32 [#allocation2], 4
          %s512 = int_to_ptr.vmem [resolvable:$true] %s511
          %517 = dma.hbm_to_vmem [thread:$0]  %s11, 2560, %s512, [#allocation3], 128, 128, 8
        $region56: #{lenet5_forward.1} parent=11 // pred_fallthru
          _
        // Predicated region
        $region57: #{lenet5_forward.1} parent=11 // pred_check
          %p518 = pneg %p308
        $region58: #{lenet5_forward.1} parent=11 // pred_check_branch
          %520 = sbr.rel (%p518) target = $region60
        $region59: #{lenet5_forward.1} parent=11 // pred_region
          %s522 = ssub.s32 2560, 2560
          %523 = vsyncadd [#allocation6], %s522
          %s524 = sshll.u32 [#allocation5], 4
          %s525 = int_to_ptr.vmem [resolvable:$true] %s524
          %530 = dma.hbm_to_vmem [thread:$0]  %s12, 2560, %s525, [#allocation6], 128, 128, 8
        $region60: #{lenet5_forward.1} parent=11 // pred_fallthru
          _
        // Predicated region
        $region61: #{lenet5_forward.1} parent=11 // pred_check
          %p531 = pneg %p329
        $region62: #{lenet5_forward.1} parent=11 // pred_check_branch
          %533 = sbr.rel (%p531) target = $region64
        $region63: #{lenet5_forward.1} parent=11 // pred_region
          _
        $region64: #{lenet5_forward.1} parent=11 // pred_fallthru
          _
        // Predicated region
        $region65: #{lenet5_forward.1} parent=11 // pred_check
          %p534 = pneg %p350
        $region66: #{lenet5_forward.1} parent=11 // pred_check_branch
          %536 = sbr.rel (%p534) target = $region68
        $region67: #{lenet5_forward.1} parent=11 // pred_region
          _
        $region68: #{lenet5_forward.1} parent=11 // pred_fallthru
          _
        // Predicated region
        $region69: #{lenet5_forward.1} parent=11 // pred_check
          %p537 = pneg %p371
        $region70: #{lenet5_forward.1} parent=11 // pred_check_branch
          %539 = sbr.rel (%p537) target = $region72
        $region71: #{lenet5_forward.1} parent=11 // pred_region
          _
        $region72: #{lenet5_forward.1} parent=11 // pred_fallthru
          _
        // Predicated region
        $region73: #{lenet5_forward.1} parent=11 // pred_check
          %p540 = pneg %p392
        $region74: #{lenet5_forward.1} parent=11 // pred_check_branch
          %542 = sbr.rel (%p540) target = $region76
        $region75: #{lenet5_forward.1} parent=11 // pred_region
          _
        $region76: #{lenet5_forward.1} parent=11 // pred_fallthru
          _
        // Predicated region
        $region77: #{lenet5_forward.1} parent=11 // pred_check
          %p543 = pneg %p413
        $region78: #{lenet5_forward.1} parent=11 // pred_check_branch
          %545 = sbr.rel (%p543) target = $region80
        $region79: #{lenet5_forward.1} parent=11 // pred_region
          _
        $region80: #{lenet5_forward.1} parent=11 // pred_fallthru
          _
        // Predicated region
        $region81: #{lenet5_forward.1} parent=11 // pred_check
          %p546 = pneg %p434
        $region82: #{lenet5_forward.1} parent=11 // pred_check_branch
          %548 = sbr.rel (%p546) target = $region84
        $region83: #{lenet5_forward.1} parent=11 // pred_region
          _
        $region84: #{lenet5_forward.1} parent=11 // pred_fallthru
          _
      $region12: #{lenet5_forward.1} parent=5 // pred_fallthru
        _
      %p549 = scmp.lt.s32.totalorder %s30, 2
      // Predicated region
      $region85: #{lenet5_forward.1} parent=5 // pred_check
        %p550 = pneg %p549
      $region86: #{lenet5_forward.1} parent=5 // pred_check_branch
        %552 = sbr.rel (%p550) target = $region88
      $region87: #{lenet5_forward.1} parent=5 // pred_region
        // Predicated region
        $region89: #{lenet5_forward.1} parent=87 // pred_check
          %p553 = pneg %p50
        $region90: #{lenet5_forward.1} parent=87 // pred_check_branch
          %555 = sbr.rel (%p553) target = $region92
        $region91: #{lenet5_forward.1} parent=87 // pred_region
          %p556 = scmp.lt.s32.totalorder %s30, 1
          %s557 = scalar_select %p556, %s30, 1
          %s558 = smul.addr %s557, 12
          %s559 = smul.addr %s558, 8
          %s560 = scalar_lea.vmem %s0, %s559
        $region92: #{lenet5_forward.1} parent=87 // pred_fallthru
          _
      $region88: #{lenet5_forward.1} parent=5 // pred_fallthru
        _
      %p561 = scmp.le.s32.totalorder 1, %s30
      %p562 = scmp.lt.s32.totalorder %s30, 3
      %p563 = pnand %p561, %p562
      %p564 = pneg %p563
      // Predicated region
      $region93: #{lenet5_forward.1} parent=5 // pred_check
        _
      $region94: #{lenet5_forward.1} parent=5 // pred_check_branch
        %566 = sbr.rel (%p563) target = $region96
      $region95: #{lenet5_forward.1} parent=5 // pred_region
        %s567 = ssub.s32 %s30, 1
        // Predicated region
        $region97: #{lenet5_forward.1} parent=95 // pred_check
          %p568 = pneg %p287
        $region98: #{lenet5_forward.1} parent=95 // pred_check_branch
          %570 = sbr.rel (%p568) target = $region100
        $region99: #{lenet5_forward.1} parent=95 // pred_region
          %571 = dma.done [#allocation3], 2560
        $region100: #{lenet5_forward.1} parent=95 // pred_fallthru
          _
        // Predicated region
        $region101: #{lenet5_forward.1} parent=95 // pred_check
          %p572 = pneg %p308
        $region102: #{lenet5_forward.1} parent=95 // pred_check_branch
          %574 = sbr.rel (%p572) target = $region104
        $region103: #{lenet5_forward.1} parent=95 // pred_region
          %575 = dma.done [#allocation6], 2560
        $region104: #{lenet5_forward.1} parent=95 // pred_fallthru
          _
        %p576 = scmp.lt.s32.totalorder %s35, 1
        %s577 = scalar_select %p576, %s35, 1
        %s578 = smul.addr %s577, 12
        %s579 = smul.addr %s578, 8
        %s580 = scalar_lea.vmem %s0, %s579
        %p581 = pneg %p56
        %p582 = pneg %p53
        %p583 = pneg %p77
        %p584 = pneg %p74
        %p585 = pneg %p98
        %p586 = pneg %p95
        %p587 = pneg %p119
        %p588 = pneg %p116
        %p589 = pneg %p140
        %p590 = pneg %p137
        %p591 = pneg %p161
        %p592 = pneg %p158
        %p593 = pneg %p182
        %p594 = pneg %p179
        %p595 = pneg %p203
        %p596 = pneg %p200
        %p597 = pneg %p224
        %p598 = pneg %p221
        %p599 = pneg %p245
        %p600 = pneg %p242
        %p601 = pneg %p266
        %p602 = pneg %p263
        %p603 = pneg %p287
        %p604 = pneg %p284
        %p605 = pneg %p308
        %p606 = pneg %p305
        %p607 = pneg %p329
        %p608 = pneg %p326
        %p609 = pneg %p350
        %p610 = pneg %p347
        %p611 = pneg %p371
        %p612 = pneg %p368
        %p613 = pneg %p392
        %p614 = pneg %p389
        %p615 = pneg %p413
        %p616 = pneg %p410
        %p617 = pneg %p434
        %p618 = pneg %p431
        %p619 = pneg %p460
        %p620 = pneg %p457
        %s621 = sand.u32 %s447, 1
        %s622 = scalar_lea.sflag [#allocation4], %s621
        %s623 = sand.u32 %s447, 1
        %s624 = scalar_lea.vmem [#allocation7], %s623
        %p625 = scmp.lt.s32.totalorder %s35, 1
        %s626 = scalar_select %p625, %s35, 1
        %s627 = smul.addr %s626, 12
        %s628 = smul.addr %s627, 8
        %s629 = scalar_lea.vmem %s0, %s628
        %v630 = vld [vmem:[%s629] sm:$0xff]
        %v631 = vld [vmem:[%s629 + $0x8] sm:$0xff]
        %v632 = vld [vmem:[%s629 + $0x10] sm:$0xff]
        %v633 = vld [vmem:[%s629 + $0x18] sm:$0xff]
        %v634 = vld [vmem:[%s1] sm:$0xff]
        %v635 = vld [vmem:[%s1 + $0x8] sm:$0xff]
        %v636 = vld [vmem:[%s1 + $0x10] sm:$0xff]
        %v637 = vld [vmem:[%s1 + $0x18] sm:$0xff]
        %v638 = vld [vmem:[%s1 + $0x20] sm:$0xff]
        %v639 = vld [vmem:[%s1 + $0x28] sm:$0xff]
        %v640 = vld [vmem:[%s1 + $0x30] sm:$0xff]
        %v641 = vld [vmem:[%s1 + $0x38] sm:$0xff]
        %s642 = scalar_lea.vmem %s1, 64
        %v643 = vld [vmem:[%s642] sm:$0xff]
        %v644 = vld [vmem:[%s642 + $0x8] sm:$0xff]
        %v645 = vld [vmem:[%s642 + $0x10] sm:$0xff]
        %v646 = vld [vmem:[%s642 + $0x18] sm:$0xff]
        %v647 = vld [vmem:[%s642 + $0x20] sm:$0xff]
        %v648 = vld [vmem:[%s642 + $0x28] sm:$0xff]
        %v649 = vld [vmem:[%s642 + $0x30] sm:$0xff]
        %v650 = vld [vmem:[%s642 + $0x38] sm:$0xff]
        %vm655 = vcmask 1046528
        %v656 = vrot.slane %v630, 1
        %v657 = vrot.slane %v631, 1
        %v658 = vsel %vm655, %v656, %v657
        %v659 = vrot.slane %v632, 1
        %v660 = vsel %vm655, %v657, %v659
        %v661 = vrot.slane %v633, 1
        %v662 = vsel %vm655, %v659, %v661
        %vm663 = vcmask 261120
        %v664 = vsel %vm663, %v658, 0
        %v666 = vsel %vm663, %v660, 0
        %v668 = vsel %vm663, %v662, 0
        %v670 = vsel %vm663, %v661, 0
        %672 = vmatprep.subr.mxu0 %v644
        %673 = vmatpush1.msra.mxu0 %v643
        %674 = vmatprep.subr.mxu0 %v646
        %675 = vmatpush1.msra.mxu0 %v645
        %676 = vmatprep.subr.mxu0 %v648
        %677 = vmatpush1.msra.mxu0 %v647
        %678 = vmatprep.subr.mxu0 %v650
        %679 = vmatpush1.msra.mxu0 %v649
        %680 = vmatprep.subr.mxu0 0.0
        %681 = vmatpush1.msra.mxu0 0.0
        %682 = vmatprep.subr.mxu0 0.0
        %683 = vmatpush1.msra.mxu0 0.0
        %684 = vmatprep.subr.mxu0 0.0
        %685 = vmatpush1.msra.mxu0 0.0
        %686 = vmatprep.subr.mxu0 0.0
        %687 = vmatpush1.msra.mxu0 0.0
        %688 = vmatprep.subr.mxu0 0.0
        %689 = vmatpush1.msra.mxu0 0.0
        %690 = vmatprep.subr.mxu0 0.0
        %691 = vmatpush1.msra.mxu0 0.0
        %692 = vmatprep.subr.mxu0 0.0
        %693 = vmatpush1.msra.mxu0 0.0
        %694 = vmatprep.subr.mxu0 0.0
        %695 = vmatpush1.msra.mxu0 0.0
        %696 = vmatprep.subr.mxu0 0.0
        %697 = vmatpush1.msra.mxu0 0.0
        %698 = vmatprep.subr.mxu0 0.0
        %699 = vmatpush1.msra.mxu0 0.0
        %700 = vmatprep.subr.mxu0 0.0
        %701 = vmatpush1.msra.mxu0 0.0
        %702 = vmatprep.subr.mxu0 0.0
        %703 = vmatpush1.msra.mxu0 0.0
        %704 = vmatprep.subr.mxu0 0.0
        %705 = vmatpush1.msra.mxu0 0.0
        %706 = vmatprep.subr.mxu0 0.0
        %707 = vmatpush1.msra.mxu0 0.0
        %708 = vmatprep.subr.mxu0 0.0
        %709 = vmatpush1.msra.mxu0 0.0
        %710 = vmatprep.subr.mxu0 0.0
        %711 = vmatpush1.msra.mxu0 0.0
        %712 = vmatprep.subr.mxu0 0.0
        %713 = vmatpush1.msra.mxu0 0.0
        %714 = vmatprep.subr.mxu0 0.0
        %715 = vmatpush1.msra.mxu0 0.0
        %716 = vmatprep.subr.mxu0 0.0
        %717 = vmatpush1.msra.mxu0 0.0
        %718 = vmatprep.subr.mxu0 0.0
        %719 = vmatpush1.msra.mxu0 0.0
        %720 = vmatprep.subr.mxu0 0.0
        %721 = vmatpush1.msra.mxu0 0.0
        %722 = vmatprep.subr.mxu0 0.0
        %723 = vmatpush1.msra.mxu0 0.0
        %724 = vmatprep.subr.mxu0 0.0
        %725 = vmatpush1.msra.mxu0 0.0
        %726 = vmatprep.subr.mxu0 0.0
        %727 = vmatpush1.msra.mxu0 0.0
        %728 = vmatprep.subr.mxu0 0.0
        %729 = vmatpush1.msra.mxu0 0.0
        %730 = vmatprep.subr.mxu0 0.0
        %731 = vmatpush1.msra.mxu0 0.0
        %732 = vmatprep.subr.mxu0 0.0
        %733 = vmatpush1.msra.mxu0 0.0
        %734 = vmatprep.subr.mxu0 0.0
        %735 = vmatpush1.msra.mxu0 0.0
        %736 = vmatprep.mubr.f32.mxu0 0.0
        %737 = vmatmul.mubr.f32.gmra.mrb[0].mxu0 %v664
        %v738 = vpop.f32.mrb[0].mxu0
        %v739 = vadd.f32 0.0, %v738
        %v740 = vpop.f32.mrb[0].mxu0
        %v741 = vadd.f32 0.0, %v740
        %742 = vmatprep.mubr.f32.mxu0 0.0
        %743 = vmatmul.mubr.f32.gmra.mrb[0].mxu0 %v666
        %v744 = vpop.f32.mrb[0].mxu0
        %v745 = vadd.f32 0.0, %v744
        %v746 = vpop.f32.mrb[0].mxu0
        %v747 = vadd.f32 0.0, %v746
        %748 = vmatprep.mubr.f32.mxu0 0.0
        %749 = vmatmul.mubr.f32.gmra.mrb[0].mxu0 %v668
        %v750 = vpop.f32.mrb[0].mxu0
        %v751 = vadd.f32 0.0, %v750
        %v752 = vpop.f32.mrb[0].mxu0
        %v753 = vadd.f32 0.0, %v752
        %754 = vmatprep.mubr.f32.mxu0 0.0
        %755 = vmatmul.mubr.f32.gmra.mrb[0].mxu0 %v670
        %v756 = vpop.f32.mrb[0].mxu0
        %v757 = vadd.f32 0.0, %v756
        %v758 = vpop.f32.mrb[0].mxu0
        %v759 = vadd.f32 0.0, %v758
        %760 = vdwg.mxu0
        %v761 = vsel %vm663, %v630, 0
        %v763 = vsel %vm663, %v631, 0
        %v765 = vsel %vm663, %v632, 0
        %v767 = vsel %vm663, %v633, 0
        %769 = vmatprep.subr.mxu0 %v635
        %770 = vmatpush1.msra.mxu0 %v634
        %771 = vmatprep.subr.mxu0 %v637
        %772 = vmatpush1.msra.mxu0 %v636
        %773 = vmatprep.subr.mxu0 %v639
        %774 = vmatpush1.msra.mxu0 %v638
        %775 = vmatprep.subr.mxu0 %v641
        %776 = vmatpush1.msra.mxu0 %v640
        %777 = vmatprep.subr.mxu0 0.0
        %778 = vmatpush1.msra.mxu0 0.0
        %779 = vmatprep.subr.mxu0 0.0
        %780 = vmatpush1.msra.mxu0 0.0
        %781 = vmatprep.subr.mxu0 0.0
        %782 = vmatpush1.msra.mxu0 0.0
        %783 = vmatprep.subr.mxu0 0.0
        %784 = vmatpush1.msra.mxu0 0.0
        %785 = vmatprep.subr.mxu0 0.0
        %786 = vmatpush1.msra.mxu0 0.0
        %787 = vmatprep.subr.mxu0 0.0
        %788 = vmatpush1.msra.mxu0 0.0
        %789 = vmatprep.subr.mxu0 0.0
        %790 = vmatpush1.msra.mxu0 0.0
        %791 = vmatprep.subr.mxu0 0.0
        %792 = vmatpush1.msra.mxu0 0.0
        %793 = vmatprep.subr.mxu0 0.0
        %794 = vmatpush1.msra.mxu0 0.0
        %795 = vmatprep.subr.mxu0 0.0
        %796 = vmatpush1.msra.mxu0 0.0
        %797 = vmatprep.subr.mxu0 0.0
        %798 = vmatpush1.msra.mxu0 0.0
        %799 = vmatprep.subr.mxu0 0.0
        %800 = vmatpush1.msra.mxu0 0.0
        %801 = vmatprep.subr.mxu0 0.0
        %802 = vmatpush1.msra.mxu0 0.0
        %803 = vmatprep.subr.mxu0 0.0
        %804 = vmatpush1.msra.mxu0 0.0
        %805 = vmatprep.subr.mxu0 0.0
        %806 = vmatpush1.msra.mxu0 0.0
        %807 = vmatprep.subr.mxu0 0.0
        %808 = vmatpush1.msra.mxu0 0.0
        %809 = vmatprep.subr.mxu0 0.0
        %810 = vmatpush1.msra.mxu0 0.0
        %811 = vmatprep.subr.mxu0 0.0
        %812 = vmatpush1.msra.mxu0 0.0
        %813 = vmatprep.subr.mxu0 0.0
        %814 = vmatpush1.msra.mxu0 0.0
        %815 = vmatprep.subr.mxu0 0.0
        %816 = vmatpush1.msra.mxu0 0.0
        %817 = vmatprep.subr.mxu0 0.0
        %818 = vmatpush1.msra.mxu0 0.0
        %819 = vmatprep.subr.mxu0 0.0
        %820 = vmatpush1.msra.mxu0 0.0
        %821 = vmatprep.subr.mxu0 0.0
        %822 = vmatpush1.msra.mxu0 0.0
        %823 = vmatprep.subr.mxu0 0.0
        %824 = vmatpush1.msra.mxu0 0.0
        %825 = vmatprep.subr.mxu0 0.0
        %826 = vmatpush1.msra.mxu0 0.0
        %827 = vmatprep.subr.mxu0 0.0
        %828 = vmatpush1.msra.mxu0 0.0
        %829 = vmatprep.subr.mxu0 0.0
        %830 = vmatpush1.msra.mxu0 0.0
        %831 = vmatprep.subr.mxu0 0.0
        %832 = vmatpush1.msra.mxu0 0.0
        %833 = vmatprep.mubr.f32.mxu0 0.0
        %834 = vmatmul.mubr.f32.gmra.mrb[0].mxu0 %v761
        %v835 = vpop.f32.mrb[0].mxu0
        %v836 = vadd.f32 %v739, %v835
        %v837 = vpop.f32.mrb[0].mxu0
        %v838 = vadd.f32 %v741, %v837
        %839 = vmatprep.mubr.f32.mxu0 0.0
        %840 = vmatmul.mubr.f32.gmra.mrb[0].mxu0 %v763
        %v841 = vpop.f32.mrb[0].mxu0
        %v842 = vadd.f32 %v745, %v841
        %v843 = vpop.f32.mrb[0].mxu0
        %v844 = vadd.f32 %v747, %v843
        %845 = vmatprep.mubr.f32.mxu0 0.0
        %846 = vmatmul.mubr.f32.gmra.mrb[0].mxu0 %v765
        %v847 = vpop.f32.mrb[0].mxu0
        %v848 = vadd.f32 %v751, %v847
        %v849 = vpop.f32.mrb[0].mxu0
        %v850 = vadd.f32 %v753, %v849
        %851 = vmatprep.mubr.f32.mxu0 0.0
        %852 = vmatmul.mubr.f32.gmra.mrb[0].mxu0 %v767
        %v853 = vpop.f32.mrb[0].mxu0
        %v854 = vadd.f32 %v757, %v853
        %v855 = vpop.f32.mrb[0].mxu0
        %v856 = vadd.f32 %v759, %v855
        %857 = vdwg.mxu0
        %s858 = scalar_lea.vmem %s1, 128
        %v859 = vld [vmem:[%s858] sm:$0xff]
        %v860 = vld [vmem:[%s858 + $0x8] sm:$0xff]
        %v861 = vld [vmem:[%s858 + $0x10] sm:$0xff]
        %v862 = vld [vmem:[%s858 + $0x18] sm:$0xff]
        %v863 = vld [vmem:[%s858 + $0x20] sm:$0xff]
        %v864 = vld [vmem:[%s858 + $0x28] sm:$0xff]
        %v865 = vld [vmem:[%s858 + $0x30] sm:$0xff]
        %v866 = vld [vmem:[%s858 + $0x38] sm:$0xff]
        %vm867 = vcmask 1045504
        %v868 = vrot.slane %v630, 2
        %v869 = vrot.slane %v631, 2
        %v870 = vsel %vm867, %v868, %v869
        %v871 = vrot.slane %v632, 2
        %v872 = vsel %vm867, %v869, %v871
        %v873 = vrot.slane %v633, 2
        %v874 = vsel %vm867, %v871, %v873
        %v875 = vsel %vm663, %v870, 0
        %v877 = vsel %vm663, %v872, 0
        %v879 = vsel %vm663, %v874, 0
        %v881 = vsel %vm663, %v873, 0
        %883 = vmatprep.subr.mxu0 %v860
        %884 = vmatpush1.msra.mxu0 %v859
        %885 = vmatprep.subr.mxu0 %v862
        %886 = vmatpush1.msra.mxu0 %v861
        %887 = vmatprep.subr.mxu0 %v864
        %888 = vmatpush1.msra.mxu0 %v863
        %889 = vmatprep.subr.mxu0 %v866
        %890 = vmatpush1.msra.mxu0 %v865
        %891 = vmatprep.subr.mxu0 0.0
        %892 = vmatpush1.msra.mxu0 0.0
        %893 = vmatprep.subr.mxu0 0.0
        %894 = vmatpush1.msra.mxu0 0.0
        %895 = vmatprep.subr.mxu0 0.0
        %896 = vmatpush1.msra.mxu0 0.0
        %897 = vmatprep.subr.mxu0 0.0
        %898 = vmatpush1.msra.mxu0 0.0
        %899 = vmatprep.subr.mxu0 0.0
        %900 = vmatpush1.msra.mxu0 0.0
        %901 = vmatprep.subr.mxu0 0.0
        %902 = vmatpush1.msra.mxu0 0.0
        %903 = vmatprep.subr.mxu0 0.0
        %904 = vmatpush1.msra.mxu0 0.0
        %905 = vmatprep.subr.mxu0 0.0
        %906 = vmatpush1.msra.mxu0 0.0
        %907 = vmatprep.subr.mxu0 0.0
        %908 = vmatpush1.msra.mxu0 0.0
        %909 = vmatprep.subr.mxu0 0.0
        %910 = vmatpush1.msra.mxu0 0.0
        %911 = vmatprep.subr.mxu0 0.0
        %912 = vmatpush1.msra.mxu0 0.0
        %913 = vmatprep.subr.mxu0 0.0
        %914 = vmatpush1.msra.mxu0 0.0
        %915 = vmatprep.subr.mxu0 0.0
        %916 = vmatpush1.msra.mxu0 0.0
        %917 = vmatprep.subr.mxu0 0.0
        %918 = vmatpush1.msra.mxu0 0.0
        %919 = vmatprep.subr.mxu0 0.0
        %920 = vmatpush1.msra.mxu0 0.0
        %921 = vmatprep.subr.mxu0 0.0
        %922 = vmatpush1.msra.mxu0 0.0
        %923 = vmatprep.subr.mxu0 0.0
        %924 = vmatpush1.msra.mxu0 0.0
        %925 = vmatprep.subr.mxu0 0.0
        %926 = vmatpush1.msra.mxu0 0.0
        %927 = vmatprep.subr.mxu0 0.0
        %928 = vmatpush1.msra.mxu0 0.0
        %929 = vmatprep.subr.mxu0 0.0
        %930 = vmatpush1.msra.mxu0 0.0
        %931 = vmatprep.subr.mxu0 0.0
        %932 = vmatpush1.msra.mxu0 0.0
        %933 = vmatprep.subr.mxu0 0.0
        %934 = vmatpush1.msra.mxu0 0.0
        %935 = vmatprep.subr.mxu0 0.0
        %936 = vmatpush1.msra.mxu0 0.0
        %937 = vmatprep.subr.mxu0 0.0
        %938 = vmatpush1.msra.mxu0 0.0
        %939 = vmatprep.subr.mxu0 0.0
        %940 = vmatpush1.msra.mxu0 0.0
        %941 = vmatprep.subr.mxu0 0.0
        %942 = vmatpush1.msra.mxu0 0.0
        %943 = vmatprep.subr.mxu0 0.0
        %944 = vmatpush1.msra.mxu0 0.0
        %945 = vmatprep.subr.mxu0 0.0
        %946 = vmatpush1.msra.mxu0 0.0
        %947 = vmatprep.mubr.f32.mxu0 0.0
        %948 = vmatmul.mubr.f32.gmra.mrb[0].mxu0 %v875
        %v949 = vpop.f32.mrb[0].mxu0
        %v950 = vadd.f32 0.0, %v949
        %v951 = vpop.f32.mrb[0].mxu0
        %v952 = vadd.f32 0.0, %v951
        %953 = vmatprep.mubr.f32.mxu0 0.0
        %954 = vmatmul.mubr.f32.gmra.mrb[0].mxu0 %v877
        %v955 = vpop.f32.mrb[0].mxu0
        %v956 = vadd.f32 0.0, %v955
        %v957 = vpop.f32.mrb[0].mxu0
        %v958 = vadd.f32 0.0, %v957
        %959 = vmatprep.mubr.f32.mxu0 0.0
        %960 = vmatmul.mubr.f32.gmra.mrb[0].mxu0 %v879
        %v961 = vpop.f32.mrb[0].mxu0
        %v962 = vadd.f32 0.0, %v961
        %v963 = vpop.f32.mrb[0].mxu0
        %v964 = vadd.f32 0.0, %v963
        %965 = vmatprep.mubr.f32.mxu0 0.0
        %966 = vmatmul.mubr.f32.gmra.mrb[0].mxu0 %v881
        %v967 = vpop.f32.mrb[0].mxu0
        %v968 = vadd.f32 0.0, %v967
        %v969 = vpop.f32.mrb[0].mxu0
        %v970 = vadd.f32 0.0, %v969
        %971 = vdwg.mxu0
        %v972 = vadd.f32 %v836, %v950
        %v973 = vadd.f32 %v838, %v952
        %v974 = vadd.f32 %v842, %v956
        %v975 = vadd.f32 %v844, %v958
        %v976 = vadd.f32 %v848, %v962
        %v977 = vadd.f32 %v850, %v964
        %v978 = vadd.f32 %v854, %v968
        %v979 = vadd.f32 %v856, %v970
        %s980 = scalar_lea.vmem %s1, 192
        %v981 = vld [vmem:[%s980] sm:$0xff]
        %v982 = vld [vmem:[%s980 + $0x8] sm:$0xff]
        %v983 = vld [vmem:[%s980 + $0x10] sm:$0xff]
        %v984 = vld [vmem:[%s980 + $0x18] sm:$0xff]
        %v985 = vld [vmem:[%s980 + $0x20] sm:$0xff]
        %v986 = vld [vmem:[%s980 + $0x28] sm:$0xff]
        %v987 = vld [vmem:[%s980 + $0x30] sm:$0xff]
        %v988 = vld [vmem:[%s980 + $0x38] sm:$0xff]
        %vm989 = vcmask 1044480
        %v990 = vrot.slane %v630, 3
        %v991 = vrot.slane %v631, 3
        %v992 = vsel %vm989, %v990, %v991
        %v993 = vrot.slane %v632, 3
        %v994 = vsel %vm989, %v991, %v993
        %v995 = vrot.slane %v633, 3
        %v996 = vsel %vm989, %v993, %v995
        %v997 = vsel %vm663, %v992, 0
        %v999 = vsel %vm663, %v994, 0
        %v1001 = vsel %vm663, %v996, 0
        %v1003 = vsel %vm663, %v995, 0
        %1005 = vmatprep.subr.mxu0 %v982
        %1006 = vmatpush1.msra.mxu0 %v981
        %1007 = vmatprep.subr.mxu0 %v984
        %1008 = vmatpush1.msra.mxu0 %v983
        %1009 = vmatprep.subr.mxu0 %v986
        %1010 = vmatpush1.msra.mxu0 %v985
        %1011 = vmatprep.subr.mxu0 %v988
        %1012 = vmatpush1.msra.mxu0 %v987
        %1013 = vmatprep.subr.mxu0 0.0
        %1014 = vmatpush1.msra.mxu0 0.0
        %1015 = vmatprep.subr.mxu0 0.0
        %1016 = vmatpush1.msra.mxu0 0.0
        %1017 = vmatprep.subr.mxu0 0.0
        %1018 = vmatpush1.msra.mxu0 0.0
        %1019 = vmatprep.subr.mxu0 0.0
        %1020 = vmatpush1.msra.mxu0 0.0
        %1021 = vmatprep.subr.mxu0 0.0
        %1022 = vmatpush1.msra.mxu0 0.0
        %1023 = vmatprep.subr.mxu0 0.0
        %1024 = vmatpush1.msra.mxu0 0.0
        %1025 = vmatprep.subr.mxu0 0.0
        %1026 = vmatpush1.msra.mxu0 0.0
        %1027 = vmatprep.subr.mxu0 0.0
        %1028 = vmatpush1.msra.mxu0 0.0
        %1029 = vmatprep.subr.mxu0 0.0
        %1030 = vmatpush1.msra.mxu0 0.0
        %1031 = vmatprep.subr.mxu0 0.0
        %1032 = vmatpush1.msra.mxu0 0.0
        %1033 = vmatprep.subr.mxu0 0.0
        %1034 = vmatpush1.msra.mxu0 0.0
        %1035 = vmatprep.subr.mxu0 0.0
        %1036 = vmatpush1.msra.mxu0 0.0
        %1037 = vmatprep.subr.mxu0 0.0
        %1038 = vmatpush1.msra.mxu0 0.0
        %1039 = vmatprep.subr.mxu0 0.0
        %1040 = vmatpush1.msra.mxu0 0.0
        %1041 = vmatprep.subr.mxu0 0.0
        %1042 = vmatpush1.msra.mxu0 0.0
        %1043 = vmatprep.subr.mxu0 0.0
        %1044 = vmatpush1.msra.mxu0 0.0
        %1045 = vmatprep.subr.mxu0 0.0
        %1046 = vmatpush1.msra.mxu0 0.0
        %1047 = vmatprep.subr.mxu0 0.0
        %1048 = vmatpush1.msra.mxu0 0.0
        %1049 = vmatprep.subr.mxu0 0.0
        %1050 = vmatpush1.msra.mxu0 0.0
        %1051 = vmatprep.subr.mxu0 0.0
        %1052 = vmatpush1.msra.mxu0 0.0
        %1053 = vmatprep.subr.mxu0 0.0
        %1054 = vmatpush1.msra.mxu0 0.0
        %1055 = vmatprep.subr.mxu0 0.0
        %1056 = vmatpush1.msra.mxu0 0.0
        %1057 = vmatprep.subr.mxu0 0.0
        %1058 = vmatpush1.msra.mxu0 0.0
        %1059 = vmatprep.subr.mxu0 0.0
        %1060 = vmatpush1.msra.mxu0 0.0
        %1061 = vmatprep.subr.mxu0 0.0
        %1062 = vmatpush1.msra.mxu0 0.0
        %1063 = vmatprep.subr.mxu0 0.0
        %1064 = vmatpush1.msra.mxu0 0.0
        %1065 = vmatprep.subr.mxu0 0.0
        %1066 = vmatpush1.msra.mxu0 0.0
        %1067 = vmatprep.subr.mxu0 0.0
        %1068 = vmatpush1.msra.mxu0 0.0
        %1069 = vmatprep.mubr.f32.mxu0 0.0
        %1070 = vmatmul.mubr.f32.gmra.mrb[0].mxu0 %v997
        %v1071 = vpop.f32.mrb[0].mxu0
        %v1072 = vadd.f32 0.0, %v1071
        %v1073 = vpop.f32.mrb[0].mxu0
        %v1074 = vadd.f32 0.0, %v1073
        %1075 = vmatprep.mubr.f32.mxu0 0.0
        %1076 = vmatmul.mubr.f32.gmra.mrb[0].mxu0 %v999
        %v1077 = vpop.f32.mrb[0].mxu0
        %v1078 = vadd.f32 0.0, %v1077
        %v1079 = vpop.f32.mrb[0].mxu0
        %v1080 = vadd.f32 0.0, %v1079
        %1081 = vmatprep.mubr.f32.mxu0 0.0
        %1082 = vmatmul.mubr.f32.gmra.mrb[0].mxu0 %v1001
        %v1083 = vpop.f32.mrb[0].mxu0
        %v1084 = vadd.f32 0.0, %v1083
        %v1085 = vpop.f32.mrb[0].mxu0
        %v1086 = vadd.f32 0.0, %v1085
        %1087 = vmatprep.mubr.f32.mxu0 0.0
        %1088 = vmatmul.mubr.f32.gmra.mrb[0].mxu0 %v1003
        %v1089 = vpop.f32.mrb[0].mxu0
        %v1090 = vadd.f32 0.0, %v1089
        %v1091 = vpop.f32.mrb[0].mxu0
        %v1092 = vadd.f32 0.0, %v1091
        %1093 = vdwg.mxu0
        %v1094 = vadd.f32 %v972, %v1072
        %v1095 = vadd.f32 %v973, %v1074
        %v1096 = vadd.f32 %v974, %v1078
        %v1097 = vadd.f32 %v975, %v1080
        %v1098 = vadd.f32 %v976, %v1084
        %v1099 = vadd.f32 %v977, %v1086
        %v1100 = vadd.f32 %v978, %v1090
        %v1101 = vadd.f32 %v979, %v1092
        %s1102 = scalar_lea.vmem %s1, 256
        %v1103 = vld [vmem:[%s1102] sm:$0xff]
        %v1104 = vld [vmem:[%s1102 + $0x8] sm:$0xff]
        %v1105 = vld [vmem:[%s1102 + $0x10] sm:$0xff]
        %v1106 = vld [vmem:[%s1102 + $0x18] sm:$0xff]
        %v1107 = vld [vmem:[%s1102 + $0x20] sm:$0xff]
        %v1108 = vld [vmem:[%s1102 + $0x28] sm:$0xff]
        %v1109 = vld [vmem:[%s1102 + $0x30] sm:$0xff]
        %v1110 = vld [vmem:[%s1102 + $0x38] sm:$0xff]
        %vm1111 = vcmask 1043456
        %v1112 = vrot.slane %v630, 4
        %v1113 = vrot.slane %v631, 4
        %v1114 = vsel %vm1111, %v1112, %v1113
        %v1115 = vrot.slane %v632, 4
        %v1116 = vsel %vm1111, %v1113, %v1115
        %v1117 = vrot.slane %v633, 4
        %v1118 = vsel %vm1111, %v1115, %v1117
        %v1119 = vsel %vm663, %v1114, 0
        %v1121 = vsel %vm663, %v1116, 0
        %v1123 = vsel %vm663, %v1118, 0
        %v1125 = vsel %vm663, %v1117, 0
        %1127 = vmatprep.subr.mxu0 %v1104
        %1128 = vmatpush1.msra.mxu0 %v1103
        %1129 = vmatprep.subr.mxu0 %v1106
        %1130 = vmatpush1.msra.mxu0 %v1105
        %1131 = vmatprep.subr.mxu0 %v1108
        %1132 = vmatpush1.msra.mxu0 %v1107
        %1133 = vmatprep.subr.mxu0 %v1110
        %1134 = vmatpush1.msra.mxu0 %v1109
        %1135 = vmatprep.subr.mxu0 0.0
        %1136 = vmatpush1.msra.mxu0 0.0
        %1137 = vmatprep.subr.mxu0 0.0
        %1138 = vmatpush1.msra.mxu0 0.0
        %1139 = vmatprep.subr.mxu0 0.0
        %1140 = vmatpush1.msra.mxu0 0.0
        %1141 = vmatprep.subr.mxu0 0.0
        %1142 = vmatpush1.msra.mxu0 0.0
        %1143 = vmatprep.subr.mxu0 0.0
        %1144 = vmatpush1.msra.mxu0 0.0
        %1145 = vmatprep.subr.mxu0 0.0
        %1146 = vmatpush1.msra.mxu0 0.0
        %1147 = vmatprep.subr.mxu0 0.0
        %1148 = vmatpush1.msra.mxu0 0.0
        %1149 = vmatprep.subr.mxu0 0.0
        %1150 = vmatpush1.msra.mxu0 0.0
        %1151 = vmatprep.subr.mxu0 0.0
        %1152 = vmatpush1.msra.mxu0 0.0
        %1153 = vmatprep.subr.mxu0 0.0
        %1154 = vmatpush1.msra.mxu0 0.0
        %1155 = vmatprep.subr.mxu0 0.0
        %1156 = vmatpush1.msra.mxu0 0.0
        %1157 = vmatprep.subr.mxu0 0.0
        %1158 = vmatpush1.msra.mxu0 0.0
        %1159 = vmatprep.subr.mxu0 0.0
        %1160 = vmatpush1.msra.mxu0 0.0
        %1161 = vmatprep.subr.mxu0 0.0
        %1162 = vmatpush1.msra.mxu0 0.0
        %1163 = vmatprep.subr.mxu0 0.0
        %1164 = vmatpush1.msra.mxu0 0.0
        %1165 = vmatprep.subr.mxu0 0.0
        %1166 = vmatpush1.msra.mxu0 0.0
        %1167 = vmatprep.subr.mxu0 0.0
        %1168 = vmatpush1.msra.mxu0 0.0
        %1169 = vmatprep.subr.mxu0 0.0
        %1170 = vmatpush1.msra.mxu0 0.0
        %1171 = vmatprep.subr.mxu0 0.0
        %1172 = vmatpush1.msra.mxu0 0.0
        %1173 = vmatprep.subr.mxu0 0.0
        %1174 = vmatpush1.msra.mxu0 0.0
        %1175 = vmatprep.subr.mxu0 0.0
        %1176 = vmatpush1.msra.mxu0 0.0
        %1177 = vmatprep.subr.mxu0 0.0
        %1178 = vmatpush1.msra.mxu0 0.0
        %1179 = vmatprep.subr.mxu0 0.0
        %1180 = vmatpush1.msra.mxu0 0.0
        %1181 = vmatprep.subr.mxu0 0.0
        %1182 = vmatpush1.msra.mxu0 0.0
        %1183 = vmatprep.subr.mxu0 0.0
        %1184 = vmatpush1.msra.mxu0 0.0
        %1185 = vmatprep.subr.mxu0 0.0
        %1186 = vmatpush1.msra.mxu0 0.0
        %1187 = vmatprep.subr.mxu0 0.0
        %1188 = vmatpush1.msra.mxu0 0.0
        %1189 = vmatprep.subr.mxu0 0.0
        %1190 = vmatpush1.msra.mxu0 0.0
        %1191 = vmatprep.mubr.f32.mxu0 0.0
        %1192 = vmatmul.mubr.f32.gmra.mrb[0].mxu0 %v1119
        %v1193 = vpop.f32.mrb[0].mxu0
        %v1194 = vadd.f32 0.0, %v1193
        %v1195 = vpop.f32.mrb[0].mxu0
        %v1196 = vadd.f32 0.0, %v1195
        %1197 = vmatprep.mubr.f32.mxu0 0.0
        %1198 = vmatmul.mubr.f32.gmra.mrb[0].mxu0 %v1121
        %v1199 = vpop.f32.mrb[0].mxu0
        %v1200 = vadd.f32 0.0, %v1199
        %v1201 = vpop.f32.mrb[0].mxu0
        %v1202 = vadd.f32 0.0, %v1201
        %1203 = vmatprep.mubr.f32.mxu0 0.0
        %1204 = vmatmul.mubr.f32.gmra.mrb[0].mxu0 %v1123
        %v1205 = vpop.f32.mrb[0].mxu0
        %v1206 = vadd.f32 0.0, %v1205
        %v1207 = vpop.f32.mrb[0].mxu0
        %v1208 = vadd.f32 0.0, %v1207
        %1209 = vmatprep.mubr.f32.mxu0 0.0
        %1210 = vmatmul.mubr.f32.gmra.mrb[0].mxu0 %v1125
        %v1211 = vpop.f32.mrb[0].mxu0
        %v1212 = vadd.f32 0.0, %v1211
        %v1213 = vpop.f32.mrb[0].mxu0
        %v1214 = vadd.f32 0.0, %v1213
        %1215 = vdwg.mxu0
        %v1216 = vadd.f32 %v1094, %v1194
        %v1217 = vadd.f32 %v1095, %v1196
        %v1218 = vadd.f32 %v1096, %v1200
        %v1219 = vadd.f32 %v1097, %v1202
        %v1220 = vadd.f32 %v1098, %v1206
        %v1221 = vadd.f32 %v1099, %v1208
        %v1222 = vadd.f32 %v1100, %v1212
        %v1223 = vadd.f32 %v1101, %v1214
        %s1224 = scalar_lea.vmem %s629, 32
        %v1225 = vld [vmem:[%s1224] sm:$0xff]
        %v1226 = vld [vmem:[%s1224 + $0x8] sm:$0xff]
        %v1227 = vld [vmem:[%s1224 + $0x10] sm:$0xff]
        %v1228 = vld [vmem:[%s1224 + $0x18] sm:$0xff]
        %s1229 = scalar_lea.vmem %s1, 320
        %v1230 = vld [vmem:[%s1229] sm:$0xff]
        %v1231 = vld [vmem:[%s1229 + $0x8] sm:$0xff]
        %v1232 = vld [vmem:[%s1229 + $0x10] sm:$0xff]
        %v1233 = vld [vmem:[%s1229 + $0x18] sm:$0xff]
        %v1234 = vld [vmem:[%s1229 + $0x20] sm:$0xff]
        %v1235 = vld [vmem:[%s1229 + $0x28] sm:$0xff]
        %v1236 = vld [vmem:[%s1229 + $0x30] sm:$0xff]
        %v1237 = vld [vmem:[%s1229 + $0x38] sm:$0xff]
        %v1239 = vsel %vm663, %v1225, 0
        %v1242 = vsel %vm663, %v1226, 0
        %v1245 = vsel %vm663, %v1227, 0
        %v1248 = vsel %vm663, %v1228, 0
        %1250 = vmatprep.subr.mxu0 %v1231
        %1251 = vmatpush1.msra.mxu0 %v1230
        %1252 = vmatprep.subr.mxu0 %v1233
        %1253 = vmatpush1.msra.mxu0 %v1232
        %1254 = vmatprep.subr.mxu0 %v1235
        %1255 = vmatpush1.msra.mxu0 %v1234
        %1256 = vmatprep.subr.mxu0 %v1237
        %1257 = vmatpush1.msra.mxu0 %v1236
        %1258 = vmatprep.subr.mxu0 0.0
        %1259 = vmatpush1.msra.mxu0 0.0
        %1260 = vmatprep.subr.mxu0 0.0
        %1261 = vmatpush1.msra.mxu0 0.0
        %1262 = vmatprep.subr.mxu0 0.0
        %1263 = vmatpush1.msra.mxu0 0.0
        %1264 = vmatprep.subr.mxu0 0.0
        %1265 = vmatpush1.msra.mxu0 0.0
        %1266 = vmatprep.subr.mxu0 0.0
        %1267 = vmatpush1.msra.mxu0 0.0
        %1268 = vmatprep.subr.mxu0 0.0
        %1269 = vmatpush1.msra.mxu0 0.0
        %1270 = vmatprep.subr.mxu0 0.0
        %1271 = vmatpush1.msra.mxu0 0.0
        %1272 = vmatprep.subr.mxu0 0.0
        %1273 = vmatpush1.msra.mxu0 0.0
        %1274 = vmatprep.subr.mxu0 0.0
        %1275 = vmatpush1.msra.mxu0 0.0
        %1276 = vmatprep.subr.mxu0 0.0
        %1277 = vmatpush1.msra.mxu0 0.0
        %1278 = vmatprep.subr.mxu0 0.0
        %1279 = vmatpush1.msra.mxu0 0.0
        %1280 = vmatprep.subr.mxu0 0.0
        %1281 = vmatpush1.msra.mxu0 0.0
        %1282 = vmatprep.subr.mxu0 0.0
        %1283 = vmatpush1.msra.mxu0 0.0
        %1284 = vmatprep.subr.mxu0 0.0
        %1285 = vmatpush1.msra.mxu0 0.0
        %1286 = vmatprep.subr.mxu0 0.0
        %1287 = vmatpush1.msra.mxu0 0.0
        %1288 = vmatprep.subr.mxu0 0.0
        %1289 = vmatpush1.msra.mxu0 0.0
        %1290 = vmatprep.subr.mxu0 0.0
        %1291 = vmatpush1.msra.mxu0 0.0
        %1292 = vmatprep.subr.mxu0 0.0
        %1293 = vmatpush1.msra.mxu0 0.0
        %1294 = vmatprep.subr.mxu0 0.0
        %1295 = vmatpush1.msra.mxu0 0.0
        %1296 = vmatprep.subr.mxu0 0.0
        %1297 = vmatpush1.msra.mxu0 0.0
        %1298 = vmatprep.subr.mxu0 0.0
        %1299 = vmatpush1.msra.mxu0 0.0
        %1300 = vmatprep.subr.mxu0 0.0
        %1301 = vmatpush1.msra.mxu0 0.0
        %1302 = vmatprep.subr.mxu0 0.0
        %1303 = vmatpush1.msra.mxu0 0.0
        %1304 = vmatprep.subr.mxu0 0.0
        %1305 = vmatpush1.msra.mxu0 0.0
        %1306 = vmatprep.subr.mxu0 0.0
        %1307 = vmatpush1.msra.mxu0 0.0
        %1308 = vmatprep.subr.mxu0 0.0
        %1309 = vmatpush1.msra.mxu0 0.0
        %1310 = vmatprep.subr.mxu0 0.0
        %1311 = vmatpush1.msra.mxu0 0.0
        %1312 = vmatprep.subr.mxu0 0.0
        %1313 = vmatpush1.msra.mxu0 0.0
        %1314 = vmatprep.mubr.f32.mxu0 0.0
        %1315 = vmatmul.mubr.f32.gmra.mrb[0].mxu0 %v1239
        %v1316 = vpop.f32.mrb[0].mxu0
        %v1317 = vadd.f32 0.0, %v1316
        %v1318 = vpop.f32.mrb[0].mxu0
        %v1319 = vadd.f32 0.0, %v1318
        %1320 = vmatprep.mubr.f32.mxu0 0.0
        %1321 = vmatmul.mubr.f32.gmra.mrb[0].mxu0 %v1242
        %v1322 = vpop.f32.mrb[0].mxu0
        %v1323 = vadd.f32 0.0, %v1322
        %v1324 = vpop.f32.mrb[0].mxu0
        %v1325 = vadd.f32 0.0, %v1324
        %1326 = vmatprep.mubr.f32.mxu0 0.0
        %1327 = vmatmul.mubr.f32.gmra.mrb[0].mxu0 %v1245
        %v1328 = vpop.f32.mrb[0].mxu0
        %v1329 = vadd.f32 0.0, %v1328
        %v1330 = vpop.f32.mrb[0].mxu0
        %v1331 = vadd.f32 0.0, %v1330
        %1332 = vmatprep.mubr.f32.mxu0 0.0
        %1333 = vmatmul.mubr.f32.gmra.mrb[0].mxu0 %v1248
        %v1334 = vpop.f32.mrb[0].mxu0
        %v1335 = vadd.f32 0.0, %v1334
        %v1336 = vpop.f32.mrb[0].mxu0
        %v1337 = vadd.f32 0.0, %v1336
        %1338 = vdwg.mxu0
        %v1339 = vadd.f32 %v1216, %v1317
        %v1340 = vadd.f32 %v1217, %v1319
        %v1341 = vadd.f32 %v1218, %v1323
        %v1342 = vadd.f32 %v1219, %v1325
        %v1343 = vadd.f32 %v1220, %v1329
        %v1344 = vadd.f32 %v1221, %v1331
        %v1345 = vadd.f32 %v1222, %v1335
        %v1346 = vadd.f32 %v1223, %v1337
        %s1347 = scalar_lea.vmem %s1, 384
        %v1348 = vld [vmem:[%s1347] sm:$0xff]
        %v1349 = vld [vmem:[%s1347 + $0x8] sm:$0xff]
        %v1350 = vld [vmem:[%s1347 + $0x10] sm:$0xff]
        %v1351 = vld [vmem:[%s1347 + $0x18] sm:$0xff]
        %v1352 = vld [vmem:[%s1347 + $0x20] sm:$0xff]
        %v1353 = vld [vmem:[%s1347 + $0x28] sm:$0xff]
        %v1354 = vld [vmem:[%s1347 + $0x30] sm:$0xff]
        %v1355 = vld [vmem:[%s1347 + $0x38] sm:$0xff]
        %v1356 = vrot.slane %v1225, 1
        %v1357 = vrot.slane %v1226, 1
        %v1358 = vsel %vm655, %v1356, %v1357
        %v1359 = vrot.slane %v1227, 1
        %v1360 = vsel %vm655, %v1357, %v1359
        %v1361 = vrot.slane %v1228, 1
        %v1362 = vsel %vm655, %v1359, %v1361
        %v1363 = vsel %vm663, %v1358, 0
        %v1365 = vsel %vm663, %v1360, 0
        %v1367 = vsel %vm663, %v1362, 0
        %v1369 = vsel %vm663, %v1361, 0
        %1371 = vmatprep.subr.mxu0 %v1349
        %1372 = vmatpush1.msra.mxu0 %v1348
        %1373 = vmatprep.subr.mxu0 %v1351
        %1374 = vmatpush1.msra.mxu0 %v1350
        %1375 = vmatprep.subr.mxu0 %v1353
        %1376 = vmatpush1.msra.mxu0 %v1352
        %1377 = vmatprep.subr.mxu0 %v1355
        %1378 = vmatpush1.msra.mxu0 %v1354
        %1379 = vmatprep.subr.mxu0 0.0
        %1380 = vmatpush1.msra.mxu0 0.0
        %1381 = vmatprep.subr.mxu0 0.0
        %1382 = vmatpush1.msra.mxu0 0.0
        %1383 = vmatprep.subr.mxu0 0.0
        %1384 = vmatpush1.msra.mxu0 0.0
        %1385 = vmatprep.subr.mxu0 0.0
        %1386 = vmatpush1.msra.mxu0 0.0
        %1387 = vmatprep.subr.mxu0 0.0
        %1388 = vmatpush1.msra.mxu0 0.0
        %1389 = vmatprep.subr.mxu0 0.0
        %1390 = vmatpush1.msra.mxu0 0.0
        %1391 = vmatprep.subr.mxu0 0.0
        %1392 = vmatpush1.msra.mxu0 0.0
        %1393 = vmatprep.subr.mxu0 0.0
        %1394 = vmatpush1.msra.mxu0 0.0
        %1395 = vmatprep.subr.mxu0 0.0
        %1396 = vmatpush1.msra.mxu0 0.0
        %1397 = vmatprep.subr.mxu0 0.0
        %1398 = vmatpush1.msra.mxu0 0.0
        %1399 = vmatprep.subr.mxu0 0.0
        %1400 = vmatpush1.msra.mxu0 0.0
        %1401 = vmatprep.subr.mxu0 0.0
        %1402 = vmatpush1.msra.mxu0 0.0
        %1403 = vmatprep.subr.mxu0 0.0
        %1404 = vmatpush1.msra.mxu0 0.0
        %1405 = vmatprep.subr.mxu0 0.0
        %1406 = vmatpush1.msra.mxu0 0.0
        %1407 = vmatprep.subr.mxu0 0.0
        %1408 = vmatpush1.msra.mxu0 0.0
        %1409 = vmatprep.subr.mxu0 0.0
        %1410 = vmatpush1.msra.mxu0 0.0
        %1411 = vmatprep.subr.mxu0 0.0
        %1412 = vmatpush1.msra.mxu0 0.0
        %1413 = vmatprep.subr.mxu0 0.0
        %1414 = vmatpush1.msra.mxu0 0.0
        %1415 = vmatprep.subr.mxu0 0.0
        %1416 = vmatpush1.msra.mxu0 0.0
        %1417 = vmatprep.subr.mxu0 0.0
        %1418 = vmatpush1.msra.mxu0 0.0
        %1419 = vmatprep.subr.mxu0 0.0
        %1420 = vmatpush1.msra.mxu0 0.0
        %1421 = vmatprep.subr.mxu0 0.0
        %1422 = vmatpush1.msra.mxu0 0.0
        %1423 = vmatprep.subr.mxu0 0.0
        %1424 = vmatpush1.msra.mxu0 0.0
        %1425 = vmatprep.subr.mxu0 0.0
        %1426 = vmatpush1.msra.mxu0 0.0
        %1427 = vmatprep.subr.mxu0 0.0
        %1428 = vmatpush1.msra.mxu0 0.0
        %1429 = vmatprep.subr.mxu0 0.0
        %1430 = vmatpush1.msra.mxu0 0.0
        %1431 = vmatprep.subr.mxu0 0.0
        %1432 = vmatpush1.msra.mxu0 0.0
        %1433 = vmatprep.subr.mxu0 0.0
        %1434 = vmatpush1.msra.mxu0 0.0
        %1435 = vmatprep.mubr.f32.mxu0 0.0
        %1436 = vmatmul.mubr.f32.gmra.mrb[0].mxu0 %v1363
        %v1437 = vpop.f32.mrb[0].mxu0
        %v1438 = vadd.f32 0.0, %v1437
        %v1439 = vpop.f32.mrb[0].mxu0
        %v1440 = vadd.f32 0.0, %v1439
        %1441 = vmatprep.mubr.f32.mxu0 0.0
        %1442 = vmatmul.mubr.f32.gmra.mrb[0].mxu0 %v1365
        %v1443 = vpop.f32.mrb[0].mxu0
        %v1444 = vadd.f32 0.0, %v1443
        %v1445 = vpop.f32.mrb[0].mxu0
        %v1446 = vadd.f32 0.0, %v1445
        %1447 = vmatprep.mubr.f32.mxu0 0.0
        %1448 = vmatmul.mubr.f32.gmra.mrb[0].mxu0 %v1367
        %v1449 = vpop.f32.mrb[0].mxu0
        %v1450 = vadd.f32 0.0, %v1449
        %v1451 = vpop.f32.mrb[0].mxu0
        %v1452 = vadd.f32 0.0, %v1451
        %1453 = vmatprep.mubr.f32.mxu0 0.0
        %1454 = vmatmul.mubr.f32.gmra.mrb[0].mxu0 %v1369
        %v1455 = vpop.f32.mrb[0].mxu0
        %v1456 = vadd.f32 0.0, %v1455
        %v1457 = vpop.f32.mrb[0].mxu0
        %v1458 = vadd.f32 0.0, %v1457
        %1459 = vdwg.mxu0
        %v1460 = vadd.f32 %v1339, %v1438
        %v1461 = vadd.f32 %v1340, %v1440
        %v1462 = vadd.f32 %v1341, %v1444
        %v1463 = vadd.f32 %v1342, %v1446
        %v1464 = vadd.f32 %v1343, %v1450
        %v1465 = vadd.f32 %v1344, %v1452
        %v1466 = vadd.f32 %v1345, %v1456
        %v1467 = vadd.f32 %v1346, %v1458
        %s1468 = scalar_lea.vmem %s1, 448
        %v1469 = vld [vmem:[%s1468] sm:$0xff]
        %v1470 = vld [vmem:[%s1468 + $0x8] sm:$0xff]
        %v1471 = vld [vmem:[%s1468 + $0x10] sm:$0xff]
        %v1472 = vld [vmem:[%s1468 + $0x18] sm:$0xff]
        %v1473 = vld [vmem:[%s1468 + $0x20] sm:$0xff]
        %v1474 = vld [vmem:[%s1468 + $0x28] sm:$0xff]
        %v1475 = vld [vmem:[%s1468 + $0x30] sm:$0xff]
        %v1476 = vld [vmem:[%s1468 + $0x38] sm:$0xff]
        %v1477 = vrot.slane %v1225, 2
        %v1478 = vrot.slane %v1226, 2
        %v1479 = vsel %vm867, %v1477, %v1478
        %v1480 = vrot.slane %v1227, 2
        %v1481 = vsel %vm867, %v1478, %v1480
        %v1482 = vrot.slane %v1228, 2
        %v1483 = vsel %vm867, %v1480, %v1482
        %v1484 = vsel %vm663, %v1479, 0
        %v1486 = vsel %vm663, %v1481, 0
        %v1488 = vsel %vm663, %v1483, 0
        %v1490 = vsel %vm663, %v1482, 0
        %1492 = vmatprep.subr.mxu0 %v1470
        %1493 = vmatpush1.msra.mxu0 %v1469
        %1494 = vmatprep.subr.mxu0 %v1472
        %1495 = vmatpush1.msra.mxu0 %v1471
        %1496 = vmatprep.subr.mxu0 %v1474
        %1497 = vmatpush1.msra.mxu0 %v1473
        %1498 = vmatprep.subr.mxu0 %v1476
        %1499 = vmatpush1.msra.mxu0 %v1475
        %1500 = vmatprep.subr.mxu0 0.0
        %1501 = vmatpush1.msra.mxu0 0.0
        %1502 = vmatprep.subr.mxu0 0.0
        %1503 = vmatpush1.msra.mxu0 0.0
        %1504 = vmatprep.subr.mxu0 0.0
        %1505 = vmatpush1.msra.mxu0 0.0
        %1506 = vmatprep.subr.mxu0 0.0
        %1507 = vmatpush1.msra.mxu0 0.0
        %1508 = vmatprep.subr.mxu0 0.0
        %1509 = vmatpush1.msra.mxu0 0.0
        %1510 = vmatprep.subr.mxu0 0.0
        %1511 = vmatpush1.msra.mxu0 0.0
        %1512 = vmatprep.subr.mxu0 0.0
        %1513 = vmatpush1.msra.mxu0 0.0
        %1514 = vmatprep.subr.mxu0 0.0
        %1515 = vmatpush1.msra.mxu0 0.0
        %1516 = vmatprep.subr.mxu0 0.0
        %1517 = vmatpush1.msra.mxu0 0.0
        %1518 = vmatprep.subr.mxu0 0.0
        %1519 = vmatpush1.msra.mxu0 0.0
        %1520 = vmatprep.subr.mxu0 0.0
        %1521 = vmatpush1.msra.mxu0 0.0
        %1522 = vmatprep.subr.mxu0 0.0
        %1523 = vmatpush1.msra.mxu0 0.0
        %1524 = vmatprep.subr.mxu0 0.0
        %1525 = vmatpush1.msra.mxu0 0.0
        %1526 = vmatprep.subr.mxu0 0.0
        %1527 = vmatpush1.msra.mxu0 0.0
        %1528 = vmatprep.subr.mxu0 0.0
        %1529 = vmatpush1.msra.mxu0 0.0
        %1530 = vmatprep.subr.mxu0 0.0
        %1531 = vmatpush1.msra.mxu0 0.0
        %1532 = vmatprep.subr.mxu0 0.0
        %1533 = vmatpush1.msra.mxu0 0.0
        %1534 = vmatprep.subr.mxu0 0.0
        %1535 = vmatpush1.msra.mxu0 0.0
        %1536 = vmatprep.subr.mxu0 0.0
        %1537 = vmatpush1.msra.mxu0 0.0
        %1538 = vmatprep.subr.mxu0 0.0
        %1539 = vmatpush1.msra.mxu0 0.0
        %1540 = vmatprep.subr.mxu0 0.0
        %1541 = vmatpush1.msra.mxu0 0.0
        %1542 = vmatprep.subr.mxu0 0.0
        %1543 = vmatpush1.msra.mxu0 0.0
        %1544 = vmatprep.subr.mxu0 0.0
        %1545 = vmatpush1.msra.mxu0 0.0
        %1546 = vmatprep.subr.mxu0 0.0
        %1547 = vmatpush1.msra.mxu0 0.0
        %1548 = vmatprep.subr.mxu0 0.0
        %1549 = vmatpush1.msra.mxu0 0.0
        %1550 = vmatprep.subr.mxu0 0.0
        %1551 = vmatpush1.msra.mxu0 0.0
        %1552 = vmatprep.subr.mxu0 0.0
        %1553 = vmatpush1.msra.mxu0 0.0
        %1554 = vmatprep.subr.mxu0 0.0
        %1555 = vmatpush1.msra.mxu0 0.0
        %1556 = vmatprep.mubr.f32.mxu0 0.0
        %1557 = vmatmul.mubr.f32.gmra.mrb[0].mxu0 %v1484
        %v1558 = vpop.f32.mrb[0].mxu0
        %v1559 = vadd.f32 0.0, %v1558
        %v1560 = vpop.f32.mrb[0].mxu0
        %v1561 = vadd.f32 0.0, %v1560
        %1562 = vmatprep.mubr.f32.mxu0 0.0
        %1563 = vmatmul.mubr.f32.gmra.mrb[0].mxu0 %v1486
        %v1564 = vpop.f32.mrb[0].mxu0
        %v1565 = vadd.f32 0.0, %v1564
        %v1566 = vpop.f32.mrb[0].mxu0
        %v1567 = vadd.f32 0.0, %v1566
        %1568 = vmatprep.mubr.f32.mxu0 0.0
        %1569 = vmatmul.mubr.f32.gmra.mrb[0].mxu0 %v1488
        %v1570 = vpop.f32.mrb[0].mxu0
        %v1571 = vadd.f32 0.0, %v1570
        %v1572 = vpop.f32.mrb[0].mxu0
        %v1573 = vadd.f32 0.0, %v1572
        %1574 = vmatprep.mubr.f32.mxu0 0.0
        %1575 = vmatmul.mubr.f32.gmra.mrb[0].mxu0 %v1490
        %v1576 = vpop.f32.mrb[0].mxu0
        %v1577 = vadd.f32 0.0, %v1576
        %v1578 = vpop.f32.mrb[0].mxu0
        %v1579 = vadd.f32 0.0, %v1578
        %1580 = vdwg.mxu0
        %v1581 = vadd.f32 %v1460, %v1559
        %v1582 = vadd.f32 %v1461, %v1561
        %v1583 = vadd.f32 %v1462, %v1565
        %v1584 = vadd.f32 %v1463, %v1567
        %v1585 = vadd.f32 %v1464, %v1571
        %v1586 = vadd.f32 %v1465, %v1573
        %v1587 = vadd.f32 %v1466, %v1577
        %v1588 = vadd.f32 %v1467, %v1579
        %s1589 = scalar_lea.vmem %s1, 512
        %v1590 = vld [vmem:[%s1589] sm:$0xff]
        %v1591 = vld [vmem:[%s1589 + $0x8] sm:$0xff]
        %v1592 = vld [vmem:[%s1589 + $0x10] sm:$0xff]
        %v1593 = vld [vmem:[%s1589 + $0x18] sm:$0xff]
        %v1594 = vld [vmem:[%s1589 + $0x20] sm:$0xff]
        %v1595 = vld [vmem:[%s1589 + $0x28] sm:$0xff]
        %v1596 = vld [vmem:[%s1589 + $0x30] sm:$0xff]
        %v1597 = vld [vmem:[%s1589 + $0x38] sm:$0xff]
        %v1598 = vrot.slane %v1225, 3
        %v1599 = vrot.slane %v1226, 3
        %v1600 = vsel %vm989, %v1598, %v1599
        %v1601 = vrot.slane %v1227, 3
        %v1602 = vsel %vm989, %v1599, %v1601
        %v1603 = vrot.slane %v1228, 3
        %v1604 = vsel %vm989, %v1601, %v1603
        %v1605 = vsel %vm663, %v1600, 0
        %v1607 = vsel %vm663, %v1602, 0
        %v1609 = vsel %vm663, %v1604, 0
        %v1611 = vsel %vm663, %v1603, 0
        %1613 = vmatprep.subr.mxu0 %v1591
        %1614 = vmatpush1.msra.mxu0 %v1590
        %1615 = vmatprep.subr.mxu0 %v1593
        %1616 = vmatpush1.msra.mxu0 %v1592
        %1617 = vmatprep.subr.mxu0 %v1595
        %1618 = vmatpush1.msra.mxu0 %v1594
        %1619 = vmatprep.subr.mxu0 %v1597
        %1620 = vmatpush1.msra.mxu0 %v1596
        %1621 = vmatprep.subr.mxu0 0.0
        %1622 = vmatpush1.msra.mxu0 0.0
        %1623 = vmatprep.subr.mxu0 0.0
        %1624 = vmatpush1.msra.mxu0 0.0
        %1625 = vmatprep.subr.mxu0 0.0
        %1626 = vmatpush1.msra.mxu0 0.0
        %1627 = vmatprep.subr.mxu0 0.0
        %1628 = vmatpush1.msra.mxu0 0.0
        %1629 = vmatprep.subr.mxu0 0.0
        %1630 = vmatpush1.msra.mxu0 0.0
        %1631 = vmatprep.subr.mxu0 0.0
        %1632 = vmatpush1.msra.mxu0 0.0
        %1633 = vmatprep.subr.mxu0 0.0
        %1634 = vmatpush1.msra.mxu0 0.0
        %1635 = vmatprep.subr.mxu0 0.0
        %1636 = vmatpush1.msra.mxu0 0.0
        %1637 = vmatprep.subr.mxu0 0.0
        %1638 = vmatpush1.msra.mxu0 0.0
        %1639 = vmatprep.subr.mxu0 0.0
        %1640 = vmatpush1.msra.mxu0 0.0
        %1641 = vmatprep.subr.mxu0 0.0
        %1642 = vmatpush1.msra.mxu0 0.0
        %1643 = vmatprep.subr.mxu0 0.0
        %1644 = vmatpush1.msra.mxu0 0.0
        %1645 = vmatprep.subr.mxu0 0.0
        %1646 = vmatpush1.msra.mxu0 0.0
        %1647 = vmatprep.subr.mxu0 0.0
        %1648 = vmatpush1.msra.mxu0 0.0
        %1649 = vmatprep.subr.mxu0 0.0
        %1650 = vmatpush1.msra.mxu0 0.0
        %1651 = vmatprep.subr.mxu0 0.0
        %1652 = vmatpush1.msra.mxu0 0.0
        %1653 = vmatprep.subr.mxu0 0.0
        %1654 = vmatpush1.msra.mxu0 0.0
        %1655 = vmatprep.subr.mxu0 0.0
        %1656 = vmatpush1.msra.mxu0 0.0
        %1657 = vmatprep.subr.mxu0 0.0
        %1658 = vmatpush1.msra.mxu0 0.0
        %1659 = vmatprep.subr.mxu0 0.0
        %1660 = vmatpush1.msra.mxu0 0.0
        %1661 = vmatprep.subr.mxu0 0.0
        %1662 = vmatpush1.msra.mxu0 0.0
        %1663 = vmatprep.subr.mxu0 0.0
        %1664 = vmatpush1.msra.mxu0 0.0
        %1665 = vmatprep.subr.mxu0 0.0
        %1666 = vmatpush1.msra.mxu0 0.0
        %1667 = vmatprep.subr.mxu0 0.0
        %1668 = vmatpush1.msra.mxu0 0.0
        %1669 = vmatprep.subr.mxu0 0.0
        %1670 = vmatpush1.msra.mxu0 0.0
        %1671 = vmatprep.subr.mxu0 0.0
        %1672 = vmatpush1.msra.mxu0 0.0
        %1673 = vmatprep.subr.mxu0 0.0
        %1674 = vmatpush1.msra.mxu0 0.0
        %1675 = vmatprep.subr.mxu0 0.0
        %1676 = vmatpush1.msra.mxu0 0.0
        %1677 = vmatprep.mubr.f32.mxu0 0.0
        %1678 = vmatmul.mubr.f32.gmra.mrb[0].mxu0 %v1605
        %v1679 = vpop.f32.mrb[0].mxu0
        %v1680 = vadd.f32 0.0, %v1679
        %v1681 = vpop.f32.mrb[0].mxu0
        %v1682 = vadd.f32 0.0, %v1681
        %1683 = vmatprep.mubr.f32.mxu0 0.0
        %1684 = vmatmul.mubr.f32.gmra.mrb[0].mxu0 %v1607
        %v1685 = vpop.f32.mrb[0].mxu0
        %v1686 = vadd.f32 0.0, %v1685
        %v1687 = vpop.f32.mrb[0].mxu0
        %v1688 = vadd.f32 0.0, %v1687
        %1689 = vmatprep.mubr.f32.mxu0 0.0
        %1690 = vmatmul.mubr.f32.gmra.mrb[0].mxu0 %v1609
        %v1691 = vpop.f32.mrb[0].mxu0
        %v1692 = vadd.f32 0.0, %v1691
        %v1693 = vpop.f32.mrb[0].mxu0
        %v1694 = vadd.f32 0.0, %v1693
        %1695 = vmatprep.mubr.f32.mxu0 0.0
        %1696 = vmatmul.mubr.f32.gmra.mrb[0].mxu0 %v1611
        %v1697 = vpop.f32.mrb[0].mxu0
        %v1698 = vadd.f32 0.0, %v1697
        %v1699 = vpop.f32.mrb[0].mxu0
        %v1700 = vadd.f32 0.0, %v1699
        %1701 = vdwg.mxu0
        %v1702 = vadd.f32 %v1581, %v1680
        %v1703 = vadd.f32 %v1582, %v1682
        %v1704 = vadd.f32 %v1583, %v1686
        %v1705 = vadd.f32 %v1584, %v1688
        %v1706 = vadd.f32 %v1585, %v1692
        %v1707 = vadd.f32 %v1586, %v1694
        %v1708 = vadd.f32 %v1587, %v1698
        %v1709 = vadd.f32 %v1588, %v1700
        %s1710 = scalar_lea.vmem %s1, 576
        %v1711 = vld [vmem:[%s1710] sm:$0xff]
        %v1712 = vld [vmem:[%s1710 + $0x8] sm:$0xff]
        %v1713 = vld [vmem:[%s1710 + $0x10] sm:$0xff]
        %v1714 = vld [vmem:[%s1710 + $0x18] sm:$0xff]
        %v1715 = vld [vmem:[%s1710 + $0x20] sm:$0xff]
        %v1716 = vld [vmem:[%s1710 + $0x28] sm:$0xff]
        %v1717 = vld [vmem:[%s1710 + $0x30] sm:$0xff]
        %v1718 = vld [vmem:[%s1710 + $0x38] sm:$0xff]
        %v1719 = vrot.slane %v1225, 4
        %v1720 = vrot.slane %v1226, 4
        %v1721 = vsel %vm1111, %v1719, %v1720
        %v1722 = vrot.slane %v1227, 4
        %v1723 = vsel %vm1111, %v1720, %v1722
        %v1724 = vrot.slane %v1228, 4
        %v1725 = vsel %vm1111, %v1722, %v1724
        %v1726 = vsel %vm663, %v1721, 0
        %v1728 = vsel %vm663, %v1723, 0
        %v1730 = vsel %vm663, %v1725, 0
        %v1732 = vsel %vm663, %v1724, 0
        %1734 = vmatprep.subr.mxu0 %v1712
        %1735 = vmatpush1.msra.mxu0 %v1711
        %1736 = vmatprep.subr.mxu0 %v1714
        %1737 = vmatpush1.msra.mxu0 %v1713
        %1738 = vmatprep.subr.mxu0 %v1716
        %1739 = vmatpush1.msra.mxu0 %v1715
        %1740 = vmatprep.subr.mxu0 %v1718
        %1741 = vmatpush1.msra.mxu0 %v1717
        %1742 = vmatprep.subr.mxu0 0.0
        %1743 = vmatpush1.msra.mxu0 0.0
        %1744 = vmatprep.subr.mxu0 0.0
        %1745 = vmatpush1.msra.mxu0 0.0
        %1746 = vmatprep.subr.mxu0 0.0
        %1747 = vmatpush1.msra.mxu0 0.0
        %1748 = vmatprep.subr.mxu0 0.0
        %1749 = vmatpush1.msra.mxu0 0.0
        %1750 = vmatprep.subr.mxu0 0.0
        %1751 = vmatpush1.msra.mxu0 0.0
        %1752 = vmatprep.subr.mxu0 0.0
        %1753 = vmatpush1.msra.mxu0 0.0
        %1754 = vmatprep.subr.mxu0 0.0
        %1755 = vmatpush1.msra.mxu0 0.0
        %1756 = vmatprep.subr.mxu0 0.0
        %1757 = vmatpush1.msra.mxu0 0.0
        %1758 = vmatprep.subr.mxu0 0.0
        %1759 = vmatpush1.msra.mxu0 0.0
        %1760 = vmatprep.subr.mxu0 0.0
        %1761 = vmatpush1.msra.mxu0 0.0
        %1762 = vmatprep.subr.mxu0 0.0
        %1763 = vmatpush1.msra.mxu0 0.0
        %1764 = vmatprep.subr.mxu0 0.0
        %1765 = vmatpush1.msra.mxu0 0.0
        %1766 = vmatprep.subr.mxu0 0.0
        %1767 = vmatpush1.msra.mxu0 0.0
        %1768 = vmatprep.subr.mxu0 0.0
        %1769 = vmatpush1.msra.mxu0 0.0
        %1770 = vmatprep.subr.mxu0 0.0
        %1771 = vmatpush1.msra.mxu0 0.0
        %1772 = vmatprep.subr.mxu0 0.0
        %1773 = vmatpush1.msra.mxu0 0.0
        %1774 = vmatprep.subr.mxu0 0.0
        %1775 = vmatpush1.msra.mxu0 0.0
        %1776 = vmatprep.subr.mxu0 0.0
        %1777 = vmatpush1.msra.mxu0 0.0
        %1778 = vmatprep.subr.mxu0 0.0
        %1779 = vmatpush1.msra.mxu0 0.0
        %1780 = vmatprep.subr.mxu0 0.0
        %1781 = vmatpush1.msra.mxu0 0.0
        %1782 = vmatprep.subr.mxu0 0.0
        %1783 = vmatpush1.msra.mxu0 0.0
        %1784 = vmatprep.subr.mxu0 0.0
        %1785 = vmatpush1.msra.mxu0 0.0
        %1786 = vmatprep.subr.mxu0 0.0
        %1787 = vmatpush1.msra.mxu0 0.0
        %1788 = vmatprep.subr.mxu0 0.0
        %1789 = vmatpush1.msra.mxu0 0.0
        %1790 = vmatprep.subr.mxu0 0.0
        %1791 = vmatpush1.msra.mxu0 0.0
        %1792 = vmatprep.subr.mxu0 0.0
        %1793 = vmatpush1.msra.mxu0 0.0
        %1794 = vmatprep.subr.mxu0 0.0
        %1795 = vmatpush1.msra.mxu0 0.0
        %1796 = vmatprep.subr.mxu0 0.0
        %1797 = vmatpush1.msra.mxu0 0.0
        %1798 = vmatprep.mubr.f32.mxu0 0.0
        %1799 = vmatmul.mubr.f32.gmra.mrb[0].mxu0 %v1726
        %v1800 = vpop.f32.mrb[0].mxu0
        %v1801 = vadd.f32 0.0, %v1800
        %v1802 = vpop.f32.mrb[0].mxu0
        %v1803 = vadd.f32 0.0, %v1802
        %1804 = vmatprep.mubr.f32.mxu0 0.0
        %1805 = vmatmul.mubr.f32.gmra.mrb[0].mxu0 %v1728
        %v1806 = vpop.f32.mrb[0].mxu0
        %v1807 = vadd.f32 0.0, %v1806
        %v1808 = vpop.f32.mrb[0].mxu0
        %v1809 = vadd.f32 0.0, %v1808
        %1810 = vmatprep.mubr.f32.mxu0 0.0
        %1811 = vmatmul.mubr.f32.gmra.mrb[0].mxu0 %v1730
        %v1812 = vpop.f32.mrb[0].mxu0
        %v1813 = vadd.f32 0.0, %v1812
        %v1814 = vpop.f32.mrb[0].mxu0
        %v1815 = vadd.f32 0.0, %v1814
        %1816 = vmatprep.mubr.f32.mxu0 0.0
        %1817 = vmatmul.mubr.f32.gmra.mrb[0].mxu0 %v1732
        %v1818 = vpop.f32.mrb[0].mxu0
        %v1819 = vadd.f32 0.0, %v1818
        %v1820 = vpop.f32.mrb[0].mxu0
        %v1821 = vadd.f32 0.0, %v1820
        %1822 = vdwg.mxu0
        %v1823 = vadd.f32 %v1702, %v1801
        %v1824 = vadd.f32 %v1703, %v1803
        %v1825 = vadd.f32 %v1704, %v1807
        %v1826 = vadd.f32 %v1705, %v1809
        %v1827 = vadd.f32 %v1706, %v1813
        %v1828 = vadd.f32 %v1707, %v1815
        %v1829 = vadd.f32 %v1708, %v1819
        %v1830 = vadd.f32 %v1709, %v1821
        %s1831 = scalar_lea.vmem %s629, 64
        %v1832 = vld [vmem:[%s1831] sm:$0xff]
        %v1833 = vld [vmem:[%s1831 + $0x8] sm:$0xff]
        %v1834 = vld [vmem:[%s1831 + $0x10] sm:$0xff]
        %v1835 = vld [vmem:[%s1831 + $0x18] sm:$0xff]
        %s1836 = scalar_lea.vmem %s1, 640
        %v1837 = vld [vmem:[%s1836] sm:$0xff]
        %v1838 = vld [vmem:[%s1836 + $0x8] sm:$0xff]
        %v1839 = vld [vmem:[%s1836 + $0x10] sm:$0xff]
        %v1840 = vld [vmem:[%s1836 + $0x18] sm:$0xff]
        %v1841 = vld [vmem:[%s1836 + $0x20] sm:$0xff]
        %v1842 = vld [vmem:[%s1836 + $0x28] sm:$0xff]
        %v1843 = vld [vmem:[%s1836 + $0x30] sm:$0xff]
        %v1844 = vld [vmem:[%s1836 + $0x38] sm:$0xff]
        %v1846 = vsel %vm663, %v1832, 0
        %v1849 = vsel %vm663, %v1833, 0
        %v1852 = vsel %vm663, %v1834, 0
        %v1855 = vsel %vm663, %v1835, 0
        %1857 = vmatprep.subr.mxu0 %v1838
        %1858 = vmatpush1.msra.mxu0 %v1837
        %1859 = vmatprep.subr.mxu0 %v1840
        %1860 = vmatpush1.msra.mxu0 %v1839
        %1861 = vmatprep.subr.mxu0 %v1842
        %1862 = vmatpush1.msra.mxu0 %v1841
        %1863 = vmatprep.subr.mxu0 %v1844
        %1864 = vmatpush1.msra.mxu0 %v1843
        %1865 = vmatprep.subr.mxu0 0.0
        %1866 = vmatpush1.msra.mxu0 0.0
        %1867 = vmatprep.subr.mxu0 0.0
        %1868 = vmatpush1.msra.mxu0 0.0
        %1869 = vmatprep.subr.mxu0 0.0
        %1870 = vmatpush1.msra.mxu0 0.0
        %1871 = vmatprep.subr.mxu0 0.0
        %1872 = vmatpush1.msra.mxu0 0.0
        %1873 = vmatprep.subr.mxu0 0.0
        %1874 = vmatpush1.msra.mxu0 0.0
        %1875 = vmatprep.subr.mxu0 0.0
        %1876 = vmatpush1.msra.mxu0 0.0
        %1877 = vmatprep.subr.mxu0 0.0
        %1878 = vmatpush1.msra.mxu0 0.0
        %1879 = vmatprep.subr.mxu0 0.0
        %1880 = vmatpush1.msra.mxu0 0.0
        %1881 = vmatprep.subr.mxu0 0.0
        %1882 = vmatpush1.msra.mxu0 0.0
        %1883 = vmatprep.subr.mxu0 0.0
        %1884 = vmatpush1.msra.mxu0 0.0
        %1885 = vmatprep.subr.mxu0 0.0
        %1886 = vmatpush1.msra.mxu0 0.0
        %1887 = vmatprep.subr.mxu0 0.0
        %1888 = vmatpush1.msra.mxu0 0.0
        %1889 = vmatprep.subr.mxu0 0.0
        %1890 = vmatpush1.msra.mxu0 0.0
        %1891 = vmatprep.subr.mxu0 0.0
        %1892 = vmatpush1.msra.mxu0 0.0
        %1893 = vmatprep.subr.mxu0 0.0
        %1894 = vmatpush1.msra.mxu0 0.0
        %1895 = vmatprep.subr.mxu0 0.0
        %1896 = vmatpush1.msra.mxu0 0.0
        %1897 = vmatprep.subr.mxu0 0.0
        %1898 = vmatpush1.msra.mxu0 0.0
        %1899 = vmatprep.subr.mxu0 0.0
        %1900 = vmatpush1.msra.mxu0 0.0
        %1901 = vmatprep.subr.mxu0 0.0
        %1902 = vmatpush1.msra.mxu0 0.0
        %1903 = vmatprep.subr.mxu0 0.0
        %1904 = vmatpush1.msra.mxu0 0.0
        %1905 = vmatprep.subr.mxu0 0.0
        %1906 = vmatpush1.msra.mxu0 0.0
        %1907 = vmatprep.subr.mxu0 0.0
        %1908 = vmatpush1.msra.mxu0 0.0
        %1909 = vmatprep.subr.mxu0 0.0
        %1910 = vmatpush1.msra.mxu0 0.0
        %1911 = vmatprep.subr.mxu0 0.0
        %1912 = vmatpush1.msra.mxu0 0.0
        %1913 = vmatprep.subr.mxu0 0.0
        %1914 = vmatpush1.msra.mxu0 0.0
        %1915 = vmatprep.subr.mxu0 0.0
        %1916 = vmatpush1.msra.mxu0 0.0
        %1917 = vmatprep.subr.mxu0 0.0
        %1918 = vmatpush1.msra.mxu0 0.0
        %1919 = vmatprep.subr.mxu0 0.0
        %1920 = vmatpush1.msra.mxu0 0.0
        %1921 = vmatprep.mubr.f32.mxu0 0.0
        %1922 = vmatmul.mubr.f32.gmra.mrb[0].mxu0 %v1846
        %v1923 = vpop.f32.mrb[0].mxu0
        %v1924 = vadd.f32 0.0, %v1923
        %v1925 = vpop.f32.mrb[0].mxu0
        %v1926 = vadd.f32 0.0, %v1925
        %1927 = vmatprep.mubr.f32.mxu0 0.0
        %1928 = vmatmul.mubr.f32.gmra.mrb[0].mxu0 %v1849
        %v1929 = vpop.f32.mrb[0].mxu0
        %v1930 = vadd.f32 0.0, %v1929
        %v1931 = vpop.f32.mrb[0].mxu0
        %v1932 = vadd.f32 0.0, %v1931
        %1933 = vmatprep.mubr.f32.mxu0 0.0
        %1934 = vmatmul.mubr.f32.gmra.mrb[0].mxu0 %v1852
        %v1935 = vpop.f32.mrb[0].mxu0
        %v1936 = vadd.f32 0.0, %v1935
        %v1937 = vpop.f32.mrb[0].mxu0
        %v1938 = vadd.f32 0.0, %v1937
        %1939 = vmatprep.mubr.f32.mxu0 0.0
        %1940 = vmatmul.mubr.f32.gmra.mrb[0].mxu0 %v1855
        %v1941 = vpop.f32.mrb[0].mxu0
        %v1942 = vadd.f32 0.0, %v1941
        %v1943 = vpop.f32.mrb[0].mxu0
        %v1944 = vadd.f32 0.0, %v1943
        %1945 = vdwg.mxu0
        %v1946 = vadd.f32 %v1823, %v1924
        %v1947 = vadd.f32 %v1824, %v1926
        %v1948 = vadd.f32 %v1825, %v1930
        %v1949 = vadd.f32 %v1826, %v1932
        %v1950 = vadd.f32 %v1827, %v1936
        %v1951 = vadd.f32 %v1828, %v1938
        %v1952 = vadd.f32 %v1829, %v1942
        %v1953 = vadd.f32 %v1830, %v1944
        %s1954 = scalar_lea.vmem %s1, 704
        %v1955 = vld [vmem:[%s1954] sm:$0xff]
        %v1956 = vld [vmem:[%s1954 + $0x8] sm:$0xff]
        %v1957 = vld [vmem:[%s1954 + $0x10] sm:$0xff]
        %v1958 = vld [vmem:[%s1954 + $0x18] sm:$0xff]
        %v1959 = vld [vmem:[%s1954 + $0x20] sm:$0xff]
        %v1960 = vld [vmem:[%s1954 + $0x28] sm:$0xff]
        %v1961 = vld [vmem:[%s1954 + $0x30] sm:$0xff]
        %v1962 = vld [vmem:[%s1954 + $0x38] sm:$0xff]
        %v1963 = vrot.slane %v1832, 1
        %v1964 = vrot.slane %v1833, 1
        %v1965 = vsel %vm655, %v1963, %v1964
        %v1966 = vrot.slane %v1834, 1
        %v1967 = vsel %vm655, %v1964, %v1966
        %v1968 = vrot.slane %v1835, 1
        %v1969 = vsel %vm655, %v1966, %v1968
        %v1970 = vsel %vm663, %v1965, 0
        %v1972 = vsel %vm663, %v1967, 0
        %v1974 = vsel %vm663, %v1969, 0
        %v1976 = vsel %vm663, %v1968, 0
        %1978 = vmatprep.subr.mxu0 %v1956
        %1979 = vmatpush1.msra.mxu0 %v1955
        %1980 = vmatprep.subr.mxu0 %v1958
        %1981 = vmatpush1.msra.mxu0 %v1957
        %1982 = vmatprep.subr.mxu0 %v1960
        %1983 = vmatpush1.msra.mxu0 %v1959
        %1984 = vmatprep.subr.mxu0 %v1962
        %1985 = vmatpush1.msra.mxu0 %v1961
        %1986 = vmatprep.subr.mxu0 0.0
        %1987 = vmatpush1.msra.mxu0 0.0
        %1988 = vmatprep.subr.mxu0 0.0
        %1989 = vmatpush1.msra.mxu0 0.0
        %1990 = vmatprep.subr.mxu0 0.0
        %1991 = vmatpush1.msra.mxu0 0.0
        %1992 = vmatprep.subr.mxu0 0.0
        %1993 = vmatpush1.msra.mxu0 0.0
        %1994 = vmatprep.subr.mxu0 0.0
        %1995 = vmatpush1.msra.mxu0 0.0
        %1996 = vmatprep.subr.mxu0 0.0
        %1997 = vmatpush1.msra.mxu0 0.0
        %1998 = vmatprep.subr.mxu0 0.0
        %1999 = vmatpush1.msra.mxu0 0.0
        %2000 = vmatprep.subr.mxu0 0.0
        %2001 = vmatpush1.msra.mxu0 0.0
        %2002 = vmatprep.subr.mxu0 0.0
        %2003 = vmatpush1.msra.mxu0 0.0
        %2004 = vmatprep.subr.mxu0 0.0
        %2005 = vmatpush1.msra.mxu0 0.0
        %2006 = vmatprep.subr.mxu0 0.0
        %2007 = vmatpush1.msra.mxu0 0.0
        %2008 = vmatprep.subr.mxu0 0.0
        %2009 = vmatpush1.msra.mxu0 0.0
        %2010 = vmatprep.subr.mxu0 0.0
        %2011 = vmatpush1.msra.mxu0 0.0
        %2012 = vmatprep.subr.mxu0 0.0
        %2013 = vmatpush1.msra.mxu0 0.0
        %2014 = vmatprep.subr.mxu0 0.0
        %2015 = vmatpush1.msra.mxu0 0.0
        %2016 = vmatprep.subr.mxu0 0.0
        %2017 = vmatpush1.msra.mxu0 0.0
        %2018 = vmatprep.subr.mxu0 0.0
        %2019 = vmatpush1.msra.mxu0 0.0
        %2020 = vmatprep.subr.mxu0 0.0
        %2021 = vmatpush1.msra.mxu0 0.0
        %2022 = vmatprep.subr.mxu0 0.0
        %2023 = vmatpush1.msra.mxu0 0.0
        %2024 = vmatprep.subr.mxu0 0.0
        %2025 = vmatpush1.msra.mxu0 0.0
        %2026 = vmatprep.subr.mxu0 0.0
        %2027 = vmatpush1.msra.mxu0 0.0
        %2028 = vmatprep.subr.mxu0 0.0
        %2029 = vmatpush1.msra.mxu0 0.0
        %2030 = vmatprep.subr.mxu0 0.0
        %2031 = vmatpush1.msra.mxu0 0.0
        %2032 = vmatprep.subr.mxu0 0.0
        %2033 = vmatpush1.msra.mxu0 0.0
        %2034 = vmatprep.subr.mxu0 0.0
        %2035 = vmatpush1.msra.mxu0 0.0
        %2036 = vmatprep.subr.mxu0 0.0
        %2037 = vmatpush1.msra.mxu0 0.0
        %2038 = vmatprep.subr.mxu0 0.0
        %2039 = vmatpush1.msra.mxu0 0.0
        %2040 = vmatprep.subr.mxu0 0.0
        %2041 = vmatpush1.msra.mxu0 0.0
        %2042 = vmatprep.mubr.f32.mxu0 0.0
        %2043 = vmatmul.mubr.f32.gmra.mrb[0].mxu0 %v1970
        %v2044 = vpop.f32.mrb[0].mxu0
        %v2045 = vadd.f32 0.0, %v2044
        %v2046 = vpop.f32.mrb[0].mxu0
        %v2047 = vadd.f32 0.0, %v2046
        %2048 = vmatprep.mubr.f32.mxu0 0.0
        %2049 = vmatmul.mubr.f32.gmra.mrb[0].mxu0 %v1972
        %v2050 = vpop.f32.mrb[0].mxu0
        %v2051 = vadd.f32 0.0, %v2050
        %v2052 = vpop.f32.mrb[0].mxu0
        %v2053 = vadd.f32 0.0, %v2052
        %2054 = vmatprep.mubr.f32.mxu0 0.0
        %2055 = vmatmul.mubr.f32.gmra.mrb[0].mxu0 %v1974
        %v2056 = vpop.f32.mrb[0].mxu0
        %v2057 = vadd.f32 0.0, %v2056
        %v2058 = vpop.f32.mrb[0].mxu0
        %v2059 = vadd.f32 0.0, %v2058
        %2060 = vmatprep.mubr.f32.mxu0 0.0
        %2061 = vmatmul.mubr.f32.gmra.mrb[0].mxu0 %v1976
        %v2062 = vpop.f32.mrb[0].mxu0
        %v2063 = vadd.f32 0.0, %v2062
        %v2064 = vpop.f32.mrb[0].mxu0
        %v2065 = vadd.f32 0.0, %v2064
        %2066 = vdwg.mxu0
        %v2067 = vadd.f32 %v1946, %v2045
        %v2068 = vadd.f32 %v1947, %v2047
        %v2069 = vadd.f32 %v1948, %v2051
        %v2070 = vadd.f32 %v1949, %v2053
        %v2071 = vadd.f32 %v1950, %v2057
        %v2072 = vadd.f32 %v1951, %v2059
        %v2073 = vadd.f32 %v1952, %v2063
        %v2074 = vadd.f32 %v1953, %v2065
        %s2075 = scalar_lea.vmem %s1, 768
        %v2076 = vld [vmem:[%s2075] sm:$0xff]
        %v2077 = vld [vmem:[%s2075 + $0x8] sm:$0xff]
        %v2078 = vld [vmem:[%s2075 + $0x10] sm:$0xff]
        %v2079 = vld [vmem:[%s2075 + $0x18] sm:$0xff]
        %v2080 = vld [vmem:[%s2075 + $0x20] sm:$0xff]
        %v2081 = vld [vmem:[%s2075 + $0x28] sm:$0xff]
        %v2082 = vld [vmem:[%s2075 + $0x30] sm:$0xff]
        %v2083 = vld [vmem:[%s2075 + $0x38] sm:$0xff]
        %v2084 = vrot.slane %v1832, 2
        %v2085 = vrot.slane %v1833, 2
        %v2086 = vsel %vm867, %v2084, %v2085
        %v2087 = vrot.slane %v1834, 2
        %v2088 = vsel %vm867, %v2085, %v2087
        %v2089 = vrot.slane %v1835, 2
        %v2090 = vsel %vm867, %v2087, %v2089
        %v2091 = vsel %vm663, %v2086, 0
        %v2093 = vsel %vm663, %v2088, 0
        %v2095 = vsel %vm663, %v2090, 0
        %v2097 = vsel %vm663, %v2089, 0
        %2099 = vmatprep.subr.mxu0 %v2077
        %2100 = vmatpush1.msra.mxu0 %v2076
        %2101 = vmatprep.subr.mxu0 %v2079
        %2102 = vmatpush1.msra.mxu0 %v2078
        %2103 = vmatprep.subr.mxu0 %v2081
        %2104 = vmatpush1.msra.mxu0 %v2080
        %2105 = vmatprep.subr.mxu0 %v2083
        %2106 = vmatpush1.msra.mxu0 %v2082
        %2107 = vmatprep.subr.mxu0 0.0
        %2108 = vmatpush1.msra.mxu0 0.0
        %2109 = vmatprep.subr.mxu0 0.0
        %2110 = vmatpush1.msra.mxu0 0.0
        %2111 = vmatprep.subr.mxu0 0.0
        %2112 = vmatpush1.msra.mxu0 0.0
        %2113 = vmatprep.subr.mxu0 0.0
        %2114 = vmatpush1.msra.mxu0 0.0
        %2115 = vmatprep.subr.mxu0 0.0
        %2116 = vmatpush1.msra.mxu0 0.0
        %2117 = vmatprep.subr.mxu0 0.0
        %2118 = vmatpush1.msra.mxu0 0.0
        %2119 = vmatprep.subr.mxu0 0.0
        %2120 = vmatpush1.msra.mxu0 0.0
        %2121 = vmatprep.subr.mxu0 0.0
        %2122 = vmatpush1.msra.mxu0 0.0
        %2123 = vmatprep.subr.mxu0 0.0
        %2124 = vmatpush1.msra.mxu0 0.0
        %2125 = vmatprep.subr.mxu0 0.0
        %2126 = vmatpush1.msra.mxu0 0.0
        %2127 = vmatprep.subr.mxu0 0.0
        %2128 = vmatpush1.msra.mxu0 0.0
        %2129 = vmatprep.subr.mxu0 0.0
        %2130 = vmatpush1.msra.mxu0 0.0
        %2131 = vmatprep.subr.mxu0 0.0
        %2132 = vmatpush1.msra.mxu0 0.0
        %2133 = vmatprep.subr.mxu0 0.0
        %2134 = vmatpush1.msra.mxu0 0.0
        %2135 = vmatprep.subr.mxu0 0.0
        %2136 = vmatpush1.msra.mxu0 0.0
        %2137 = vmatprep.subr.mxu0 0.0
        %2138 = vmatpush1.msra.mxu0 0.0
        %2139 = vmatprep.subr.mxu0 0.0
        %2140 = vmatpush1.msra.mxu0 0.0
        %2141 = vmatprep.subr.mxu0 0.0
        %2142 = vmatpush1.msra.mxu0 0.0
        %2143 = vmatprep.subr.mxu0 0.0
        %2144 = vmatpush1.msra.mxu0 0.0
        %2145 = vmatprep.subr.mxu0 0.0
        %2146 = vmatpush1.msra.mxu0 0.0
        %2147 = vmatprep.subr.mxu0 0.0
        %2148 = vmatpush1.msra.mxu0 0.0
        %2149 = vmatprep.subr.mxu0 0.0
        %2150 = vmatpush1.msra.mxu0 0.0
        %2151 = vmatprep.subr.mxu0 0.0
        %2152 = vmatpush1.msra.mxu0 0.0
        %2153 = vmatprep.subr.mxu0 0.0
        %2154 = vmatpush1.msra.mxu0 0.0
        %2155 = vmatprep.subr.mxu0 0.0
        %2156 = vmatpush1.msra.mxu0 0.0
        %2157 = vmatprep.subr.mxu0 0.0
        %2158 = vmatpush1.msra.mxu0 0.0
        %2159 = vmatprep.subr.mxu0 0.0
        %2160 = vmatpush1.msra.mxu0 0.0
        %2161 = vmatprep.subr.mxu0 0.0
        %2162 = vmatpush1.msra.mxu0 0.0
        %2163 = vmatprep.mubr.f32.mxu0 0.0
        %2164 = vmatmul.mubr.f32.gmra.mrb[0].mxu0 %v2091
        %v2165 = vpop.f32.mrb[0].mxu0
        %v2166 = vadd.f32 0.0, %v2165
        %v2167 = vpop.f32.mrb[0].mxu0
        %v2168 = vadd.f32 0.0, %v2167
        %2169 = vmatprep.mubr.f32.mxu0 0.0
        %2170 = vmatmul.mubr.f32.gmra.mrb[0].mxu0 %v2093
        %v2171 = vpop.f32.mrb[0].mxu0
        %v2172 = vadd.f32 0.0, %v2171
        %v2173 = vpop.f32.mrb[0].mxu0
        %v2174 = vadd.f32 0.0, %v2173
        %2175 = vmatprep.mubr.f32.mxu0 0.0
        %2176 = vmatmul.mubr.f32.gmra.mrb[0].mxu0 %v2095
        %v2177 = vpop.f32.mrb[0].mxu0
        %v2178 = vadd.f32 0.0, %v2177
        %v2179 = vpop.f32.mrb[0].mxu0
        %v2180 = vadd.f32 0.0, %v2179
        %2181 = vmatprep.mubr.f32.mxu0 0.0
        %2182 = vmatmul.mubr.f32.gmra.mrb[0].mxu0 %v2097
        %v2183 = vpop.f32.mrb[0].mxu0
        %v2184 = vadd.f32 0.0, %v2183
        %v2185 = vpop.f32.mrb[0].mxu0
        %v2186 = vadd.f32 0.0, %v2185
        %2187 = vdwg.mxu0
        %v2188 = vadd.f32 %v2067, %v2166
        %v2189 = vadd.f32 %v2068, %v2168
        %v2190 = vadd.f32 %v2069, %v2172
        %v2191 = vadd.f32 %v2070, %v2174
        %v2192 = vadd.f32 %v2071, %v2178
        %v2193 = vadd.f32 %v2072, %v2180
        %v2194 = vadd.f32 %v2073, %v2184
        %v2195 = vadd.f32 %v2074, %v2186
        %s2196 = scalar_lea.vmem %s1, 832
        %v2197 = vld [vmem:[%s2196] sm:$0xff]
        %v2198 = vld [vmem:[%s2196 + $0x8] sm:$0xff]
        %v2199 = vld [vmem:[%s2196 + $0x10] sm:$0xff]
        %v2200 = vld [vmem:[%s2196 + $0x18] sm:$0xff]
        %v2201 = vld [vmem:[%s2196 + $0x20] sm:$0xff]
        %v2202 = vld [vmem:[%s2196 + $0x28] sm:$0xff]
        %v2203 = vld [vmem:[%s2196 + $0x30] sm:$0xff]
        %v2204 = vld [vmem:[%s2196 + $0x38] sm:$0xff]
        %v2205 = vrot.slane %v1832, 3
        %v2206 = vrot.slane %v1833, 3
        %v2207 = vsel %vm989, %v2205, %v2206
        %v2208 = vrot.slane %v1834, 3
        %v2209 = vsel %vm989, %v2206, %v2208
        %v2210 = vrot.slane %v1835, 3
        %v2211 = vsel %vm989, %v2208, %v2210
        %v2212 = vsel %vm663, %v2207, 0
        %v2214 = vsel %vm663, %v2209, 0
        %v2216 = vsel %vm663, %v2211, 0
        %v2218 = vsel %vm663, %v2210, 0
        %2220 = vmatprep.subr.mxu0 %v2198
        %2221 = vmatpush1.msra.mxu0 %v2197
        %2222 = vmatprep.subr.mxu0 %v2200
        %2223 = vmatpush1.msra.mxu0 %v2199
        %2224 = vmatprep.subr.mxu0 %v2202
        %2225 = vmatpush1.msra.mxu0 %v2201
        %2226 = vmatprep.subr.mxu0 %v2204
        %2227 = vmatpush1.msra.mxu0 %v2203
        %2228 = vmatprep.subr.mxu0 0.0
        %2229 = vmatpush1.msra.mxu0 0.0
        %2230 = vmatprep.subr.mxu0 0.0
        %2231 = vmatpush1.msra.mxu0 0.0
        %2232 = vmatprep.subr.mxu0 0.0
        %2233 = vmatpush1.msra.mxu0 0.0
        %2234 = vmatprep.subr.mxu0 0.0
        %2235 = vmatpush1.msra.mxu0 0.0
        %2236 = vmatprep.subr.mxu0 0.0
        %2237 = vmatpush1.msra.mxu0 0.0
        %2238 = vmatprep.subr.mxu0 0.0
        %2239 = vmatpush1.msra.mxu0 0.0
        %2240 = vmatprep.subr.mxu0 0.0
        %2241 = vmatpush1.msra.mxu0 0.0
        %2242 = vmatprep.subr.mxu0 0.0
        %2243 = vmatpush1.msra.mxu0 0.0
        %2244 = vmatprep.subr.mxu0 0.0
        %2245 = vmatpush1.msra.mxu0 0.0
        %2246 = vmatprep.subr.mxu0 0.0
        %2247 = vmatpush1.msra.mxu0 0.0
        %2248 = vmatprep.subr.mxu0 0.0
        %2249 = vmatpush1.msra.mxu0 0.0
        %2250 = vmatprep.subr.mxu0 0.0
        %2251 = vmatpush1.msra.mxu0 0.0
        %2252 = vmatprep.subr.mxu0 0.0
        %2253 = vmatpush1.msra.mxu0 0.0
        %2254 = vmatprep.subr.mxu0 0.0
        %2255 = vmatpush1.msra.mxu0 0.0
        %2256 = vmatprep.subr.mxu0 0.0
        %2257 = vmatpush1.msra.mxu0 0.0
        %2258 = vmatprep.subr.mxu0 0.0
        %2259 = vmatpush1.msra.mxu0 0.0
        %2260 = vmatprep.subr.mxu0 0.0
        %2261 = vmatpush1.msra.mxu0 0.0
        %2262 = vmatprep.subr.mxu0 0.0
        %2263 = vmatpush1.msra.mxu0 0.0
        %2264 = vmatprep.subr.mxu0 0.0
        %2265 = vmatpush1.msra.mxu0 0.0
        %2266 = vmatprep.subr.mxu0 0.0
        %2267 = vmatpush1.msra.mxu0 0.0
        %2268 = vmatprep.subr.mxu0 0.0
        %2269 = vmatpush1.msra.mxu0 0.0
        %2270 = vmatprep.subr.mxu0 0.0
        %2271 = vmatpush1.msra.mxu0 0.0
        %2272 = vmatprep.subr.mxu0 0.0
        %2273 = vmatpush1.msra.mxu0 0.0
        %2274 = vmatprep.subr.mxu0 0.0
        %2275 = vmatpush1.msra.mxu0 0.0
        %2276 = vmatprep.subr.mxu0 0.0
        %2277 = vmatpush1.msra.mxu0 0.0
        %2278 = vmatprep.subr.mxu0 0.0
        %2279 = vmatpush1.msra.mxu0 0.0
        %2280 = vmatprep.subr.mxu0 0.0
        %2281 = vmatpush1.msra.mxu0 0.0
        %2282 = vmatprep.subr.mxu0 0.0
        %2283 = vmatpush1.msra.mxu0 0.0
        %2284 = vmatprep.mubr.f32.mxu0 0.0
        %2285 = vmatmul.mubr.f32.gmra.mrb[0].mxu0 %v2212
        %v2286 = vpop.f32.mrb[0].mxu0
        %v2287 = vadd.f32 0.0, %v2286
        %v2288 = vpop.f32.mrb[0].mxu0
        %v2289 = vadd.f32 0.0, %v2288
        %2290 = vmatprep.mubr.f32.mxu0 0.0
        %2291 = vmatmul.mubr.f32.gmra.mrb[0].mxu0 %v2214
        %v2292 = vpop.f32.mrb[0].mxu0
        %v2293 = vadd.f32 0.0, %v2292
        %v2294 = vpop.f32.mrb[0].mxu0
        %v2295 = vadd.f32 0.0, %v2294
        %2296 = vmatprep.mubr.f32.mxu0 0.0
        %2297 = vmatmul.mubr.f32.gmra.mrb[0].mxu0 %v2216
        %v2298 = vpop.f32.mrb[0].mxu0
        %v2299 = vadd.f32 0.0, %v2298
        %v2300 = vpop.f32.mrb[0].mxu0
        %v2301 = vadd.f32 0.0, %v2300
        %2302 = vmatprep.mubr.f32.mxu0 0.0
        %2303 = vmatmul.mubr.f32.gmra.mrb[0].mxu0 %v2218
        %v2304 = vpop.f32.mrb[0].mxu0
        %v2305 = vadd.f32 0.0, %v2304
        %v2306 = vpop.f32.mrb[0].mxu0
        %v2307 = vadd.f32 0.0, %v2306
        %2308 = vdwg.mxu0
        %v2309 = vadd.f32 %v2188, %v2287
        %v2310 = vadd.f32 %v2189, %v2289
        %v2311 = vadd.f32 %v2190, %v2293
        %v2312 = vadd.f32 %v2191, %v2295
        %v2313 = vadd.f32 %v2192, %v2299
        %v2314 = vadd.f32 %v2193, %v2301
        %v2315 = vadd.f32 %v2194, %v2305
        %v2316 = vadd.f32 %v2195, %v2307
        %s2317 = scalar_lea.vmem %s1, 896
        %v2318 = vld [vmem:[%s2317] sm:$0xff]
        %v2319 = vld [vmem:[%s2317 + $0x8] sm:$0xff]
        %v2320 = vld [vmem:[%s2317 + $0x10] sm:$0xff]
        %v2321 = vld [vmem:[%s2317 + $0x18] sm:$0xff]
        %v2322 = vld [vmem:[%s2317 + $0x20] sm:$0xff]
        %v2323 = vld [vmem:[%s2317 + $0x28] sm:$0xff]
        %v2324 = vld [vmem:[%s2317 + $0x30] sm:$0xff]
        %v2325 = vld [vmem:[%s2317 + $0x38] sm:$0xff]
        %v2326 = vrot.slane %v1832, 4
        %v2327 = vrot.slane %v1833, 4
        %v2328 = vsel %vm1111, %v2326, %v2327
        %v2329 = vrot.slane %v1834, 4
        %v2330 = vsel %vm1111, %v2327, %v2329
        %v2331 = vrot.slane %v1835, 4
        %v2332 = vsel %vm1111, %v2329, %v2331
        %v2333 = vsel %vm663, %v2328, 0
        %v2335 = vsel %vm663, %v2330, 0
        %v2337 = vsel %vm663, %v2332, 0
        %v2339 = vsel %vm663, %v2331, 0
        %2341 = vmatprep.subr.mxu0 %v2319
        %2342 = vmatpush1.msra.mxu0 %v2318
        %2343 = vmatprep.subr.mxu0 %v2321
        %2344 = vmatpush1.msra.mxu0 %v2320
        %2345 = vmatprep.subr.mxu0 %v2323
        %2346 = vmatpush1.msra.mxu0 %v2322
        %2347 = vmatprep.subr.mxu0 %v2325
        %2348 = vmatpush1.msra.mxu0 %v2324
        %2349 = vmatprep.subr.mxu0 0.0
        %2350 = vmatpush1.msra.mxu0 0.0
        %2351 = vmatprep.subr.mxu0 0.0
        %2352 = vmatpush1.msra.mxu0 0.0
        %2353 = vmatprep.subr.mxu0 0.0
        %2354 = vmatpush1.msra.mxu0 0.0
        %2355 = vmatprep.subr.mxu0 0.0
        %2356 = vmatpush1.msra.mxu0 0.0
        %2357 = vmatprep.subr.mxu0 0.0
        %2358 = vmatpush1.msra.mxu0 0.0
        %2359 = vmatprep.subr.mxu0 0.0
        %2360 = vmatpush1.msra.mxu0 0.0
        %2361 = vmatprep.subr.mxu0 0.0
        %2362 = vmatpush1.msra.mxu0 0.0
        %2363 = vmatprep.subr.mxu0 0.0
        %2364 = vmatpush1.msra.mxu0 0.0
        %2365 = vmatprep.subr.mxu0 0.0
        %2366 = vmatpush1.msra.mxu0 0.0
        %2367 = vmatprep.subr.mxu0 0.0
        %2368 = vmatpush1.msra.mxu0 0.0
        %2369 = vmatprep.subr.mxu0 0.0
        %2370 = vmatpush1.msra.mxu0 0.0
        %2371 = vmatprep.subr.mxu0 0.0
        %2372 = vmatpush1.msra.mxu0 0.0
        %2373 = vmatprep.subr.mxu0 0.0
        %2374 = vmatpush1.msra.mxu0 0.0
        %2375 = vmatprep.subr.mxu0 0.0
        %2376 = vmatpush1.msra.mxu0 0.0
        %2377 = vmatprep.subr.mxu0 0.0
        %2378 = vmatpush1.msra.mxu0 0.0
        %2379 = vmatprep.subr.mxu0 0.0
        %2380 = vmatpush1.msra.mxu0 0.0
        %2381 = vmatprep.subr.mxu0 0.0
        %2382 = vmatpush1.msra.mxu0 0.0
        %2383 = vmatprep.subr.mxu0 0.0
        %2384 = vmatpush1.msra.mxu0 0.0
        %2385 = vmatprep.subr.mxu0 0.0
        %2386 = vmatpush1.msra.mxu0 0.0
        %2387 = vmatprep.subr.mxu0 0.0
        %2388 = vmatpush1.msra.mxu0 0.0
        %2389 = vmatprep.subr.mxu0 0.0
        %2390 = vmatpush1.msra.mxu0 0.0
        %2391 = vmatprep.subr.mxu0 0.0
        %2392 = vmatpush1.msra.mxu0 0.0
        %2393 = vmatprep.subr.mxu0 0.0
        %2394 = vmatpush1.msra.mxu0 0.0
        %2395 = vmatprep.subr.mxu0 0.0
        %2396 = vmatpush1.msra.mxu0 0.0
        %2397 = vmatprep.subr.mxu0 0.0
        %2398 = vmatpush1.msra.mxu0 0.0
        %2399 = vmatprep.subr.mxu0 0.0
        %2400 = vmatpush1.msra.mxu0 0.0
        %2401 = vmatprep.subr.mxu0 0.0
        %2402 = vmatpush1.msra.mxu0 0.0
        %2403 = vmatprep.subr.mxu0 0.0
        %2404 = vmatpush1.msra.mxu0 0.0
        %2405 = vmatprep.mubr.f32.mxu0 0.0
        %2406 = vmatmul.mubr.f32.gmra.mrb[0].mxu0 %v2333
        %v2407 = vpop.f32.mrb[0].mxu0
        %v2408 = vadd.f32 0.0, %v2407
        %v2409 = vpop.f32.mrb[0].mxu0
        %v2410 = vadd.f32 0.0, %v2409
        %2411 = vmatprep.mubr.f32.mxu0 0.0
        %2412 = vmatmul.mubr.f32.gmra.mrb[0].mxu0 %v2335
        %v2413 = vpop.f32.mrb[0].mxu0
        %v2414 = vadd.f32 0.0, %v2413
        %v2415 = vpop.f32.mrb[0].mxu0
        %v2416 = vadd.f32 0.0, %v2415
        %2417 = vmatprep.mubr.f32.mxu0 0.0
        %2418 = vmatmul.mubr.f32.gmra.mrb[0].mxu0 %v2337
        %v2419 = vpop.f32.mrb[0].mxu0
        %v2420 = vadd.f32 0.0, %v2419
        %v2421 = vpop.f32.mrb[0].mxu0
        %v2422 = vadd.f32 0.0, %v2421
        %2423 = vmatprep.mubr.f32.mxu0 0.0
        %2424 = vmatmul.mubr.f32.gmra.mrb[0].mxu0 %v2339
        %v2425 = vpop.f32.mrb[0].mxu0
        %v2426 = vadd.f32 0.0, %v2425
        %v2427 = vpop.f32.mrb[0].mxu0
        %v2428 = vadd.f32 0.0, %v2427
        %2429 = vdwg.mxu0
        %v2430 = vadd.f32 %v2309, %v2408
        %v2431 = vadd.f32 %v2310, %v2410
        %v2432 = vadd.f32 %v2311, %v2414
        %v2433 = vadd.f32 %v2312, %v2416
        %v2434 = vadd.f32 %v2313, %v2420
        %v2435 = vadd.f32 %v2314, %v2422
        %v2436 = vadd.f32 %v2315, %v2426
        %v2437 = vadd.f32 %v2316, %v2428
        %v2438 = vld [vmem:[%s2] sm:$0x3]
        %v2440 = vlaneseq
        %v2441 = vshrl.u32 %v2440, 7
        %v2442 = vsub.s32 0, %v2441
        %v2443 = vrot.slane %v2438, %v2442
        %v2444 = vlaneseq
        %v2445 = vshrl.u32 %v2444, 7
        %v2446 = vsub.s32 1, %v2445
        %v2447 = vrot.slane %v2438, %v2446
        %v2450 = vadd.f32 %v2430, %v2443
        %v2451 = vadd.f32 %v2431, %v2447
        %v2452 = vadd.f32 %v2432, %v2443
        %v2453 = vadd.f32 %v2433, %v2447
        %v2454 = vadd.f32 %v2434, %v2443
        %v2455 = vadd.f32 %v2435, %v2447
        %v2456 = vadd.f32 %v2436, %v2443
        %v2457 = vadd.f32 %v2437, %v2447
        %v2458 = vmax.f32 %v2450, 0.0
        %v2459 = vmax.f32 %v2451, 0.0
        %v2460 = vmax.f32 %v2452, 0.0
        %v2461 = vmax.f32 %v2453, 0.0
        %v2462 = vmax.f32 %v2454, 0.0
        %v2463 = vmax.f32 %v2455, 0.0
        %v2464 = vmax.f32 %v2456, 0.0
        %v2465 = vmax.f32 %v2457, 0.0
        %v2466 = vld [vmem:[%s5] sm:$0xff]
        %v2467 = vld [vmem:[%s5 + $0x8] sm:$0xff]
        %v2468 = vld [vmem:[%s5 + $0x10] sm:$0xff]
        %v2469 = vld [vmem:[%s5 + $0x18] sm:$0xff]
        %v2470 = vld [vmem:[%s5 + $0x20] sm:$0xff]
        %v2471 = vld [vmem:[%s5 + $0x28] sm:$0xff]
        %v2472 = vld [vmem:[%s5 + $0x30] sm:$0xff]
        %v2473 = vld [vmem:[%s5 + $0x38] sm:$0xff]
        %v2474 = vld [vmem:[%s5 + $0x40] sm:$0xff]
        %v2475 = vld [vmem:[%s5 + $0x48] sm:$0xff]
        %v2476 = vld [vmem:[%s5 + $0x50] sm:$0xff]
        %v2477 = vld [vmem:[%s5 + $0x58] sm:$0xff]
        %v2478 = vld [vmem:[%s5 + $0x60] sm:$0xff]
        %v2479 = vld [vmem:[%s5 + $0x68] sm:$0xff]
        %v2480 = vld [vmem:[%s5 + $0x70] sm:$0xff]
        %v2481 = vld [vmem:[%s5 + $0x78] sm:$0xff]
        %v2482 = vld [vmem:[%s5 + $0x80] sm:$0xff]
        %v2483 = vld [vmem:[%s5 + $0x88] sm:$0xff]
        %v2484 = vld [vmem:[%s5 + $0x90] sm:$0xff]
        %v2485 = vld [vmem:[%s5 + $0x98] sm:$0xff]
        %v2486 = vld [vmem:[%s5 + $0xa0] sm:$0xff]
        %vm2487 = vcmask 326656
        %v2489 = vsel %vm2487, %v2459, 0
        %v2492 = vsel %vm2487, %v2461, 0
        %v2495 = vsel %vm2487, %v2463, 0
        %v2498 = vsel %vm2487, %v2465, 0
        %2500 = vmatprep.subr.mxu0 0.0
        %2501 = vmatpush1.msra.mxu0 %v2466
        %2502 = vmatprep.subr.mxu0 0.0
        %2503 = vmatpush1.msra.mxu0 %v2467
        %2504 = vmatprep.subr.mxu0 0.0
        %2505 = vmatpush1.msra.mxu0 %v2468
        %2506 = vmatprep.subr.mxu0 0.0
        %2507 = vmatpush1.msra.mxu0 %v2469
        %2508 = vmatprep.subr.mxu0 0.0
        %2509 = vmatpush1.msra.mxu0 %v2470
        %2510 = vmatprep.subr.mxu0 0.0
        %2511 = vmatpush1.msra.mxu0 %v2471
        %2512 = vmatprep.subr.mxu0 0.0
        %2513 = vmatpush1.msra.mxu0 %v2472
        %2514 = vmatprep.subr.mxu0 0.0
        %2515 = vmatpush1.msra.mxu0 %v2473
        %2516 = vmatprep.subr.mxu0 0.0
        %2517 = vmatpush1.msra.mxu0 %v2474
        %2518 = vmatprep.subr.mxu0 0.0
        %2519 = vmatpush1.msra.mxu0 %v2475
        %2520 = vmatprep.subr.mxu0 0.0
        %2521 = vmatpush1.msra.mxu0 %v2476
        %2522 = vmatprep.subr.mxu0 0.0
        %2523 = vmatpush1.msra.mxu0 %v2477
        %2524 = vmatprep.subr.mxu0 0.0
        %2525 = vmatpush1.msra.mxu0 %v2478
        %2526 = vmatprep.subr.mxu0 0.0
        %2527 = vmatpush1.msra.mxu0 %v2479
        %2528 = vmatprep.subr.mxu0 0.0
        %2529 = vmatpush1.msra.mxu0 %v2480
        %2530 = vmatprep.subr.mxu0 0.0
        %2531 = vmatpush1.msra.mxu0 %v2481
        %2532 = vmatprep.subr.mxu0 0.0
        %2533 = vmatpush1.msra.mxu0 %v2482
        %2534 = vmatprep.subr.mxu0 0.0
        %2535 = vmatpush1.msra.mxu0 %v2483
        %2536 = vmatprep.subr.mxu0 0.0
        %2537 = vmatpush1.msra.mxu0 %v2484
        %2538 = vmatprep.subr.mxu0 0.0
        %2539 = vmatpush1.msra.mxu0 %v2485
        %2540 = vmatprep.subr.mxu0 0.0
        %2541 = vmatpush1.msra.mxu0 %v2486
        %2542 = vmatprep.subr.mxu0 0.0
        %2543 = vmatpush1.msra.mxu0 0.0
        %2544 = vmatprep.subr.mxu0 0.0
        %2545 = vmatpush1.msra.mxu0 0.0
        %2546 = vmatprep.subr.mxu0 0.0
        %2547 = vmatpush1.msra.mxu0 0.0
        %2548 = vmatprep.subr.mxu0 0.0
        %2549 = vmatpush1.msra.mxu0 0.0
        %2550 = vmatprep.subr.mxu0 0.0
        %2551 = vmatpush1.msra.mxu0 0.0
        %2552 = vmatprep.subr.mxu0 0.0
        %2553 = vmatpush1.msra.mxu0 0.0
        %2554 = vmatprep.subr.mxu0 0.0
        %2555 = vmatpush1.msra.mxu0 0.0
        %2556 = vmatprep.subr.mxu0 0.0
        %2557 = vmatpush1.msra.mxu0 0.0
        %2558 = vmatprep.subr.mxu0 0.0
        %2559 = vmatpush1.msra.mxu0 0.0
        %2560 = vmatprep.subr.mxu0 0.0
        %2561 = vmatpush1.msra.mxu0 0.0
        %2562 = vmatprep.subr.mxu0 0.0
        %2563 = vmatpush1.msra.mxu0 0.0
        %2564 = vmatprep.mubr.f32.mxu0 %v2489
        %2565 = vmatmul.mubr.f32.gmra.mrb[0].mxu0 %v2458
        %v2566 = vpop.f32.mrb[0].mxu0
        %v2567 = vadd.f32 0.0, %v2566
        %v2568 = vpop.f32.mrb[0].mxu0
        %2569 = vmatprep.mubr.f32.mxu0 %v2492
        %2570 = vmatmul.mubr.f32.gmra.mrb[0].mxu0 %v2460
        %v2571 = vpop.f32.mrb[0].mxu0
        %v2572 = vadd.f32 0.0, %v2571
        %v2573 = vpop.f32.mrb[0].mxu0
        %2574 = vmatprep.mubr.f32.mxu0 %v2495
        %2575 = vmatmul.mubr.f32.gmra.mrb[0].mxu0 %v2462
        %v2576 = vpop.f32.mrb[0].mxu0
        %v2577 = vadd.f32 0.0, %v2576
        %v2578 = vpop.f32.mrb[0].mxu0
        %2579 = vmatprep.mubr.f32.mxu0 %v2498
        %2580 = vmatmul.mubr.f32.gmra.mrb[0].mxu0 %v2464
        %v2581 = vpop.f32.mrb[0].mxu0
        %v2582 = vadd.f32 0.0, %v2581
        %v2583 = vpop.f32.mrb[0].mxu0
        %2584 = vdwg.mxu0
        %v2585 = vld [vmem:[%s6] sm:$0xff]
        %v2586 = vld [vmem:[%s6 + $0x8] sm:$0xff]
        %v2587 = vld [vmem:[%s6 + $0x10] sm:$0xff]
        %v2588 = vld [vmem:[%s6 + $0x18] sm:$0xff]
        %v2589 = vld [vmem:[%s6 + $0x20] sm:$0xff]
        %v2590 = vld [vmem:[%s6 + $0x28] sm:$0xff]
        %v2591 = vld [vmem:[%s6 + $0x30] sm:$0xff]
        %v2592 = vld [vmem:[%s6 + $0x38] sm:$0xff]
        %v2593 = vld [vmem:[%s6 + $0x40] sm:$0xff]
        %v2594 = vld [vmem:[%s6 + $0x48] sm:$0xff]
        %v2595 = vld [vmem:[%s6 + $0x50] sm:$0xff]
        %v2596 = vld [vmem:[%s6 + $0x58] sm:$0xff]
        %v2597 = vld [vmem:[%s6 + $0x60] sm:$0xff]
        %v2598 = vld [vmem:[%s6 + $0x68] sm:$0xff]
        %v2599 = vld [vmem:[%s6 + $0x70] sm:$0xff]
        %v2600 = vld [vmem:[%s6 + $0x78] sm:$0xff]
        %v2601 = vld [vmem:[%s6 + $0x80] sm:$0xff]
        %v2602 = vld [vmem:[%s6 + $0x88] sm:$0xff]
        %v2603 = vld [vmem:[%s6 + $0x90] sm:$0xff]
        %v2604 = vld [vmem:[%s6 + $0x98] sm:$0xff]
        %v2605 = vld [vmem:[%s6 + $0xa0] sm:$0xff]
        %2606 = vmatprep.subr.mxu0 0.0
        %2607 = vmatpush1.msra.mxu0 %v2585
        %2608 = vmatprep.subr.mxu0 0.0
        %2609 = vmatpush1.msra.mxu0 %v2586
        %2610 = vmatprep.subr.mxu0 0.0
        %2611 = vmatpush1.msra.mxu0 %v2587
        %2612 = vmatprep.subr.mxu0 0.0
        %2613 = vmatpush1.msra.mxu0 %v2588
        %2614 = vmatprep.subr.mxu0 0.0
        %2615 = vmatpush1.msra.mxu0 %v2589
        %2616 = vmatprep.subr.mxu0 0.0
        %2617 = vmatpush1.msra.mxu0 %v2590
        %2618 = vmatprep.subr.mxu0 0.0
        %2619 = vmatpush1.msra.mxu0 %v2591
        %2620 = vmatprep.subr.mxu0 0.0
        %2621 = vmatpush1.msra.mxu0 %v2592
        %2622 = vmatprep.subr.mxu0 0.0
        %2623 = vmatpush1.msra.mxu0 %v2593
        %2624 = vmatprep.subr.mxu0 0.0
        %2625 = vmatpush1.msra.mxu0 %v2594
        %2626 = vmatprep.subr.mxu0 0.0
        %2627 = vmatpush1.msra.mxu0 %v2595
        %2628 = vmatprep.subr.mxu0 0.0
        %2629 = vmatpush1.msra.mxu0 %v2596
        %2630 = vmatprep.subr.mxu0 0.0
        %2631 = vmatpush1.msra.mxu0 %v2597
        %2632 = vmatprep.subr.mxu0 0.0
        %2633 = vmatpush1.msra.mxu0 %v2598
        %2634 = vmatprep.subr.mxu0 0.0
        %2635 = vmatpush1.msra.mxu0 %v2599
        %2636 = vmatprep.subr.mxu0 0.0
        %2637 = vmatpush1.msra.mxu0 %v2600
        %2638 = vmatprep.subr.mxu0 0.0
        %2639 = vmatpush1.msra.mxu0 %v2601
        %2640 = vmatprep.subr.mxu0 0.0
        %2641 = vmatpush1.msra.mxu0 %v2602
        %2642 = vmatprep.subr.mxu0 0.0
        %2643 = vmatpush1.msra.mxu0 %v2603
        %2644 = vmatprep.subr.mxu0 0.0
        %2645 = vmatpush1.msra.mxu0 %v2604
        %2646 = vmatprep.subr.mxu0 0.0
        %2647 = vmatpush1.msra.mxu0 %v2605
        %2648 = vmatprep.subr.mxu0 0.0
        %2649 = vmatpush1.msra.mxu0 0.0
        %2650 = vmatprep.subr.mxu0 0.0
        %2651 = vmatpush1.msra.mxu0 0.0
        %2652 = vmatprep.subr.mxu0 0.0
        %2653 = vmatpush1.msra.mxu0 0.0
        %2654 = vmatprep.subr.mxu0 0.0
        %2655 = vmatpush1.msra.mxu0 0.0
        %2656 = vmatprep.subr.mxu0 0.0
        %2657 = vmatpush1.msra.mxu0 0.0
        %2658 = vmatprep.subr.mxu0 0.0
        %2659 = vmatpush1.msra.mxu0 0.0
        %2660 = vmatprep.subr.mxu0 0.0
        %2661 = vmatpush1.msra.mxu0 0.0
        %2662 = vmatprep.subr.mxu0 0.0
        %2663 = vmatpush1.msra.mxu0 0.0
        %2664 = vmatprep.subr.mxu0 0.0
        %2665 = vmatpush1.msra.mxu0 0.0
        %2666 = vmatprep.subr.mxu0 0.0
        %2667 = vmatpush1.msra.mxu0 0.0
        %2668 = vmatprep.subr.mxu0 0.0
        %2669 = vmatpush1.msra.mxu0 0.0
        %2670 = vmatprep.mubr.f32.mxu0 %v2489
        %2671 = vmatmul.mubr.f32.gmra.mrb[0].mxu0 %v2458
        %v2672 = vpop.f32.mrb[0].mxu0
        %v2673 = vadd.f32 0.0, %v2672
        %v2674 = vpop.f32.mrb[0].mxu0
        %2675 = vmatprep.mubr.f32.mxu0 %v2492
        %2676 = vmatmul.mubr.f32.gmra.mrb[0].mxu0 %v2460
        %v2677 = vpop.f32.mrb[0].mxu0
        %v2678 = vadd.f32 0.0, %v2677
        %v2679 = vpop.f32.mrb[0].mxu0
        %2680 = vmatprep.mubr.f32.mxu0 %v2495
        %2681 = vmatmul.mubr.f32.gmra.mrb[0].mxu0 %v2462
        %v2682 = vpop.f32.mrb[0].mxu0
        %v2683 = vadd.f32 0.0, %v2682
        %v2684 = vpop.f32.mrb[0].mxu0
        %2685 = vmatprep.mubr.f32.mxu0 %v2498
        %2686 = vmatmul.mubr.f32.gmra.mrb[0].mxu0 %v2464
        %v2687 = vpop.f32.mrb[0].mxu0
        %v2688 = vadd.f32 0.0, %v2687
        %v2689 = vpop.f32.mrb[0].mxu0
        %2690 = vdwg.mxu0
        %v2691 = vmax.f32 %v2567, %v2673
        %v2692 = vmax.f32 %v2572, %v2678
        %v2693 = vmax.f32 %v2577, %v2683
        %v2694 = vmax.f32 %v2582, %v2688
        %v2695 = vld [vmem:[%s3] sm:$0xff]
        %v2696 = vld [vmem:[%s3 + $0x8] sm:$0x3f]
        %vm2697 = vcmask 228352
        %v2699 = vsel %vm2697, %v2695, 0
        %v2702 = vsel %vm2697, %v2696, 0
        %v2705 = vsel %vm1111, %v2694, 0
        %2707 = vmatprep.subr.mxu0 0.0
        %2708 = vmatpush1.msra.mxu0 %v2691
        %2709 = vmatprep.subr.mxu0 0.0
        %2710 = vmatpush1.msra.mxu0 %v2692
        %2711 = vmatprep.subr.mxu0 0.0
        %2712 = vmatpush1.msra.mxu0 %v2693
        %2713 = vmatprep.subr.mxu0 0.0
        %2714 = vmatpush1.msra.mxu0 %v2705
        %2715 = vmatprep.subr.mxu0 0.0
        %2716 = vmatpush1.msra.mxu0 0.0
        %2717 = vmatprep.subr.mxu0 0.0
        %2718 = vmatpush1.msra.mxu0 0.0
        %2719 = vmatprep.subr.mxu0 0.0
        %2720 = vmatpush1.msra.mxu0 0.0
        %2721 = vmatprep.subr.mxu0 0.0
        %2722 = vmatpush1.msra.mxu0 0.0
        %2723 = vmatprep.subr.mxu0 0.0
        %2724 = vmatpush1.msra.mxu0 0.0
        %2725 = vmatprep.subr.mxu0 0.0
        %2726 = vmatpush1.msra.mxu0 0.0
        %2727 = vmatprep.subr.mxu0 0.0
        %2728 = vmatpush1.msra.mxu0 0.0
        %2729 = vmatprep.subr.mxu0 0.0
        %2730 = vmatpush1.msra.mxu0 0.0
        %2731 = vmatprep.subr.mxu0 0.0
        %2732 = vmatpush1.msra.mxu0 0.0
        %2733 = vmatprep.subr.mxu0 0.0
        %2734 = vmatpush1.msra.mxu0 0.0
        %2735 = vmatprep.subr.mxu0 0.0
        %2736 = vmatpush1.msra.mxu0 0.0
        %2737 = vmatprep.subr.mxu0 0.0
        %2738 = vmatpush1.msra.mxu0 0.0
        %2739 = vmatprep.subr.mxu0 0.0
        %2740 = vmatpush1.msra.mxu0 0.0
        %2741 = vmatprep.subr.mxu0 0.0
        %2742 = vmatpush1.msra.mxu0 0.0
        %2743 = vmatprep.subr.mxu0 0.0
        %2744 = vmatpush1.msra.mxu0 0.0
        %2745 = vmatprep.subr.mxu0 0.0
        %2746 = vmatpush1.msra.mxu0 0.0
        %2747 = vmatprep.subr.mxu0 0.0
        %2748 = vmatpush1.msra.mxu0 0.0
        %2749 = vmatprep.subr.mxu0 0.0
        %2750 = vmatpush1.msra.mxu0 0.0
        %2751 = vmatprep.subr.mxu0 0.0
        %2752 = vmatpush1.msra.mxu0 0.0
        %2753 = vmatprep.subr.mxu0 0.0
        %2754 = vmatpush1.msra.mxu0 0.0
        %2755 = vmatprep.subr.mxu0 0.0
        %2756 = vmatpush1.msra.mxu0 0.0
        %2757 = vmatprep.subr.mxu0 0.0
        %2758 = vmatpush1.msra.mxu0 0.0
        %2759 = vmatprep.subr.mxu0 0.0
        %2760 = vmatpush1.msra.mxu0 0.0
        %2761 = vmatprep.subr.mxu0 0.0
        %2762 = vmatpush1.msra.mxu0 0.0
        %2763 = vmatprep.subr.mxu0 0.0
        %2764 = vmatpush1.msra.mxu0 0.0
        %2765 = vmatprep.subr.mxu0 0.0
        %2766 = vmatpush1.msra.mxu0 0.0
        %2767 = vmatprep.subr.mxu0 0.0
        %2768 = vmatpush1.msra.mxu0 0.0
        %2769 = vmatprep.subr.mxu0 0.0
        %2770 = vmatpush1.msra.mxu0 0.0
        %2771 = vmatprep.mubr.f32.mxu0 0.0
        %2772 = vmatmul.mubr.f32.gmra.mrb[0].mxu0 %v2699
        %v2773 = vpop.f32.mrb[0].mxu0
        %v2774 = vadd.f32 0.0, %v2773
        %v2775 = vpop.f32.mrb[0].mxu0
        %2776 = vmatprep.mubr.f32.mxu0 0.0
        %2777 = vmatmul.mubr.f32.gmra.mrb[0].mxu0 %v2702
        %v2778 = vpop.f32.mrb[0].mxu0
        %v2779 = vadd.f32 0.0, %v2778
        %v2780 = vpop.f32.mrb[0].mxu0
        %2781 = vdwg.mxu0
        %v2782 = vld [vmem:[%s4] sm:$0xff]
        %v2783 = vld [vmem:[%s4 + $0x8] sm:$0x3f]
        %v2785 = vsel %vm2697, %v2782, 0
        %v2788 = vsel %vm2697, %v2783, 0
        %2790 = vmatprep.subr.mxu0 0.0
        %2791 = vmatpush1.msra.mxu0 %v2691
        %2792 = vmatprep.subr.mxu0 0.0
        %2793 = vmatpush1.msra.mxu0 %v2692
        %2794 = vmatprep.subr.mxu0 0.0
        %2795 = vmatpush1.msra.mxu0 %v2693
        %2796 = vmatprep.subr.mxu0 0.0
        %2797 = vmatpush1.msra.mxu0 %v2705
        %2798 = vmatprep.subr.mxu0 0.0
        %2799 = vmatpush1.msra.mxu0 0.0
        %2800 = vmatprep.subr.mxu0 0.0
        %2801 = vmatpush1.msra.mxu0 0.0
        %2802 = vmatprep.subr.mxu0 0.0
        %2803 = vmatpush1.msra.mxu0 0.0
        %2804 = vmatprep.subr.mxu0 0.0
        %2805 = vmatpush1.msra.mxu0 0.0
        %2806 = vmatprep.subr.mxu0 0.0
        %2807 = vmatpush1.msra.mxu0 0.0
        %2808 = vmatprep.subr.mxu0 0.0
        %2809 = vmatpush1.msra.mxu0 0.0
        %2810 = vmatprep.subr.mxu0 0.0
        %2811 = vmatpush1.msra.mxu0 0.0
        %2812 = vmatprep.subr.mxu0 0.0
        %2813 = vmatpush1.msra.mxu0 0.0
        %2814 = vmatprep.subr.mxu0 0.0
        %2815 = vmatpush1.msra.mxu0 0.0
        %2816 = vmatprep.subr.mxu0 0.0
        %2817 = vmatpush1.msra.mxu0 0.0
        %2818 = vmatprep.subr.mxu0 0.0
        %2819 = vmatpush1.msra.mxu0 0.0
        %2820 = vmatprep.subr.mxu0 0.0
        %2821 = vmatpush1.msra.mxu0 0.0
        %2822 = vmatprep.subr.mxu0 0.0
        %2823 = vmatpush1.msra.mxu0 0.0
        %2824 = vmatprep.subr.mxu0 0.0
        %2825 = vmatpush1.msra.mxu0 0.0
        %2826 = vmatprep.subr.mxu0 0.0
        %2827 = vmatpush1.msra.mxu0 0.0
        %2828 = vmatprep.subr.mxu0 0.0
        %2829 = vmatpush1.msra.mxu0 0.0
        %2830 = vmatprep.subr.mxu0 0.0
        %2831 = vmatpush1.msra.mxu0 0.0
        %2832 = vmatprep.subr.mxu0 0.0
        %2833 = vmatpush1.msra.mxu0 0.0
        %2834 = vmatprep.subr.mxu0 0.0
        %2835 = vmatpush1.msra.mxu0 0.0
        %2836 = vmatprep.subr.mxu0 0.0
        %2837 = vmatpush1.msra.mxu0 0.0
        %2838 = vmatprep.subr.mxu0 0.0
        %2839 = vmatpush1.msra.mxu0 0.0
        %2840 = vmatprep.subr.mxu0 0.0
        %2841 = vmatpush1.msra.mxu0 0.0
        %2842 = vmatprep.subr.mxu0 0.0
        %2843 = vmatpush1.msra.mxu0 0.0
        %2844 = vmatprep.subr.mxu0 0.0
        %2845 = vmatpush1.msra.mxu0 0.0
        %2846 = vmatprep.subr.mxu0 0.0
        %2847 = vmatpush1.msra.mxu0 0.0
        %2848 = vmatprep.subr.mxu0 0.0
        %2849 = vmatpush1.msra.mxu0 0.0
        %2850 = vmatprep.subr.mxu0 0.0
        %2851 = vmatpush1.msra.mxu0 0.0
        %2852 = vmatprep.subr.mxu0 0.0
        %2853 = vmatpush1.msra.mxu0 0.0
        %2854 = vmatprep.mubr.f32.mxu0 0.0
        %2855 = vmatmul.mubr.f32.gmra.mrb[0].mxu0 %v2785
        %v2856 = vpop.f32.mrb[0].mxu0
        %v2857 = vadd.f32 0.0, %v2856
        %v2858 = vpop.f32.mrb[0].mxu0
        %2859 = vmatprep.mubr.f32.mxu0 0.0
        %2860 = vmatmul.mubr.f32.gmra.mrb[0].mxu0 %v2788
        %v2861 = vpop.f32.mrb[0].mxu0
        %v2862 = vadd.f32 0.0, %v2861
        %v2863 = vpop.f32.mrb[0].mxu0
        %2864 = vdwg.mxu0
        %v2865 = vmax.f32 %v2774, %v2857
        %v2866 = vmax.f32 %v2779, %v2862
        %v2867 = vld [vmem:[%s7] sm:$0xff]
        %v2868 = vld [vmem:[%s7 + $0x8] sm:$0xff]
        %v2869 = vld [vmem:[%s7 + $0x10] sm:$0xff]
        %v2870 = vld [vmem:[%s7 + $0x18] sm:$0xff]
        %v2871 = vld [vmem:[%s7 + $0x20] sm:$0xff]
        %v2872 = vld [vmem:[%s7 + $0x28] sm:$0xff]
        %v2873 = vld [vmem:[%s7 + $0x30] sm:$0xff]
        %v2874 = vld [vmem:[%s7 + $0x38] sm:$0xff]
        %v2875 = vld [vmem:[%s7 + $0x40] sm:$0xff]
        %v2876 = vld [vmem:[%s7 + $0x48] sm:$0xff]
        %v2877 = vld [vmem:[%s7 + $0x50] sm:$0xff]
        %v2878 = vld [vmem:[%s7 + $0x58] sm:$0xff]
        %v2879 = vld [vmem:[%s7 + $0x60] sm:$0xff]
        %v2880 = vld [vmem:[%s7 + $0x68] sm:$0xff]
        %v2881 = vld [vmem:[%s7 + $0x70] sm:$0xff]
        %v2882 = vld [vmem:[%s7 + $0x78] sm:$0xff]
        %v2883 = vld [vmem:[%s7 + $0x80] sm:$0xff]
        %v2884 = vld [vmem:[%s7 + $0x88] sm:$0xff]
        %v2885 = vld [vmem:[%s7 + $0x90] sm:$0xff]
        %v2886 = vld [vmem:[%s7 + $0x98] sm:$0xff]
        %v2887 = vld [vmem:[%s7 + $0xa0] sm:$0xf]
        %v2888 = vld [vmem:[%s7 + $0xa8] sm:$0xf]
        %s2889 = scalar_lea.vmem %s7, 176
        %v2890 = vld [vmem:[%s2889] sm:$0xff]
        %v2891 = vld [vmem:[%s2889 + $0x8] sm:$0xff]
        %v2892 = vld [vmem:[%s2889 + $0x10] sm:$0xff]
        %v2893 = vld [vmem:[%s2889 + $0x18] sm:$0xff]
        %v2894 = vld [vmem:[%s2889 + $0x20] sm:$0xff]
        %v2895 = vld [vmem:[%s2889 + $0x28] sm:$0xff]
        %v2896 = vld [vmem:[%s2889 + $0x30] sm:$0xff]
        %v2897 = vld [vmem:[%s2889 + $0x38] sm:$0xff]
        %v2898 = vld [vmem:[%s2889 + $0x40] sm:$0xff]
        %v2899 = vld [vmem:[%s2889 + $0x48] sm:$0xff]
        %v2900 = vld [vmem:[%s2889 + $0x50] sm:$0xff]
        %v2901 = vld [vmem:[%s2889 + $0x58] sm:$0xff]
        %v2902 = vld [vmem:[%s2889 + $0x60] sm:$0xff]
        %v2903 = vld [vmem:[%s2889 + $0x68] sm:$0xff]
        %v2904 = vld [vmem:[%s2889 + $0x70] sm:$0xff]
        %v2905 = vld [vmem:[%s2889 + $0x78] sm:$0xff]
        %v2906 = vld [vmem:[%s2889 + $0x80] sm:$0xff]
        %v2907 = vld [vmem:[%s2889 + $0x88] sm:$0xff]
        %v2908 = vld [vmem:[%s2889 + $0x90] sm:$0xff]
        %v2909 = vld [vmem:[%s2889 + $0x98] sm:$0xff]
        %v2910 = vld [vmem:[%s2889 + $0xa0] sm:$0xf]
        %v2911 = vld [vmem:[%s2889 + $0xa8] sm:$0xf]
        %v2914 = vrot.slane %v2865, 1
        %v2915 = vrot.slane %v2866, 1
        %v2916 = vsel %vm655, %v2914, %v2915
        %vm2917 = vcmask 687104
        %v2918 = vsel %vm2917, %v2916, 0
        %v2920 = vsel %vm2917, %v2915, 0
        %v2923 = vsel %vm1111, %v2910, 0
        %v2926 = vsel %vm1111, %v2911, 0
        %2928 = vmatprep.subr.mxu0 %v2891
        %2929 = vmatpush1.msra.mxu0 %v2890
        %2930 = vmatprep.subr.mxu0 %v2893
        %2931 = vmatpush1.msra.mxu0 %v2892
        %2932 = vmatprep.subr.mxu0 %v2895
        %2933 = vmatpush1.msra.mxu0 %v2894
        %2934 = vmatprep.subr.mxu0 %v2897
        %2935 = vmatpush1.msra.mxu0 %v2896
        %2936 = vmatprep.subr.mxu0 %v2899
        %2937 = vmatpush1.msra.mxu0 %v2898
        %2938 = vmatprep.subr.mxu0 %v2901
        %2939 = vmatpush1.msra.mxu0 %v2900
        %2940 = vmatprep.subr.mxu0 %v2903
        %2941 = vmatpush1.msra.mxu0 %v2902
        %2942 = vmatprep.subr.mxu0 %v2905
        %2943 = vmatpush1.msra.mxu0 %v2904
        %2944 = vmatprep.subr.mxu0 %v2907
        %2945 = vmatpush1.msra.mxu0 %v2906
        %2946 = vmatprep.subr.mxu0 %v2909
        %2947 = vmatpush1.msra.mxu0 %v2908
        %2948 = vmatprep.subr.mxu0 %v2926
        %2949 = vmatpush1.msra.mxu0 %v2923
        %2950 = vmatprep.subr.mxu0 0.0
        %2951 = vmatpush1.msra.mxu0 0.0
        %2952 = vmatprep.subr.mxu0 0.0
        %2953 = vmatpush1.msra.mxu0 0.0
        %2954 = vmatprep.subr.mxu0 0.0
        %2955 = vmatpush1.msra.mxu0 0.0
        %2956 = vmatprep.subr.mxu0 0.0
        %2957 = vmatpush1.msra.mxu0 0.0
        %2958 = vmatprep.subr.mxu0 0.0
        %2959 = vmatpush1.msra.mxu0 0.0
        %2960 = vmatprep.subr.mxu0 0.0
        %2961 = vmatpush1.msra.mxu0 0.0
        %2962 = vmatprep.subr.mxu0 0.0
        %2963 = vmatpush1.msra.mxu0 0.0
        %2964 = vmatprep.subr.mxu0 0.0
        %2965 = vmatpush1.msra.mxu0 0.0
        %2966 = vmatprep.subr.mxu0 0.0
        %2967 = vmatpush1.msra.mxu0 0.0
        %2968 = vmatprep.subr.mxu0 0.0
        %2969 = vmatpush1.msra.mxu0 0.0
        %2970 = vmatprep.subr.mxu0 0.0
        %2971 = vmatpush1.msra.mxu0 0.0
        %2972 = vmatprep.subr.mxu0 0.0
        %2973 = vmatpush1.msra.mxu0 0.0
        %2974 = vmatprep.subr.mxu0 0.0
        %2975 = vmatpush1.msra.mxu0 0.0
        %2976 = vmatprep.subr.mxu0 0.0
        %2977 = vmatpush1.msra.mxu0 0.0
        %2978 = vmatprep.subr.mxu0 0.0
        %2979 = vmatpush1.msra.mxu0 0.0
        %2980 = vmatprep.subr.mxu0 0.0
        %2981 = vmatpush1.msra.mxu0 0.0
        %2982 = vmatprep.subr.mxu0 0.0
        %2983 = vmatpush1.msra.mxu0 0.0
        %2984 = vmatprep.subr.mxu0 0.0
        %2985 = vmatpush1.msra.mxu0 0.0
        %2986 = vmatprep.subr.mxu0 0.0
        %2987 = vmatpush1.msra.mxu0 0.0
        %2988 = vmatprep.subr.mxu0 0.0
        %2989 = vmatpush1.msra.mxu0 0.0
        %2990 = vmatprep.subr.mxu0 0.0
        %2991 = vmatpush1.msra.mxu0 0.0
        %2992 = vmatprep.mubr.f32.mxu0 0.0
        %2993 = vmatmul.mubr.f32.gmra.mrb[0].mxu0 %v2918
        %v2994 = vpop.f32.mrb[0].mxu0
        %v2995 = vadd.f32 0.0, %v2994
        %v2996 = vpop.f32.mrb[0].mxu0
        %v2997 = vadd.f32 0.0, %v2996
        %2998 = vmatprep.mubr.f32.mxu0 0.0
        %2999 = vmatmul.mubr.f32.gmra.mrb[0].mxu0 %v2920
        %v3000 = vpop.f32.mrb[0].mxu0
        %v3001 = vadd.f32 0.0, %v3000
        %v3002 = vpop.f32.mrb[0].mxu0
        %v3003 = vadd.f32 0.0, %v3002
        %3004 = vdwg.mxu0
        %v3005 = vsel %vm2917, %v2865, 0
        %v3007 = vsel %vm2917, %v2866, 0
        %v3010 = vsel %vm1111, %v2887, 0
        %v3013 = vsel %vm1111, %v2888, 0
        %3015 = vmatprep.subr.mxu0 %v2868
        %3016 = vmatpush1.msra.mxu0 %v2867
        %3017 = vmatprep.subr.mxu0 %v2870
        %3018 = vmatpush1.msra.mxu0 %v2869
        %3019 = vmatprep.subr.mxu0 %v2872
        %3020 = vmatpush1.msra.mxu0 %v2871
        %3021 = vmatprep.subr.mxu0 %v2874
        %3022 = vmatpush1.msra.mxu0 %v2873
        %3023 = vmatprep.subr.mxu0 %v2876
        %3024 = vmatpush1.msra.mxu0 %v2875
        %3025 = vmatprep.subr.mxu0 %v2878
        %3026 = vmatpush1.msra.mxu0 %v2877
        %3027 = vmatprep.subr.mxu0 %v2880
        %3028 = vmatpush1.msra.mxu0 %v2879
        %3029 = vmatprep.subr.mxu0 %v2882
        %3030 = vmatpush1.msra.mxu0 %v2881
        %3031 = vmatprep.subr.mxu0 %v2884
        %3032 = vmatpush1.msra.mxu0 %v2883
        %3033 = vmatprep.subr.mxu0 %v2886
        %3034 = vmatpush1.msra.mxu0 %v2885
        %3035 = vmatprep.subr.mxu0 %v3013
        %3036 = vmatpush1.msra.mxu0 %v3010
        %3037 = vmatprep.subr.mxu0 0.0
        %3038 = vmatpush1.msra.mxu0 0.0
        %3039 = vmatprep.subr.mxu0 0.0
        %3040 = vmatpush1.msra.mxu0 0.0
        %3041 = vmatprep.subr.mxu0 0.0
        %3042 = vmatpush1.msra.mxu0 0.0
        %3043 = vmatprep.subr.mxu0 0.0
        %3044 = vmatpush1.msra.mxu0 0.0
        %3045 = vmatprep.subr.mxu0 0.0
        %3046 = vmatpush1.msra.mxu0 0.0
        %3047 = vmatprep.subr.mxu0 0.0
        %3048 = vmatpush1.msra.mxu0 0.0
        %3049 = vmatprep.subr.mxu0 0.0
        %3050 = vmatpush1.msra.mxu0 0.0
        %3051 = vmatprep.subr.mxu0 0.0
        %3052 = vmatpush1.msra.mxu0 0.0
        %3053 = vmatprep.subr.mxu0 0.0
        %3054 = vmatpush1.msra.mxu0 0.0
        %3055 = vmatprep.subr.mxu0 0.0
        %3056 = vmatpush1.msra.mxu0 0.0
        %3057 = vmatprep.subr.mxu0 0.0
        %3058 = vmatpush1.msra.mxu0 0.0
        %3059 = vmatprep.subr.mxu0 0.0
        %3060 = vmatpush1.msra.mxu0 0.0
        %3061 = vmatprep.subr.mxu0 0.0
        %3062 = vmatpush1.msra.mxu0 0.0
        %3063 = vmatprep.subr.mxu0 0.0
        %3064 = vmatpush1.msra.mxu0 0.0
        %3065 = vmatprep.subr.mxu0 0.0
        %3066 = vmatpush1.msra.mxu0 0.0
        %3067 = vmatprep.subr.mxu0 0.0
        %3068 = vmatpush1.msra.mxu0 0.0
        %3069 = vmatprep.subr.mxu0 0.0
        %3070 = vmatpush1.msra.mxu0 0.0
        %3071 = vmatprep.subr.mxu0 0.0
        %3072 = vmatpush1.msra.mxu0 0.0
        %3073 = vmatprep.subr.mxu0 0.0
        %3074 = vmatpush1.msra.mxu0 0.0
        %3075 = vmatprep.subr.mxu0 0.0
        %3076 = vmatpush1.msra.mxu0 0.0
        %3077 = vmatprep.subr.mxu0 0.0
        %3078 = vmatpush1.msra.mxu0 0.0
        %3079 = vmatprep.mubr.f32.mxu0 0.0
        %3080 = vmatmul.mubr.f32.gmra.mrb[0].mxu0 %v3005
        %v3081 = vpop.f32.mrb[0].mxu0
        %v3082 = vadd.f32 %v2995, %v3081
        %v3083 = vpop.f32.mrb[0].mxu0
        %v3084 = vadd.f32 %v2997, %v3083
        %3085 = vmatprep.mubr.f32.mxu0 0.0
        %3086 = vmatmul.mubr.f32.gmra.mrb[0].mxu0 %v3007
        %v3087 = vpop.f32.mrb[0].mxu0
        %v3088 = vadd.f32 %v3001, %v3087
        %v3089 = vpop.f32.mrb[0].mxu0
        %v3090 = vadd.f32 %v3003, %v3089
        %3091 = vdwg.mxu0
        %s3092 = scalar_lea.vmem %s7, 352
        %v3093 = vld [vmem:[%s3092] sm:$0xff]
        %v3094 = vld [vmem:[%s3092 + $0x8] sm:$0xff]
        %v3095 = vld [vmem:[%s3092 + $0x10] sm:$0xff]
        %v3096 = vld [vmem:[%s3092 + $0x18] sm:$0xff]
        %v3097 = vld [vmem:[%s3092 + $0x20] sm:$0xff]
        %v3098 = vld [vmem:[%s3092 + $0x28] sm:$0xff]
        %v3099 = vld [vmem:[%s3092 + $0x30] sm:$0xff]
        %v3100 = vld [vmem:[%s3092 + $0x38] sm:$0xff]
        %v3101 = vld [vmem:[%s3092 + $0x40] sm:$0xff]
        %v3102 = vld [vmem:[%s3092 + $0x48] sm:$0xff]
        %v3103 = vld [vmem:[%s3092 + $0x50] sm:$0xff]
        %v3104 = vld [vmem:[%s3092 + $0x58] sm:$0xff]
        %v3105 = vld [vmem:[%s3092 + $0x60] sm:$0xff]
        %v3106 = vld [vmem:[%s3092 + $0x68] sm:$0xff]
        %v3107 = vld [vmem:[%s3092 + $0x70] sm:$0xff]
        %v3108 = vld [vmem:[%s3092 + $0x78] sm:$0xff]
        %v3109 = vld [vmem:[%s3092 + $0x80] sm:$0xff]
        %v3110 = vld [vmem:[%s3092 + $0x88] sm:$0xff]
        %v3111 = vld [vmem:[%s3092 + $0x90] sm:$0xff]
        %v3112 = vld [vmem:[%s3092 + $0x98] sm:$0xff]
        %v3113 = vld [vmem:[%s3092 + $0xa0] sm:$0xf]
        %v3114 = vld [vmem:[%s3092 + $0xa8] sm:$0xf]
        %v3115 = vrot.slane %v2865, 2
        %v3116 = vrot.slane %v2866, 2
        %v3117 = vsel %vm867, %v3115, %v3116
        %v3118 = vsel %vm2917, %v3117, 0
        %v3120 = vsel %vm2917, %v3116, 0
        %v3123 = vsel %vm1111, %v3113, 0
        %v3126 = vsel %vm1111, %v3114, 0
        %3128 = vmatprep.subr.mxu0 %v3094
        %3129 = vmatpush1.msra.mxu0 %v3093
        %3130 = vmatprep.subr.mxu0 %v3096
        %3131 = vmatpush1.msra.mxu0 %v3095
        %3132 = vmatprep.subr.mxu0 %v3098
        %3133 = vmatpush1.msra.mxu0 %v3097
        %3134 = vmatprep.subr.mxu0 %v3100
        %3135 = vmatpush1.msra.mxu0 %v3099
        %3136 = vmatprep.subr.mxu0 %v3102
        %3137 = vmatpush1.msra.mxu0 %v3101
        %3138 = vmatprep.subr.mxu0 %v3104
        %3139 = vmatpush1.msra.mxu0 %v3103
        %3140 = vmatprep.subr.mxu0 %v3106
        %3141 = vmatpush1.msra.mxu0 %v3105
        %3142 = vmatprep.subr.mxu0 %v3108
        %3143 = vmatpush1.msra.mxu0 %v3107
        %3144 = vmatprep.subr.mxu0 %v3110
        %3145 = vmatpush1.msra.mxu0 %v3109
        %3146 = vmatprep.subr.mxu0 %v3112
        %3147 = vmatpush1.msra.mxu0 %v3111
        %3148 = vmatprep.subr.mxu0 %v3126
        %3149 = vmatpush1.msra.mxu0 %v3123
        %3150 = vmatprep.subr.mxu0 0.0
        %3151 = vmatpush1.msra.mxu0 0.0
        %3152 = vmatprep.subr.mxu0 0.0
        %3153 = vmatpush1.msra.mxu0 0.0
        %3154 = vmatprep.subr.mxu0 0.0
        %3155 = vmatpush1.msra.mxu0 0.0
        %3156 = vmatprep.subr.mxu0 0.0
        %3157 = vmatpush1.msra.mxu0 0.0
        %3158 = vmatprep.subr.mxu0 0.0
        %3159 = vmatpush1.msra.mxu0 0.0
        %3160 = vmatprep.subr.mxu0 0.0
        %3161 = vmatpush1.msra.mxu0 0.0
        %3162 = vmatprep.subr.mxu0 0.0
        %3163 = vmatpush1.msra.mxu0 0.0
        %3164 = vmatprep.subr.mxu0 0.0
        %3165 = vmatpush1.msra.mxu0 0.0
        %3166 = vmatprep.subr.mxu0 0.0
        %3167 = vmatpush1.msra.mxu0 0.0
        %3168 = vmatprep.subr.mxu0 0.0
        %3169 = vmatpush1.msra.mxu0 0.0
        %3170 = vmatprep.subr.mxu0 0.0
        %3171 = vmatpush1.msra.mxu0 0.0
        %3172 = vmatprep.subr.mxu0 0.0
        %3173 = vmatpush1.msra.mxu0 0.0
        %3174 = vmatprep.subr.mxu0 0.0
        %3175 = vmatpush1.msra.mxu0 0.0
        %3176 = vmatprep.subr.mxu0 0.0
        %3177 = vmatpush1.msra.mxu0 0.0
        %3178 = vmatprep.subr.mxu0 0.0
        %3179 = vmatpush1.msra.mxu0 0.0
        %3180 = vmatprep.subr.mxu0 0.0
        %3181 = vmatpush1.msra.mxu0 0.0
        %3182 = vmatprep.subr.mxu0 0.0
        %3183 = vmatpush1.msra.mxu0 0.0
        %3184 = vmatprep.subr.mxu0 0.0
        %3185 = vmatpush1.msra.mxu0 0.0
        %3186 = vmatprep.subr.mxu0 0.0
        %3187 = vmatpush1.msra.mxu0 0.0
        %3188 = vmatprep.subr.mxu0 0.0
        %3189 = vmatpush1.msra.mxu0 0.0
        %3190 = vmatprep.subr.mxu0 0.0
        %3191 = vmatpush1.msra.mxu0 0.0
        %3192 = vmatprep.mubr.f32.mxu0 0.0
        %3193 = vmatmul.mubr.f32.gmra.mrb[0].mxu0 %v3118
        %v3194 = vpop.f32.mrb[0].mxu0
        %v3195 = vadd.f32 0.0, %v3194
        %v3196 = vpop.f32.mrb[0].mxu0
        %v3197 = vadd.f32 0.0, %v3196
        %3198 = vmatprep.mubr.f32.mxu0 0.0
        %3199 = vmatmul.mubr.f32.gmra.mrb[0].mxu0 %v3120
        %v3200 = vpop.f32.mrb[0].mxu0
        %v3201 = vadd.f32 0.0, %v3200
        %v3202 = vpop.f32.mrb[0].mxu0
        %v3203 = vadd.f32 0.0, %v3202
        %3204 = vdwg.mxu0
        %v3205 = vadd.f32 %v3082, %v3195
        %v3206 = vadd.f32 %v3084, %v3197
        %v3207 = vadd.f32 %v3088, %v3201
        %v3208 = vadd.f32 %v3090, %v3203
        %s3209 = scalar_lea.vmem %s7, 528
        %v3210 = vld [vmem:[%s3209] sm:$0xff]
        %v3211 = vld [vmem:[%s3209 + $0x8] sm:$0xff]
        %v3212 = vld [vmem:[%s3209 + $0x10] sm:$0xff]
        %v3213 = vld [vmem:[%s3209 + $0x18] sm:$0xff]
        %v3214 = vld [vmem:[%s3209 + $0x20] sm:$0xff]
        %v3215 = vld [vmem:[%s3209 + $0x28] sm:$0xff]
        %v3216 = vld [vmem:[%s3209 + $0x30] sm:$0xff]
        %v3217 = vld [vmem:[%s3209 + $0x38] sm:$0xff]
        %v3218 = vld [vmem:[%s3209 + $0x40] sm:$0xff]
        %v3219 = vld [vmem:[%s3209 + $0x48] sm:$0xff]
        %v3220 = vld [vmem:[%s3209 + $0x50] sm:$0xff]
        %v3221 = vld [vmem:[%s3209 + $0x58] sm:$0xff]
        %v3222 = vld [vmem:[%s3209 + $0x60] sm:$0xff]
        %v3223 = vld [vmem:[%s3209 + $0x68] sm:$0xff]
        %v3224 = vld [vmem:[%s3209 + $0x70] sm:$0xff]
        %v3225 = vld [vmem:[%s3209 + $0x78] sm:$0xff]
        %v3226 = vld [vmem:[%s3209 + $0x80] sm:$0xff]
        %v3227 = vld [vmem:[%s3209 + $0x88] sm:$0xff]
        %v3228 = vld [vmem:[%s3209 + $0x90] sm:$0xff]
        %v3229 = vld [vmem:[%s3209 + $0x98] sm:$0xff]
        %v3230 = vld [vmem:[%s3209 + $0xa0] sm:$0xf]
        %v3231 = vld [vmem:[%s3209 + $0xa8] sm:$0xf]
        %v3232 = vrot.slane %v2865, 3
        %v3233 = vrot.slane %v2866, 3
        %v3234 = vsel %vm989, %v3232, %v3233
        %v3235 = vsel %vm2917, %v3234, 0
        %v3237 = vsel %vm2917, %v3233, 0
        %v3240 = vsel %vm1111, %v3230, 0
        %v3243 = vsel %vm1111, %v3231, 0
        %3245 = vmatprep.subr.mxu0 %v3211
        %3246 = vmatpush1.msra.mxu0 %v3210
        %3247 = vmatprep.subr.mxu0 %v3213
        %3248 = vmatpush1.msra.mxu0 %v3212
        %3249 = vmatprep.subr.mxu0 %v3215
        %3250 = vmatpush1.msra.mxu0 %v3214
        %3251 = vmatprep.subr.mxu0 %v3217
        %3252 = vmatpush1.msra.mxu0 %v3216
        %3253 = vmatprep.subr.mxu0 %v3219
        %3254 = vmatpush1.msra.mxu0 %v3218
        %3255 = vmatprep.subr.mxu0 %v3221
        %3256 = vmatpush1.msra.mxu0 %v3220
        %3257 = vmatprep.subr.mxu0 %v3223
        %3258 = vmatpush1.msra.mxu0 %v3222
        %3259 = vmatprep.subr.mxu0 %v3225
        %3260 = vmatpush1.msra.mxu0 %v3224
        %3261 = vmatprep.subr.mxu0 %v3227
        %3262 = vmatpush1.msra.mxu0 %v3226
        %3263 = vmatprep.subr.mxu0 %v3229
        %3264 = vmatpush1.msra.mxu0 %v3228
        %3265 = vmatprep.subr.mxu0 %v3243
        %3266 = vmatpush1.msra.mxu0 %v3240
        %3267 = vmatprep.subr.mxu0 0.0
        %3268 = vmatpush1.msra.mxu0 0.0
        %3269 = vmatprep.subr.mxu0 0.0
        %3270 = vmatpush1.msra.mxu0 0.0
        %3271 = vmatprep.subr.mxu0 0.0
        %3272 = vmatpush1.msra.mxu0 0.0
        %3273 = vmatprep.subr.mxu0 0.0
        %3274 = vmatpush1.msra.mxu0 0.0
        %3275 = vmatprep.subr.mxu0 0.0
        %3276 = vmatpush1.msra.mxu0 0.0
        %3277 = vmatprep.subr.mxu0 0.0
        %3278 = vmatpush1.msra.mxu0 0.0
        %3279 = vmatprep.subr.mxu0 0.0
        %3280 = vmatpush1.msra.mxu0 0.0
        %3281 = vmatprep.subr.mxu0 0.0
        %3282 = vmatpush1.msra.mxu0 0.0
        %3283 = vmatprep.subr.mxu0 0.0
        %3284 = vmatpush1.msra.mxu0 0.0
        %3285 = vmatprep.subr.mxu0 0.0
        %3286 = vmatpush1.msra.mxu0 0.0
        %3287 = vmatprep.subr.mxu0 0.0
        %3288 = vmatpush1.msra.mxu0 0.0
        %3289 = vmatprep.subr.mxu0 0.0
        %3290 = vmatpush1.msra.mxu0 0.0
        %3291 = vmatprep.subr.mxu0 0.0
        %3292 = vmatpush1.msra.mxu0 0.0
        %3293 = vmatprep.subr.mxu0 0.0
        %3294 = vmatpush1.msra.mxu0 0.0
        %3295 = vmatprep.subr.mxu0 0.0
        %3296 = vmatpush1.msra.mxu0 0.0
        %3297 = vmatprep.subr.mxu0 0.0
        %3298 = vmatpush1.msra.mxu0 0.0
        %3299 = vmatprep.subr.mxu0 0.0
        %3300 = vmatpush1.msra.mxu0 0.0
        %3301 = vmatprep.subr.mxu0 0.0
        %3302 = vmatpush1.msra.mxu0 0.0
        %3303 = vmatprep.subr.mxu0 0.0
        %3304 = vmatpush1.msra.mxu0 0.0
        %3305 = vmatprep.subr.mxu0 0.0
        %3306 = vmatpush1.msra.mxu0 0.0
        %3307 = vmatprep.subr.mxu0 0.0
        %3308 = vmatpush1.msra.mxu0 0.0
        %3309 = vmatprep.mubr.f32.mxu0 0.0
        %3310 = vmatmul.mubr.f32.gmra.mrb[0].mxu0 %v3235
        %v3311 = vpop.f32.mrb[0].mxu0
        %v3312 = vadd.f32 0.0, %v3311
        %v3313 = vpop.f32.mrb[0].mxu0
        %v3314 = vadd.f32 0.0, %v3313
        %3315 = vmatprep.mubr.f32.mxu0 0.0
        %3316 = vmatmul.mubr.f32.gmra.mrb[0].mxu0 %v3237
        %v3317 = vpop.f32.mrb[0].mxu0
        %v3318 = vadd.f32 0.0, %v3317
        %v3319 = vpop.f32.mrb[0].mxu0
        %v3320 = vadd.f32 0.0, %v3319
        %3321 = vdwg.mxu0
        %v3322 = vadd.f32 %v3205, %v3312
        %v3323 = vadd.f32 %v3206, %v3314
        %v3324 = vadd.f32 %v3207, %v3318
        %v3325 = vadd.f32 %v3208, %v3320
        %s3326 = scalar_lea.vmem %s7, 704
        %v3327 = vld [vmem:[%s3326] sm:$0xff]
        %v3328 = vld [vmem:[%s3326 + $0x8] sm:$0xff]
        %v3329 = vld [vmem:[%s3326 + $0x10] sm:$0xff]
        %v3330 = vld [vmem:[%s3326 + $0x18] sm:$0xff]
        %v3331 = vld [vmem:[%s3326 + $0x20] sm:$0xff]
        %v3332 = vld [vmem:[%s3326 + $0x28] sm:$0xff]
        %v3333 = vld [vmem:[%s3326 + $0x30] sm:$0xff]
        %v3334 = vld [vmem:[%s3326 + $0x38] sm:$0xff]
        %v3335 = vld [vmem:[%s3326 + $0x40] sm:$0xff]
        %v3336 = vld [vmem:[%s3326 + $0x48] sm:$0xff]
        %v3337 = vld [vmem:[%s3326 + $0x50] sm:$0xff]
        %v3338 = vld [vmem:[%s3326 + $0x58] sm:$0xff]
        %v3339 = vld [vmem:[%s3326 + $0x60] sm:$0xff]
        %v3340 = vld [vmem:[%s3326 + $0x68] sm:$0xff]
        %v3341 = vld [vmem:[%s3326 + $0x70] sm:$0xff]
        %v3342 = vld [vmem:[%s3326 + $0x78] sm:$0xff]
        %v3343 = vld [vmem:[%s3326 + $0x80] sm:$0xff]
        %v3344 = vld [vmem:[%s3326 + $0x88] sm:$0xff]
        %v3345 = vld [vmem:[%s3326 + $0x90] sm:$0xff]
        %v3346 = vld [vmem:[%s3326 + $0x98] sm:$0xff]
        %v3347 = vld [vmem:[%s3326 + $0xa0] sm:$0xf]
        %v3348 = vld [vmem:[%s3326 + $0xa8] sm:$0xf]
        %v3349 = vrot.slane %v2865, 4
        %v3350 = vrot.slane %v2866, 4
        %v3351 = vsel %vm1111, %v3349, %v3350
        %v3352 = vsel %vm2917, %v3351, 0
        %v3354 = vsel %vm2917, %v3350, 0
        %v3357 = vsel %vm1111, %v3347, 0
        %v3360 = vsel %vm1111, %v3348, 0
        %3362 = vmatprep.subr.mxu0 %v3328
        %3363 = vmatpush1.msra.mxu0 %v3327
        %3364 = vmatprep.subr.mxu0 %v3330
        %3365 = vmatpush1.msra.mxu0 %v3329
        %3366 = vmatprep.subr.mxu0 %v3332
        %3367 = vmatpush1.msra.mxu0 %v3331
        %3368 = vmatprep.subr.mxu0 %v3334
        %3369 = vmatpush1.msra.mxu0 %v3333
        %3370 = vmatprep.subr.mxu0 %v3336
        %3371 = vmatpush1.msra.mxu0 %v3335
        %3372 = vmatprep.subr.mxu0 %v3338
        %3373 = vmatpush1.msra.mxu0 %v3337
        %3374 = vmatprep.subr.mxu0 %v3340
        %3375 = vmatpush1.msra.mxu0 %v3339
        %3376 = vmatprep.subr.mxu0 %v3342
        %3377 = vmatpush1.msra.mxu0 %v3341
        %3378 = vmatprep.subr.mxu0 %v3344
        %3379 = vmatpush1.msra.mxu0 %v3343
        %3380 = vmatprep.subr.mxu0 %v3346
        %3381 = vmatpush1.msra.mxu0 %v3345
        %3382 = vmatprep.subr.mxu0 %v3360
        %3383 = vmatpush1.msra.mxu0 %v3357
        %3384 = vmatprep.subr.mxu0 0.0
        %3385 = vmatpush1.msra.mxu0 0.0
        %3386 = vmatprep.subr.mxu0 0.0
        %3387 = vmatpush1.msra.mxu0 0.0
        %3388 = vmatprep.subr.mxu0 0.0
        %3389 = vmatpush1.msra.mxu0 0.0
        %3390 = vmatprep.subr.mxu0 0.0
        %3391 = vmatpush1.msra.mxu0 0.0
        %3392 = vmatprep.subr.mxu0 0.0
        %3393 = vmatpush1.msra.mxu0 0.0
        %3394 = vmatprep.subr.mxu0 0.0
        %3395 = vmatpush1.msra.mxu0 0.0
        %3396 = vmatprep.subr.mxu0 0.0
        %3397 = vmatpush1.msra.mxu0 0.0
        %3398 = vmatprep.subr.mxu0 0.0
        %3399 = vmatpush1.msra.mxu0 0.0
        %3400 = vmatprep.subr.mxu0 0.0
        %3401 = vmatpush1.msra.mxu0 0.0
        %3402 = vmatprep.subr.mxu0 0.0
        %3403 = vmatpush1.msra.mxu0 0.0
        %3404 = vmatprep.subr.mxu0 0.0
        %3405 = vmatpush1.msra.mxu0 0.0
        %3406 = vmatprep.subr.mxu0 0.0
        %3407 = vmatpush1.msra.mxu0 0.0
        %3408 = vmatprep.subr.mxu0 0.0
        %3409 = vmatpush1.msra.mxu0 0.0
        %3410 = vmatprep.subr.mxu0 0.0
        %3411 = vmatpush1.msra.mxu0 0.0
        %3412 = vmatprep.subr.mxu0 0.0
        %3413 = vmatpush1.msra.mxu0 0.0
        %3414 = vmatprep.subr.mxu0 0.0
        %3415 = vmatpush1.msra.mxu0 0.0
        %3416 = vmatprep.subr.mxu0 0.0
        %3417 = vmatpush1.msra.mxu0 0.0
        %3418 = vmatprep.subr.mxu0 0.0
        %3419 = vmatpush1.msra.mxu0 0.0
        %3420 = vmatprep.subr.mxu0 0.0
        %3421 = vmatpush1.msra.mxu0 0.0
        %3422 = vmatprep.subr.mxu0 0.0
        %3423 = vmatpush1.msra.mxu0 0.0
        %3424 = vmatprep.subr.mxu0 0.0
        %3425 = vmatpush1.msra.mxu0 0.0
        %3426 = vmatprep.mubr.f32.mxu0 0.0
        %3427 = vmatmul.mubr.f32.gmra.mrb[0].mxu0 %v3352
        %v3428 = vpop.f32.mrb[0].mxu0
        %v3429 = vadd.f32 0.0, %v3428
        %v3430 = vpop.f32.mrb[0].mxu0
        %v3431 = vadd.f32 0.0, %v3430
        %3432 = vmatprep.mubr.f32.mxu0 0.0
        %3433 = vmatmul.mubr.f32.gmra.mrb[0].mxu0 %v3354
        %v3434 = vpop.f32.mrb[0].mxu0
        %v3435 = vadd.f32 0.0, %v3434
        %v3436 = vpop.f32.mrb[0].mxu0
        %v3437 = vadd.f32 0.0, %v3436
        %3438 = vdwg.mxu0
        %v3439 = vadd.f32 %v3322, %v3429
        %v3440 = vadd.f32 %v3323, %v3431
        %v3441 = vadd.f32 %v3324, %v3435
        %v3442 = vadd.f32 %v3325, %v3437
        %v3443 = vld [vmem:[%s8] sm:$0x3]
        %v3445 = vlaneseq
        %v3446 = vshrl.u32 %v3445, 7
        %v3447 = vsub.s32 0, %v3446
        %v3448 = vrot.slane %v3443, %v3447
        %v3449 = vlaneseq
        %v3450 = vshrl.u32 %v3449, 7
        %v3451 = vsub.s32 1, %v3450
        %v3452 = vrot.slane %v3443, %v3451
        %v3455 = vadd.f32 %v3439, %v3448
        %v3456 = vadd.f32 %v3440, %v3452
        %v3457 = vadd.f32 %v3441, %v3448
        %v3458 = vadd.f32 %v3442, %v3452
        %v3459 = vmax.f32 %v3455, 0.0
        %v3460 = vmax.f32 %v3456, 0.0
        %v3461 = vmax.f32 %v3457, 0.0
        %v3462 = vmax.f32 %v3458, 0.0
        %v3463 = vld [vmem:[#allocation2] sm:$0xff]
        %v3464 = vld [vmem:[#allocation2 + $0x8] sm:$0xff]
        %v3465 = vld [vmem:[#allocation2 + $0x10] sm:$0xff]
        %v3466 = vld [vmem:[#allocation2 + $0x18] sm:$0xff]
        %v3467 = vld [vmem:[#allocation2 + $0x20] sm:$0xff]
        %v3468 = vld [vmem:[#allocation2 + $0x28] sm:$0xff]
        %v3469 = vld [vmem:[#allocation2 + $0x30] sm:$0xff]
        %v3470 = vld [vmem:[#allocation2 + $0x38] sm:$0xff]
        %v3471 = vld [vmem:[#allocation2 + $0x40] sm:$0xff]
        %v3472 = vld [vmem:[#allocation2 + $0x48] sm:$0xff]
        %v3473 = vld [vmem:[#allocation2 + $0x50] sm:$0xff]
        %v3474 = vld [vmem:[#allocation2 + $0x58] sm:$0xff]
        %v3475 = vld [vmem:[#allocation2 + $0x60] sm:$0xff]
        %v3476 = vld [vmem:[#allocation2 + $0x68] sm:$0xff]
        %v3477 = vld [vmem:[#allocation2 + $0x70] sm:$0xff]
        %v3478 = vld [vmem:[#allocation2 + $0x78] sm:$0xff]
        %v3479 = vld [vmem:[#allocation2 + $0x80] sm:$0xff]
        %v3480 = vld [vmem:[#allocation2 + $0x88] sm:$0xff]
        %v3481 = vld [vmem:[#allocation2 + $0x90] sm:$0xff]
        %v3482 = vld [vmem:[#allocation2 + $0x98] sm:$0xff]
        %v3484 = vsel %vm663, %v3460, 0
        %v3487 = vsel %vm663, %v3462, 0
        %3489 = vmatprep.subr.mxu0 0.0
        %3490 = vmatpush1.msra.mxu0 %v3463
        %3491 = vmatprep.subr.mxu0 0.0
        %3492 = vmatpush1.msra.mxu0 %v3464
        %3493 = vmatprep.subr.mxu0 0.0
        %3494 = vmatpush1.msra.mxu0 %v3465
        %3495 = vmatprep.subr.mxu0 0.0
        %3496 = vmatpush1.msra.mxu0 %v3466
        %3497 = vmatprep.subr.mxu0 0.0
        %3498 = vmatpush1.msra.mxu0 %v3467
        %3499 = vmatprep.subr.mxu0 0.0
        %3500 = vmatpush1.msra.mxu0 %v3468
        %3501 = vmatprep.subr.mxu0 0.0
        %3502 = vmatpush1.msra.mxu0 %v3469
        %3503 = vmatprep.subr.mxu0 0.0
        %3504 = vmatpush1.msra.mxu0 %v3470
        %3505 = vmatprep.subr.mxu0 0.0
        %3506 = vmatpush1.msra.mxu0 %v3471
        %3507 = vmatprep.subr.mxu0 0.0
        %3508 = vmatpush1.msra.mxu0 %v3472
        %3509 = vmatprep.subr.mxu0 0.0
        %3510 = vmatpush1.msra.mxu0 %v3473
        %3511 = vmatprep.subr.mxu0 0.0
        %3512 = vmatpush1.msra.mxu0 %v3474
        %3513 = vmatprep.subr.mxu0 0.0
        %3514 = vmatpush1.msra.mxu0 %v3475
        %3515 = vmatprep.subr.mxu0 0.0
        %3516 = vmatpush1.msra.mxu0 %v3476
        %3517 = vmatprep.subr.mxu0 0.0
        %3518 = vmatpush1.msra.mxu0 %v3477
        %3519 = vmatprep.subr.mxu0 0.0
        %3520 = vmatpush1.msra.mxu0 %v3478
        %3521 = vmatprep.subr.mxu0 0.0
        %3522 = vmatpush1.msra.mxu0 %v3479
        %3523 = vmatprep.subr.mxu0 0.0
        %3524 = vmatpush1.msra.mxu0 %v3480
        %3525 = vmatprep.subr.mxu0 0.0
        %3526 = vmatpush1.msra.mxu0 %v3481
        %3527 = vmatprep.subr.mxu0 0.0
        %3528 = vmatpush1.msra.mxu0 %v3482
        %3529 = vmatprep.subr.mxu0 0.0
        %3530 = vmatpush1.msra.mxu0 0.0
        %3531 = vmatprep.subr.mxu0 0.0
        %3532 = vmatpush1.msra.mxu0 0.0
        %3533 = vmatprep.subr.mxu0 0.0
        %3534 = vmatpush1.msra.mxu0 0.0
        %3535 = vmatprep.subr.mxu0 0.0
        %3536 = vmatpush1.msra.mxu0 0.0
        %3537 = vmatprep.subr.mxu0 0.0
        %3538 = vmatpush1.msra.mxu0 0.0
        %3539 = vmatprep.subr.mxu0 0.0
        %3540 = vmatpush1.msra.mxu0 0.0
        %3541 = vmatprep.subr.mxu0 0.0
        %3542 = vmatpush1.msra.mxu0 0.0
        %3543 = vmatprep.subr.mxu0 0.0
        %3544 = vmatpush1.msra.mxu0 0.0
        %3545 = vmatprep.subr.mxu0 0.0
        %3546 = vmatpush1.msra.mxu0 0.0
        %3547 = vmatprep.subr.mxu0 0.0
        %3548 = vmatpush1.msra.mxu0 0.0
        %3549 = vmatprep.subr.mxu0 0.0
        %3550 = vmatpush1.msra.mxu0 0.0
        %3551 = vmatprep.subr.mxu0 0.0
        %3552 = vmatpush1.msra.mxu0 0.0
        %3553 = vmatprep.mubr.f32.mxu0 %v3484
        %3554 = vmatmul.mubr.f32.gmra.mrb[0].mxu0 %v3459
        %v3555 = vpop.f32.mrb[0].mxu0
        %v3556 = vadd.f32 0.0, %v3555
        %v3557 = vpop.f32.mrb[0].mxu0
        %3558 = vmatprep.mubr.f32.mxu0 %v3487
        %3559 = vmatmul.mubr.f32.gmra.mrb[0].mxu0 %v3461
        %v3560 = vpop.f32.mrb[0].mxu0
        %v3561 = vadd.f32 0.0, %v3560
        %v3562 = vpop.f32.mrb[0].mxu0
        %3563 = vdwg.mxu0
        %v3564 = vld [vmem:[#allocation5] sm:$0xff]
        %v3565 = vld [vmem:[#allocation5 + $0x8] sm:$0xff]
        %v3566 = vld [vmem:[#allocation5 + $0x10] sm:$0xff]
        %v3567 = vld [vmem:[#allocation5 + $0x18] sm:$0xff]
        %v3568 = vld [vmem:[#allocation5 + $0x20] sm:$0xff]
        %v3569 = vld [vmem:[#allocation5 + $0x28] sm:$0xff]
        %v3570 = vld [vmem:[#allocation5 + $0x30] sm:$0xff]
        %v3571 = vld [vmem:[#allocation5 + $0x38] sm:$0xff]
        %v3572 = vld [vmem:[#allocation5 + $0x40] sm:$0xff]
        %v3573 = vld [vmem:[#allocation5 + $0x48] sm:$0xff]
        %v3574 = vld [vmem:[#allocation5 + $0x50] sm:$0xff]
        %v3575 = vld [vmem:[#allocation5 + $0x58] sm:$0xff]
        %v3576 = vld [vmem:[#allocation5 + $0x60] sm:$0xff]
        %v3577 = vld [vmem:[#allocation5 + $0x68] sm:$0xff]
        %v3578 = vld [vmem:[#allocation5 + $0x70] sm:$0xff]
        %v3579 = vld [vmem:[#allocation5 + $0x78] sm:$0xff]
        %v3580 = vld [vmem:[#allocation5 + $0x80] sm:$0xff]
        %v3581 = vld [vmem:[#allocation5 + $0x88] sm:$0xff]
        %v3582 = vld [vmem:[#allocation5 + $0x90] sm:$0xff]
        %v3583 = vld [vmem:[#allocation5 + $0x98] sm:$0xff]
        %3584 = vmatprep.subr.mxu0 0.0
        %3585 = vmatpush1.msra.mxu0 %v3564
        %3586 = vmatprep.subr.mxu0 0.0
        %3587 = vmatpush1.msra.mxu0 %v3565
        %3588 = vmatprep.subr.mxu0 0.0
        %3589 = vmatpush1.msra.mxu0 %v3566
        %3590 = vmatprep.subr.mxu0 0.0
        %3591 = vmatpush1.msra.mxu0 %v3567
        %3592 = vmatprep.subr.mxu0 0.0
        %3593 = vmatpush1.msra.mxu0 %v3568
        %3594 = vmatprep.subr.mxu0 0.0
        %3595 = vmatpush1.msra.mxu0 %v3569
        %3596 = vmatprep.subr.mxu0 0.0
        %3597 = vmatpush1.msra.mxu0 %v3570
        %3598 = vmatprep.subr.mxu0 0.0
        %3599 = vmatpush1.msra.mxu0 %v3571
        %3600 = vmatprep.subr.mxu0 0.0
        %3601 = vmatpush1.msra.mxu0 %v3572
        %3602 = vmatprep.subr.mxu0 0.0
        %3603 = vmatpush1.msra.mxu0 %v3573
        %3604 = vmatprep.subr.mxu0 0.0
        %3605 = vmatpush1.msra.mxu0 %v3574
        %3606 = vmatprep.subr.mxu0 0.0
        %3607 = vmatpush1.msra.mxu0 %v3575
        %3608 = vmatprep.subr.mxu0 0.0
        %3609 = vmatpush1.msra.mxu0 %v3576
        %3610 = vmatprep.subr.mxu0 0.0
        %3611 = vmatpush1.msra.mxu0 %v3577
        %3612 = vmatprep.subr.mxu0 0.0
        %3613 = vmatpush1.msra.mxu0 %v3578
        %3614 = vmatprep.subr.mxu0 0.0
        %3615 = vmatpush1.msra.mxu0 %v3579
        %3616 = vmatprep.subr.mxu0 0.0
        %3617 = vmatpush1.msra.mxu0 %v3580
        %3618 = vmatprep.subr.mxu0 0.0
        %3619 = vmatpush1.msra.mxu0 %v3581
        %3620 = vmatprep.subr.mxu0 0.0
        %3621 = vmatpush1.msra.mxu0 %v3582
        %3622 = vmatprep.subr.mxu0 0.0
        %3623 = vmatpush1.msra.mxu0 %v3583
        %3624 = vmatprep.subr.mxu0 0.0
        %3625 = vmatpush1.msra.mxu0 0.0
        %3626 = vmatprep.subr.mxu0 0.0
        %3627 = vmatpush1.msra.mxu0 0.0
        %3628 = vmatprep.subr.mxu0 0.0
        %3629 = vmatpush1.msra.mxu0 0.0
        %3630 = vmatprep.subr.mxu0 0.0
        %3631 = vmatpush1.msra.mxu0 0.0
        %3632 = vmatprep.subr.mxu0 0.0
        %3633 = vmatpush1.msra.mxu0 0.0
        %3634 = vmatprep.subr.mxu0 0.0
        %3635 = vmatpush1.msra.mxu0 0.0
        %3636 = vmatprep.subr.mxu0 0.0
        %3637 = vmatpush1.msra.mxu0 0.0
        %3638 = vmatprep.subr.mxu0 0.0
        %3639 = vmatpush1.msra.mxu0 0.0
        %3640 = vmatprep.subr.mxu0 0.0
        %3641 = vmatpush1.msra.mxu0 0.0
        %3642 = vmatprep.subr.mxu0 0.0
        %3643 = vmatpush1.msra.mxu0 0.0
        %3644 = vmatprep.subr.mxu0 0.0
        %3645 = vmatpush1.msra.mxu0 0.0
        %3646 = vmatprep.subr.mxu0 0.0
        %3647 = vmatpush1.msra.mxu0 0.0
        %3648 = vmatprep.mubr.f32.mxu0 %v3484
        %3649 = vmatmul.mubr.f32.gmra.mrb[0].mxu0 %v3459
        %v3650 = vpop.f32.mrb[0].mxu0
        %v3651 = vadd.f32 0.0, %v3650
        %v3652 = vpop.f32.mrb[0].mxu0
        %3653 = vmatprep.mubr.f32.mxu0 %v3487
        %3654 = vmatmul.mubr.f32.gmra.mrb[0].mxu0 %v3461
        %v3655 = vpop.f32.mrb[0].mxu0
        %v3656 = vadd.f32 0.0, %v3655
        %v3657 = vpop.f32.mrb[0].mxu0
        %3658 = vdwg.mxu0
        %v3659 = vmax.f32 %v3556, %v3651
        %v3660 = vmax.f32 %v3561, %v3656
        %v3661 = vld [vmem:[%s9] sm:$0x1f]
        %vm3662 = vcmask 80896
        %v3664 = vsel %vm3662, %v3661, 0
        %vm3666 = vcmask 1041408
        %v3668 = vsel %vm3666, %v3660, 0
        %3670 = vmatprep.subr.mxu0 0.0
        %3671 = vmatpush1.msra.mxu0 %v3659
        %3672 = vmatprep.subr.mxu0 0.0
        %3673 = vmatpush1.msra.mxu0 %v3668
        %3674 = vmatprep.subr.mxu0 0.0
        %3675 = vmatpush1.msra.mxu0 0.0
        %3676 = vmatprep.subr.mxu0 0.0
        %3677 = vmatpush1.msra.mxu0 0.0
        %3678 = vmatprep.subr.mxu0 0.0
        %3679 = vmatpush1.msra.mxu0 0.0
        %3680 = vmatprep.subr.mxu0 0.0
        %3681 = vmatpush1.msra.mxu0 0.0
        %3682 = vmatprep.subr.mxu0 0.0
        %3683 = vmatpush1.msra.mxu0 0.0
        %3684 = vmatprep.subr.mxu0 0.0
        %3685 = vmatpush1.msra.mxu0 0.0
        %3686 = vmatprep.subr.mxu0 0.0
        %3687 = vmatpush1.msra.mxu0 0.0
        %3688 = vmatprep.subr.mxu0 0.0
        %3689 = vmatpush1.msra.mxu0 0.0
        %3690 = vmatprep.subr.mxu0 0.0
        %3691 = vmatpush1.msra.mxu0 0.0
        %3692 = vmatprep.subr.mxu0 0.0
        %3693 = vmatpush1.msra.mxu0 0.0
        %3694 = vmatprep.subr.mxu0 0.0
        %3695 = vmatpush1.msra.mxu0 0.0
        %3696 = vmatprep.subr.mxu0 0.0
        %3697 = vmatpush1.msra.mxu0 0.0
        %3698 = vmatprep.subr.mxu0 0.0
        %3699 = vmatpush1.msra.mxu0 0.0
        %3700 = vmatprep.subr.mxu0 0.0
        %3701 = vmatpush1.msra.mxu0 0.0
        %3702 = vmatprep.subr.mxu0 0.0
        %3703 = vmatpush1.msra.mxu0 0.0
        %3704 = vmatprep.subr.mxu0 0.0
        %3705 = vmatpush1.msra.mxu0 0.0
        %3706 = vmatprep.subr.mxu0 0.0
        %3707 = vmatpush1.msra.mxu0 0.0
        %3708 = vmatprep.subr.mxu0 0.0
        %3709 = vmatpush1.msra.mxu0 0.0
        %3710 = vmatprep.subr.mxu0 0.0
        %3711 = vmatpush1.msra.mxu0 0.0
        %3712 = vmatprep.subr.mxu0 0.0
        %3713 = vmatpush1.msra.mxu0 0.0
        %3714 = vmatprep.subr.mxu0 0.0
        %3715 = vmatpush1.msra.mxu0 0.0
        %3716 = vmatprep.subr.mxu0 0.0
        %3717 = vmatpush1.msra.mxu0 0.0
        %3718 = vmatprep.subr.mxu0 0.0
        %3719 = vmatpush1.msra.mxu0 0.0
        %3720 = vmatprep.subr.mxu0 0.0
        %3721 = vmatpush1.msra.mxu0 0.0
        %3722 = vmatprep.subr.mxu0 0.0
        %3723 = vmatpush1.msra.mxu0 0.0
        %3724 = vmatprep.subr.mxu0 0.0
        %3725 = vmatpush1.msra.mxu0 0.0
        %3726 = vmatprep.subr.mxu0 0.0
        %3727 = vmatpush1.msra.mxu0 0.0
        %3728 = vmatprep.subr.mxu0 0.0
        %3729 = vmatpush1.msra.mxu0 0.0
        %3730 = vmatprep.subr.mxu0 0.0
        %3731 = vmatpush1.msra.mxu0 0.0
        %3732 = vmatprep.subr.mxu0 0.0
        %3733 = vmatpush1.msra.mxu0 0.0
        %3734 = vmatprep.mubr.f32.mxu0 0.0
        %3735 = vmatmul.mubr.f32.gmra.mrb[0].mxu0 %v3664
        %v3736 = vpop.f32.mrb[0].mxu0
        %v3737 = vadd.f32 0.0, %v3736
        %v3738 = vpop.f32.mrb[0].mxu0
        %3739 = vdwg.mxu0
        %v3740 = vld [vmem:[%s10] sm:$0x1f]
        %v3742 = vsel %vm3662, %v3740, 0
        %3744 = vmatprep.subr.mxu0 0.0
        %3745 = vmatpush1.msra.mxu0 %v3659
        %3746 = vmatprep.subr.mxu0 0.0
        %3747 = vmatpush1.msra.mxu0 %v3668
        %3748 = vmatprep.subr.mxu0 0.0
        %3749 = vmatpush1.msra.mxu0 0.0
        %3750 = vmatprep.subr.mxu0 0.0
        %3751 = vmatpush1.msra.mxu0 0.0
        %3752 = vmatprep.subr.mxu0 0.0
        %3753 = vmatpush1.msra.mxu0 0.0
        %3754 = vmatprep.subr.mxu0 0.0
        %3755 = vmatpush1.msra.mxu0 0.0
        %3756 = vmatprep.subr.mxu0 0.0
        %3757 = vmatpush1.msra.mxu0 0.0
        %3758 = vmatprep.subr.mxu0 0.0
        %3759 = vmatpush1.msra.mxu0 0.0
        %3760 = vmatprep.subr.mxu0 0.0
        %3761 = vmatpush1.msra.mxu0 0.0
        %3762 = vmatprep.subr.mxu0 0.0
        %3763 = vmatpush1.msra.mxu0 0.0
        %3764 = vmatprep.subr.mxu0 0.0
        %3765 = vmatpush1.msra.mxu0 0.0
        %3766 = vmatprep.subr.mxu0 0.0
        %3767 = vmatpush1.msra.mxu0 0.0
        %3768 = vmatprep.subr.mxu0 0.0
        %3769 = vmatpush1.msra.mxu0 0.0
        %3770 = vmatprep.subr.mxu0 0.0
        %3771 = vmatpush1.msra.mxu0 0.0
        %3772 = vmatprep.subr.mxu0 0.0
        %3773 = vmatpush1.msra.mxu0 0.0
        %3774 = vmatprep.subr.mxu0 0.0
        %3775 = vmatpush1.msra.mxu0 0.0
        %3776 = vmatprep.subr.mxu0 0.0
        %3777 = vmatpush1.msra.mxu0 0.0
        %3778 = vmatprep.subr.mxu0 0.0
        %3779 = vmatpush1.msra.mxu0 0.0
        %3780 = vmatprep.subr.mxu0 0.0
        %3781 = vmatpush1.msra.mxu0 0.0
        %3782 = vmatprep.subr.mxu0 0.0
        %3783 = vmatpush1.msra.mxu0 0.0
        %3784 = vmatprep.subr.mxu0 0.0
        %3785 = vmatpush1.msra.mxu0 0.0
        %3786 = vmatprep.subr.mxu0 0.0
        %3787 = vmatpush1.msra.mxu0 0.0
        %3788 = vmatprep.subr.mxu0 0.0
        %3789 = vmatpush1.msra.mxu0 0.0
        %3790 = vmatprep.subr.mxu0 0.0
        %3791 = vmatpush1.msra.mxu0 0.0
        %3792 = vmatprep.subr.mxu0 0.0
        %3793 = vmatpush1.msra.mxu0 0.0
        %3794 = vmatprep.subr.mxu0 0.0
        %3795 = vmatpush1.msra.mxu0 0.0
        %3796 = vmatprep.subr.mxu0 0.0
        %3797 = vmatpush1.msra.mxu0 0.0
        %3798 = vmatprep.subr.mxu0 0.0
        %3799 = vmatpush1.msra.mxu0 0.0
        %3800 = vmatprep.subr.mxu0 0.0
        %3801 = vmatpush1.msra.mxu0 0.0
        %3802 = vmatprep.subr.mxu0 0.0
        %3803 = vmatpush1.msra.mxu0 0.0
        %3804 = vmatprep.subr.mxu0 0.0
        %3805 = vmatpush1.msra.mxu0 0.0
        %3806 = vmatprep.subr.mxu0 0.0
        %3807 = vmatpush1.msra.mxu0 0.0
        %3808 = vmatprep.mubr.f32.mxu0 0.0
        %3809 = vmatmul.mubr.f32.gmra.mrb[0].mxu0 %v3742
        %v3810 = vpop.f32.mrb[0].mxu0
        %v3811 = vadd.f32 0.0, %v3810
        %v3812 = vpop.f32.mrb[0].mxu0
        %3813 = vdwg.mxu0
        %v3814 = vmax.f32 %v3737, %v3811
        %v3815 = vld [vmem:[%s13] sm:$0xff]
        %v3816 = vld [vmem:[%s13 + $0x8] sm:$0xff]
        %v3817 = vld [vmem:[%s13 + $0x10] sm:$0xff]
        %v3818 = vld [vmem:[%s13 + $0x18] sm:$0xff]
        %v3819 = vld [vmem:[%s13 + $0x20] sm:$0xff]
        %v3820 = vld [vmem:[%s13 + $0x28] sm:$0xff]
        %v3821 = vld [vmem:[%s13 + $0x30] sm:$0xff]
        %v3822 = vld [vmem:[%s13 + $0x38] sm:$0xff]
        %v3823 = vld [vmem:[%s13 + $0x40] sm:$0xff]
        %v3824 = vld [vmem:[%s13 + $0x48] sm:$0xff]
        %s3825 = scalar_lea.vmem %s13, 80
        %v3826 = vld [vmem:[%s3825] sm:$0xff]
        %v3827 = vld [vmem:[%s3825 + $0x8] sm:$0xff]
        %v3828 = vld [vmem:[%s3825 + $0x10] sm:$0xff]
        %v3829 = vld [vmem:[%s3825 + $0x18] sm:$0xff]
        %v3830 = vld [vmem:[%s3825 + $0x20] sm:$0xff]
        %v3831 = vld [vmem:[%s3825 + $0x28] sm:$0xff]
        %v3832 = vld [vmem:[%s3825 + $0x30] sm:$0xff]
        %v3833 = vld [vmem:[%s3825 + $0x38] sm:$0xff]
        %v3834 = vld [vmem:[%s3825 + $0x40] sm:$0xff]
        %v3835 = vld [vmem:[%s3825 + $0x48] sm:$0xff]
        %v3837 = vrot.slane %v3814, 1
        %vm3838 = vcmask 654336
        %v3839 = vsel %vm3838, %v3837, 0
        %3841 = vmatprep.subr.mxu0 0.0
        %3842 = vmatpush1.msra.mxu0 %v3826
        %3843 = vmatprep.subr.mxu0 0.0
        %3844 = vmatpush1.msra.mxu0 %v3827
        %3845 = vmatprep.subr.mxu0 0.0
        %3846 = vmatpush1.msra.mxu0 %v3828
        %3847 = vmatprep.subr.mxu0 0.0
        %3848 = vmatpush1.msra.mxu0 %v3829
        %3849 = vmatprep.subr.mxu0 0.0
        %3850 = vmatpush1.msra.mxu0 %v3830
        %3851 = vmatprep.subr.mxu0 0.0
        %3852 = vmatpush1.msra.mxu0 %v3831
        %3853 = vmatprep.subr.mxu0 0.0
        %3854 = vmatpush1.msra.mxu0 %v3832
        %3855 = vmatprep.subr.mxu0 0.0
        %3856 = vmatpush1.msra.mxu0 %v3833
        %3857 = vmatprep.subr.mxu0 0.0
        %3858 = vmatpush1.msra.mxu0 %v3834
        %3859 = vmatprep.subr.mxu0 0.0
        %3860 = vmatpush1.msra.mxu0 %v3835
        %3861 = vmatprep.subr.mxu0 0.0
        %3862 = vmatpush1.msra.mxu0 0.0
        %3863 = vmatprep.subr.mxu0 0.0
        %3864 = vmatpush1.msra.mxu0 0.0
        %3865 = vmatprep.subr.mxu0 0.0
        %3866 = vmatpush1.msra.mxu0 0.0
        %3867 = vmatprep.subr.mxu0 0.0
        %3868 = vmatpush1.msra.mxu0 0.0
        %3869 = vmatprep.subr.mxu0 0.0
        %3870 = vmatpush1.msra.mxu0 0.0
        %3871 = vmatprep.subr.mxu0 0.0
        %3872 = vmatpush1.msra.mxu0 0.0
        %3873 = vmatprep.subr.mxu0 0.0
        %3874 = vmatpush1.msra.mxu0 0.0
        %3875 = vmatprep.subr.mxu0 0.0
        %3876 = vmatpush1.msra.mxu0 0.0
        %3877 = vmatprep.subr.mxu0 0.0
        %3878 = vmatpush1.msra.mxu0 0.0
        %3879 = vmatprep.subr.mxu0 0.0
        %3880 = vmatpush1.msra.mxu0 0.0
        %3881 = vmatprep.subr.mxu0 0.0
        %3882 = vmatpush1.msra.mxu0 0.0
        %3883 = vmatprep.subr.mxu0 0.0
        %3884 = vmatpush1.msra.mxu0 0.0
        %3885 = vmatprep.subr.mxu0 0.0
        %3886 = vmatpush1.msra.mxu0 0.0
        %3887 = vmatprep.subr.mxu0 0.0
        %3888 = vmatpush1.msra.mxu0 0.0
        %3889 = vmatprep.subr.mxu0 0.0
        %3890 = vmatpush1.msra.mxu0 0.0
        %3891 = vmatprep.subr.mxu0 0.0
        %3892 = vmatpush1.msra.mxu0 0.0
        %3893 = vmatprep.subr.mxu0 0.0
        %3894 = vmatpush1.msra.mxu0 0.0
        %3895 = vmatprep.subr.mxu0 0.0
        %3896 = vmatpush1.msra.mxu0 0.0
        %3897 = vmatprep.subr.mxu0 0.0
        %3898 = vmatpush1.msra.mxu0 0.0
        %3899 = vmatprep.subr.mxu0 0.0
        %3900 = vmatpush1.msra.mxu0 0.0
        %3901 = vmatprep.subr.mxu0 0.0
        %3902 = vmatpush1.msra.mxu0 0.0
        %3903 = vmatprep.subr.mxu0 0.0
        %3904 = vmatpush1.msra.mxu0 0.0
        %3905 = vmatprep.mubr.f32.mxu0 0.0
        %3906 = vmatmul.mubr.f32.gmra.mrb[0].mxu0 %v3839
        %v3907 = vpop.f32.mrb[0].mxu0
        %v3908 = vadd.f32 0.0, %v3907
        %v3909 = vpop.f32.mrb[0].mxu0
        %3910 = vdwg.mxu0
        %v3911 = vsel %vm3838, %v3814, 0
        %3913 = vmatprep.subr.mxu0 0.0
        %3914 = vmatpush1.msra.mxu0 %v3815
        %3915 = vmatprep.subr.mxu0 0.0
        %3916 = vmatpush1.msra.mxu0 %v3816
        %3917 = vmatprep.subr.mxu0 0.0
        %3918 = vmatpush1.msra.mxu0 %v3817
        %3919 = vmatprep.subr.mxu0 0.0
        %3920 = vmatpush1.msra.mxu0 %v3818
        %3921 = vmatprep.subr.mxu0 0.0
        %3922 = vmatpush1.msra.mxu0 %v3819
        %3923 = vmatprep.subr.mxu0 0.0
        %3924 = vmatpush1.msra.mxu0 %v3820
        %3925 = vmatprep.subr.mxu0 0.0
        %3926 = vmatpush1.msra.mxu0 %v3821
        %3927 = vmatprep.subr.mxu0 0.0
        %3928 = vmatpush1.msra.mxu0 %v3822
        %3929 = vmatprep.subr.mxu0 0.0
        %3930 = vmatpush1.msra.mxu0 %v3823
        %3931 = vmatprep.subr.mxu0 0.0
        %3932 = vmatpush1.msra.mxu0 %v3824
        %3933 = vmatprep.subr.mxu0 0.0
        %3934 = vmatpush1.msra.mxu0 0.0
        %3935 = vmatprep.subr.mxu0 0.0
        %3936 = vmatpush1.msra.mxu0 0.0
        %3937 = vmatprep.subr.mxu0 0.0
        %3938 = vmatpush1.msra.mxu0 0.0
        %3939 = vmatprep.subr.mxu0 0.0
        %3940 = vmatpush1.msra.mxu0 0.0
        %3941 = vmatprep.subr.mxu0 0.0
        %3942 = vmatpush1.msra.mxu0 0.0
        %3943 = vmatprep.subr.mxu0 0.0
        %3944 = vmatpush1.msra.mxu0 0.0
        %3945 = vmatprep.subr.mxu0 0.0
        %3946 = vmatpush1.msra.mxu0 0.0
        %3947 = vmatprep.subr.mxu0 0.0
        %3948 = vmatpush1.msra.mxu0 0.0
        %3949 = vmatprep.subr.mxu0 0.0
        %3950 = vmatpush1.msra.mxu0 0.0
        %3951 = vmatprep.subr.mxu0 0.0
        %3952 = vmatpush1.msra.mxu0 0.0
        %3953 = vmatprep.subr.mxu0 0.0
        %3954 = vmatpush1.msra.mxu0 0.0
        %3955 = vmatprep.subr.mxu0 0.0
        %3956 = vmatpush1.msra.mxu0 0.0
        %3957 = vmatprep.subr.mxu0 0.0
        %3958 = vmatpush1.msra.mxu0 0.0
        %3959 = vmatprep.subr.mxu0 0.0
        %3960 = vmatpush1.msra.mxu0 0.0
        %3961 = vmatprep.subr.mxu0 0.0
        %3962 = vmatpush1.msra.mxu0 0.0
        %3963 = vmatprep.subr.mxu0 0.0
        %3964 = vmatpush1.msra.mxu0 0.0
        %3965 = vmatprep.subr.mxu0 0.0
        %3966 = vmatpush1.msra.mxu0 0.0
        %3967 = vmatprep.subr.mxu0 0.0
        %3968 = vmatpush1.msra.mxu0 0.0
        %3969 = vmatprep.subr.mxu0 0.0
        %3970 = vmatpush1.msra.mxu0 0.0
        %3971 = vmatprep.subr.mxu0 0.0
        %3972 = vmatpush1.msra.mxu0 0.0
        %3973 = vmatprep.subr.mxu0 0.0
        %3974 = vmatpush1.msra.mxu0 0.0
        %3975 = vmatprep.subr.mxu0 0.0
        %3976 = vmatpush1.msra.mxu0 0.0
        %3977 = vmatprep.mubr.f32.mxu0 0.0
        %3978 = vmatmul.mubr.f32.gmra.mrb[0].mxu0 %v3911
        %v3979 = vpop.f32.mrb[0].mxu0
        %v3980 = vadd.f32 %v3908, %v3979
        %v3981 = vpop.f32.mrb[0].mxu0
        %3982 = vdwg.mxu0
        %s3983 = scalar_lea.vmem %s13, 160
        %v3984 = vld [vmem:[%s3983] sm:$0xff]
        %v3985 = vld [vmem:[%s3983 + $0x8] sm:$0xff]
        %v3986 = vld [vmem:[%s3983 + $0x10] sm:$0xff]
        %v3987 = vld [vmem:[%s3983 + $0x18] sm:$0xff]
        %v3988 = vld [vmem:[%s3983 + $0x20] sm:$0xff]
        %v3989 = vld [vmem:[%s3983 + $0x28] sm:$0xff]
        %v3990 = vld [vmem:[%s3983 + $0x30] sm:$0xff]
        %v3991 = vld [vmem:[%s3983 + $0x38] sm:$0xff]
        %v3992 = vld [vmem:[%s3983 + $0x40] sm:$0xff]
        %v3993 = vld [vmem:[%s3983 + $0x48] sm:$0xff]
        %v3994 = vrot.slane %v3814, 2
        %v3995 = vsel %vm3838, %v3994, 0
        %3997 = vmatprep.subr.mxu0 0.0
        %3998 = vmatpush1.msra.mxu0 %v3984
        %3999 = vmatprep.subr.mxu0 0.0
        %4000 = vmatpush1.msra.mxu0 %v3985
        %4001 = vmatprep.subr.mxu0 0.0
        %4002 = vmatpush1.msra.mxu0 %v3986
        %4003 = vmatprep.subr.mxu0 0.0
        %4004 = vmatpush1.msra.mxu0 %v3987
        %4005 = vmatprep.subr.mxu0 0.0
        %4006 = vmatpush1.msra.mxu0 %v3988
        %4007 = vmatprep.subr.mxu0 0.0
        %4008 = vmatpush1.msra.mxu0 %v3989
        %4009 = vmatprep.subr.mxu0 0.0
        %4010 = vmatpush1.msra.mxu0 %v3990
        %4011 = vmatprep.subr.mxu0 0.0
        %4012 = vmatpush1.msra.mxu0 %v3991
        %4013 = vmatprep.subr.mxu0 0.0
        %4014 = vmatpush1.msra.mxu0 %v3992
        %4015 = vmatprep.subr.mxu0 0.0
        %4016 = vmatpush1.msra.mxu0 %v3993
        %4017 = vmatprep.subr.mxu0 0.0
        %4018 = vmatpush1.msra.mxu0 0.0
        %4019 = vmatprep.subr.mxu0 0.0
        %4020 = vmatpush1.msra.mxu0 0.0
        %4021 = vmatprep.subr.mxu0 0.0
        %4022 = vmatpush1.msra.mxu0 0.0
        %4023 = vmatprep.subr.mxu0 0.0
        %4024 = vmatpush1.msra.mxu0 0.0
        %4025 = vmatprep.subr.mxu0 0.0
        %4026 = vmatpush1.msra.mxu0 0.0
        %4027 = vmatprep.subr.mxu0 0.0
        %4028 = vmatpush1.msra.mxu0 0.0
        %4029 = vmatprep.subr.mxu0 0.0
        %4030 = vmatpush1.msra.mxu0 0.0
        %4031 = vmatprep.subr.mxu0 0.0
        %4032 = vmatpush1.msra.mxu0 0.0
        %4033 = vmatprep.subr.mxu0 0.0
        %4034 = vmatpush1.msra.mxu0 0.0
        %4035 = vmatprep.subr.mxu0 0.0
        %4036 = vmatpush1.msra.mxu0 0.0
        %4037 = vmatprep.subr.mxu0 0.0
        %4038 = vmatpush1.msra.mxu0 0.0
        %4039 = vmatprep.subr.mxu0 0.0
        %4040 = vmatpush1.msra.mxu0 0.0
        %4041 = vmatprep.subr.mxu0 0.0
        %4042 = vmatpush1.msra.mxu0 0.0
        %4043 = vmatprep.subr.mxu0 0.0
        %4044 = vmatpush1.msra.mxu0 0.0
        %4045 = vmatprep.subr.mxu0 0.0
        %4046 = vmatpush1.msra.mxu0 0.0
        %4047 = vmatprep.subr.mxu0 0.0
        %4048 = vmatpush1.msra.mxu0 0.0
        %4049 = vmatprep.subr.mxu0 0.0
        %4050 = vmatpush1.msra.mxu0 0.0
        %4051 = vmatprep.subr.mxu0 0.0
        %4052 = vmatpush1.msra.mxu0 0.0
        %4053 = vmatprep.subr.mxu0 0.0
        %4054 = vmatpush1.msra.mxu0 0.0
        %4055 = vmatprep.subr.mxu0 0.0
        %4056 = vmatpush1.msra.mxu0 0.0
        %4057 = vmatprep.subr.mxu0 0.0
        %4058 = vmatpush1.msra.mxu0 0.0
        %4059 = vmatprep.subr.mxu0 0.0
        %4060 = vmatpush1.msra.mxu0 0.0
        %4061 = vmatprep.mubr.f32.mxu0 0.0
        %4062 = vmatmul.mubr.f32.gmra.mrb[0].mxu0 %v3995
        %v4063 = vpop.f32.mrb[0].mxu0
        %v4064 = vadd.f32 0.0, %v4063
        %v4065 = vpop.f32.mrb[0].mxu0
        %4066 = vdwg.mxu0
        %v4067 = vadd.f32 %v3980, %v4064
        %s4068 = scalar_lea.vmem %s13, 240
        %v4069 = vld [vmem:[%s4068] sm:$0xff]
        %v4070 = vld [vmem:[%s4068 + $0x8] sm:$0xff]
        %v4071 = vld [vmem:[%s4068 + $0x10] sm:$0xff]
        %v4072 = vld [vmem:[%s4068 + $0x18] sm:$0xff]
        %v4073 = vld [vmem:[%s4068 + $0x20] sm:$0xff]
        %v4074 = vld [vmem:[%s4068 + $0x28] sm:$0xff]
        %v4075 = vld [vmem:[%s4068 + $0x30] sm:$0xff]
        %v4076 = vld [vmem:[%s4068 + $0x38] sm:$0xff]
        %v4077 = vld [vmem:[%s4068 + $0x40] sm:$0xff]
        %v4078 = vld [vmem:[%s4068 + $0x48] sm:$0xff]
        %v4079 = vrot.slane %v3814, 3
        %v4080 = vsel %vm3838, %v4079, 0
        %4082 = vmatprep.subr.mxu0 0.0
        %4083 = vmatpush1.msra.mxu0 %v4069
        %4084 = vmatprep.subr.mxu0 0.0
        %4085 = vmatpush1.msra.mxu0 %v4070
        %4086 = vmatprep.subr.mxu0 0.0
        %4087 = vmatpush1.msra.mxu0 %v4071
        %4088 = vmatprep.subr.mxu0 0.0
        %4089 = vmatpush1.msra.mxu0 %v4072
        %4090 = vmatprep.subr.mxu0 0.0
        %4091 = vmatpush1.msra.mxu0 %v4073
        %4092 = vmatprep.subr.mxu0 0.0
        %4093 = vmatpush1.msra.mxu0 %v4074
        %4094 = vmatprep.subr.mxu0 0.0
        %4095 = vmatpush1.msra.mxu0 %v4075
        %4096 = vmatprep.subr.mxu0 0.0
        %4097 = vmatpush1.msra.mxu0 %v4076
        %4098 = vmatprep.subr.mxu0 0.0
        %4099 = vmatpush1.msra.mxu0 %v4077
        %4100 = vmatprep.subr.mxu0 0.0
        %4101 = vmatpush1.msra.mxu0 %v4078
        %4102 = vmatprep.subr.mxu0 0.0
        %4103 = vmatpush1.msra.mxu0 0.0
        %4104 = vmatprep.subr.mxu0 0.0
        %4105 = vmatpush1.msra.mxu0 0.0
        %4106 = vmatprep.subr.mxu0 0.0
        %4107 = vmatpush1.msra.mxu0 0.0
        %4108 = vmatprep.subr.mxu0 0.0
        %4109 = vmatpush1.msra.mxu0 0.0
        %4110 = vmatprep.subr.mxu0 0.0
        %4111 = vmatpush1.msra.mxu0 0.0
        %4112 = vmatprep.subr.mxu0 0.0
        %4113 = vmatpush1.msra.mxu0 0.0
        %4114 = vmatprep.subr.mxu0 0.0
        %4115 = vmatpush1.msra.mxu0 0.0
        %4116 = vmatprep.subr.mxu0 0.0
        %4117 = vmatpush1.msra.mxu0 0.0
        %4118 = vmatprep.subr.mxu0 0.0
        %4119 = vmatpush1.msra.mxu0 0.0
        %4120 = vmatprep.subr.mxu0 0.0
        %4121 = vmatpush1.msra.mxu0 0.0
        %4122 = vmatprep.subr.mxu0 0.0
        %4123 = vmatpush1.msra.mxu0 0.0
        %4124 = vmatprep.subr.mxu0 0.0
        %4125 = vmatpush1.msra.mxu0 0.0
        %4126 = vmatprep.subr.mxu0 0.0
        %4127 = vmatpush1.msra.mxu0 0.0
        %4128 = vmatprep.subr.mxu0 0.0
        %4129 = vmatpush1.msra.mxu0 0.0
        %4130 = vmatprep.subr.mxu0 0.0
        %4131 = vmatpush1.msra.mxu0 0.0
        %4132 = vmatprep.subr.mxu0 0.0
        %4133 = vmatpush1.msra.mxu0 0.0
        %4134 = vmatprep.subr.mxu0 0.0
        %4135 = vmatpush1.msra.mxu0 0.0
        %4136 = vmatprep.subr.mxu0 0.0
        %4137 = vmatpush1.msra.mxu0 0.0
        %4138 = vmatprep.subr.mxu0 0.0
        %4139 = vmatpush1.msra.mxu0 0.0
        %4140 = vmatprep.subr.mxu0 0.0
        %4141 = vmatpush1.msra.mxu0 0.0
        %4142 = vmatprep.subr.mxu0 0.0
        %4143 = vmatpush1.msra.mxu0 0.0
        %4144 = vmatprep.subr.mxu0 0.0
        %4145 = vmatpush1.msra.mxu0 0.0
        %4146 = vmatprep.mubr.f32.mxu0 0.0
        %4147 = vmatmul.mubr.f32.gmra.mrb[0].mxu0 %v4080
        %v4148 = vpop.f32.mrb[0].mxu0
        %v4149 = vadd.f32 0.0, %v4148
        %v4150 = vpop.f32.mrb[0].mxu0
        %4151 = vdwg.mxu0
        %v4152 = vadd.f32 %v4067, %v4149
        %s4153 = scalar_lea.vmem %s13, 320
        %v4154 = vld [vmem:[%s4153] sm:$0xff]
        %v4155 = vld [vmem:[%s4153 + $0x8] sm:$0xff]
        %v4156 = vld [vmem:[%s4153 + $0x10] sm:$0xff]
        %v4157 = vld [vmem:[%s4153 + $0x18] sm:$0xff]
        %v4158 = vld [vmem:[%s4153 + $0x20] sm:$0xff]
        %v4159 = vld [vmem:[%s4153 + $0x28] sm:$0xff]
        %v4160 = vld [vmem:[%s4153 + $0x30] sm:$0xff]
        %v4161 = vld [vmem:[%s4153 + $0x38] sm:$0xff]
        %v4162 = vld [vmem:[%s4153 + $0x40] sm:$0xff]
        %v4163 = vld [vmem:[%s4153 + $0x48] sm:$0xff]
        %v4164 = vrot.slane %v3814, 4
        %v4165 = vsel %vm3838, %v4164, 0
        %4167 = vmatprep.subr.mxu0 0.0
        %4168 = vmatpush1.msra.mxu0 %v4154
        %4169 = vmatprep.subr.mxu0 0.0
        %4170 = vmatpush1.msra.mxu0 %v4155
        %4171 = vmatprep.subr.mxu0 0.0
        %4172 = vmatpush1.msra.mxu0 %v4156
        %4173 = vmatprep.subr.mxu0 0.0
        %4174 = vmatpush1.msra.mxu0 %v4157
        %4175 = vmatprep.subr.mxu0 0.0
        %4176 = vmatpush1.msra.mxu0 %v4158
        %4177 = vmatprep.subr.mxu0 0.0
        %4178 = vmatpush1.msra.mxu0 %v4159
        %4179 = vmatprep.subr.mxu0 0.0
        %4180 = vmatpush1.msra.mxu0 %v4160
        %4181 = vmatprep.subr.mxu0 0.0
        %4182 = vmatpush1.msra.mxu0 %v4161
        %4183 = vmatprep.subr.mxu0 0.0
        %4184 = vmatpush1.msra.mxu0 %v4162
        %4185 = vmatprep.subr.mxu0 0.0
        %4186 = vmatpush1.msra.mxu0 %v4163
        %4187 = vmatprep.subr.mxu0 0.0
        %4188 = vmatpush1.msra.mxu0 0.0
        %4189 = vmatprep.subr.mxu0 0.0
        %4190 = vmatpush1.msra.mxu0 0.0
        %4191 = vmatprep.subr.mxu0 0.0
        %4192 = vmatpush1.msra.mxu0 0.0
        %4193 = vmatprep.subr.mxu0 0.0
        %4194 = vmatpush1.msra.mxu0 0.0
        %4195 = vmatprep.subr.mxu0 0.0
        %4196 = vmatpush1.msra.mxu0 0.0
        %4197 = vmatprep.subr.mxu0 0.0
        %4198 = vmatpush1.msra.mxu0 0.0
        %4199 = vmatprep.subr.mxu0 0.0
        %4200 = vmatpush1.msra.mxu0 0.0
        %4201 = vmatprep.subr.mxu0 0.0
        %4202 = vmatpush1.msra.mxu0 0.0
        %4203 = vmatprep.subr.mxu0 0.0
        %4204 = vmatpush1.msra.mxu0 0.0
        %4205 = vmatprep.subr.mxu0 0.0
        %4206 = vmatpush1.msra.mxu0 0.0
        %4207 = vmatprep.subr.mxu0 0.0
        %4208 = vmatpush1.msra.mxu0 0.0
        %4209 = vmatprep.subr.mxu0 0.0
        %4210 = vmatpush1.msra.mxu0 0.0
        %4211 = vmatprep.subr.mxu0 0.0
        %4212 = vmatpush1.msra.mxu0 0.0
        %4213 = vmatprep.subr.mxu0 0.0
        %4214 = vmatpush1.msra.mxu0 0.0
        %4215 = vmatprep.subr.mxu0 0.0
        %4216 = vmatpush1.msra.mxu0 0.0
        %4217 = vmatprep.subr.mxu0 0.0
        %4218 = vmatpush1.msra.mxu0 0.0
        %4219 = vmatprep.subr.mxu0 0.0
        %4220 = vmatpush1.msra.mxu0 0.0
        %4221 = vmatprep.subr.mxu0 0.0
        %4222 = vmatpush1.msra.mxu0 0.0
        %4223 = vmatprep.subr.mxu0 0.0
        %4224 = vmatpush1.msra.mxu0 0.0
        %4225 = vmatprep.subr.mxu0 0.0
        %4226 = vmatpush1.msra.mxu0 0.0
        %4227 = vmatprep.subr.mxu0 0.0
        %4228 = vmatpush1.msra.mxu0 0.0
        %4229 = vmatprep.subr.mxu0 0.0
        %4230 = vmatpush1.msra.mxu0 0.0
        %4231 = vmatprep.mubr.f32.mxu0 0.0
        %4232 = vmatmul.mubr.f32.gmra.mrb[0].mxu0 %v4165
        %v4233 = vpop.f32.mrb[0].mxu0
        %v4234 = vadd.f32 0.0, %v4233
        %v4235 = vpop.f32.mrb[0].mxu0
        %4236 = vdwg.mxu0
        %v4237 = vadd.f32 %v4152, %v4234
        %v4238 = vld [vmem:[%s14] sm:$0x1]
        %v4239 = vadd.f32 %v4237, %v4238
        %v4240 = vmax.f32 %v4239, 0.0
        %v4241 = vld [vmem:[%s15] sm:$0xff]
        %v4242 = vld [vmem:[%s15 + $0x8] sm:$0xff]
        %v4243 = vld [vmem:[%s15 + $0x10] sm:$0xff]
        %v4244 = vld [vmem:[%s15 + $0x18] sm:$0xff]
        %v4245 = vld [vmem:[%s15 + $0x20] sm:$0xff]
        %v4246 = vld [vmem:[%s15 + $0x28] sm:$0xff]
        %v4247 = vld [vmem:[%s15 + $0x30] sm:$0xff]
        %v4248 = vld [vmem:[%s15 + $0x38] sm:$0xff]
        %v4249 = vld [vmem:[%s15 + $0x40] sm:$0xff]
        %v4250 = vld [vmem:[%s15 + $0x48] sm:$0xff]
        %v4251 = vld [vmem:[%s15 + $0x50] sm:$0xff]
        %v4252 = vld [vmem:[%s15 + $0x58] sm:$0xff]
        %v4253 = vld [vmem:[%s15 + $0x60] sm:$0xff]
        %v4254 = vld [vmem:[%s15 + $0x68] sm:$0xff]
        %v4255 = vld [vmem:[%s15 + $0x70] sm:$0xff]
        %v4256 = vld [vmem:[%s16] sm:$0x1]
        %vm4257 = vcmask 982016
        %v4259 = vsel %vm4257, %v4240, 0
        %4261 = vmatprep.subr.mxu0 0.0
        %4262 = vmatpush1.msra.mxu0 %v4241
        %4263 = vmatprep.subr.mxu0 0.0
        %4264 = vmatpush1.msra.mxu0 %v4242
        %4265 = vmatprep.subr.mxu0 0.0
        %4266 = vmatpush1.msra.mxu0 %v4243
        %4267 = vmatprep.subr.mxu0 0.0
        %4268 = vmatpush1.msra.mxu0 %v4244
        %4269 = vmatprep.subr.mxu0 0.0
        %4270 = vmatpush1.msra.mxu0 %v4245
        %4271 = vmatprep.subr.mxu0 0.0
        %4272 = vmatpush1.msra.mxu0 %v4246
        %4273 = vmatprep.subr.mxu0 0.0
        %4274 = vmatpush1.msra.mxu0 %v4247
        %4275 = vmatprep.subr.mxu0 0.0
        %4276 = vmatpush1.msra.mxu0 %v4248
        %4277 = vmatprep.subr.mxu0 0.0
        %4278 = vmatpush1.msra.mxu0 %v4249
        %4279 = vmatprep.subr.mxu0 0.0
        %4280 = vmatpush1.msra.mxu0 %v4250
        %4281 = vmatprep.subr.mxu0 0.0
        %4282 = vmatpush1.msra.mxu0 %v4251
        %4283 = vmatprep.subr.mxu0 0.0
        %4284 = vmatpush1.msra.mxu0 %v4252
        %4285 = vmatprep.subr.mxu0 0.0
        %4286 = vmatpush1.msra.mxu0 %v4253
        %4287 = vmatprep.subr.mxu0 0.0
        %4288 = vmatpush1.msra.mxu0 %v4254
        %4289 = vmatprep.subr.mxu0 0.0
        %4290 = vmatpush1.msra.mxu0 %v4255
        %4291 = vmatprep.subr.mxu0 0.0
        %4292 = vmatpush1.msra.mxu0 0.0
        %4293 = vmatprep.subr.mxu0 0.0
        %4294 = vmatpush1.msra.mxu0 0.0
        %4295 = vmatprep.subr.mxu0 0.0
        %4296 = vmatpush1.msra.mxu0 0.0
        %4297 = vmatprep.subr.mxu0 0.0
        %4298 = vmatpush1.msra.mxu0 0.0
        %4299 = vmatprep.subr.mxu0 0.0
        %4300 = vmatpush1.msra.mxu0 0.0
        %4301 = vmatprep.subr.mxu0 0.0
        %4302 = vmatpush1.msra.mxu0 0.0
        %4303 = vmatprep.subr.mxu0 0.0
        %4304 = vmatpush1.msra.mxu0 0.0
        %4305 = vmatprep.subr.mxu0 0.0
        %4306 = vmatpush1.msra.mxu0 0.0
        %4307 = vmatprep.subr.mxu0 0.0
        %4308 = vmatpush1.msra.mxu0 0.0
        %4309 = vmatprep.subr.mxu0 0.0
        %4310 = vmatpush1.msra.mxu0 0.0
        %4311 = vmatprep.subr.mxu0 0.0
        %4312 = vmatpush1.msra.mxu0 0.0
        %4313 = vmatprep.subr.mxu0 0.0
        %4314 = vmatpush1.msra.mxu0 0.0
        %4315 = vmatprep.subr.mxu0 0.0
        %4316 = vmatpush1.msra.mxu0 0.0
        %4317 = vmatprep.subr.mxu0 0.0
        %4318 = vmatpush1.msra.mxu0 0.0
        %4319 = vmatprep.subr.mxu0 0.0
        %4320 = vmatpush1.msra.mxu0 0.0
        %4321 = vmatprep.subr.mxu0 0.0
        %4322 = vmatpush1.msra.mxu0 0.0
        %4323 = vmatprep.subr.mxu0 0.0
        %4324 = vmatpush1.msra.mxu0 0.0
        %4325 = vmatprep.mubr.f32.mxu0 0.0
        %4326 = vmatmul.mubr.f32.gmra.mrb[0].mxu0 %v4259
        %v4327 = vpop.f32.mrb[0].mxu0
        %v4328 = vadd.f32 %v4256, %v4327
        %v4329 = vpop.f32.mrb[0].mxu0
        %4330 = vdwg.mxu0
        %v4331 = vmax.f32 %v4328, 0.0
        %v4332 = vld [vmem:[%s17] sm:$0xff]
        %v4333 = vld [vmem:[%s17 + $0x8] sm:$0xff]
        %v4334 = vld [vmem:[%s17 + $0x10] sm:$0xff]
        %v4335 = vld [vmem:[%s17 + $0x18] sm:$0xff]
        %v4336 = vld [vmem:[%s17 + $0x20] sm:$0xff]
        %v4337 = vld [vmem:[%s17 + $0x28] sm:$0xff]
        %v4338 = vld [vmem:[%s17 + $0x30] sm:$0xff]
        %v4339 = vld [vmem:[%s17 + $0x38] sm:$0xff]
        %v4340 = vld [vmem:[%s17 + $0x40] sm:$0xff]
        %v4341 = vld [vmem:[%s17 + $0x48] sm:$0xff]
        %v4342 = vld [vmem:[%s17 + $0x50] sm:$0xf]
        %v4343 = vld [vmem:[%s18] sm:$0x1]
        %v4345 = vsel %vm2917, %v4331, 0
        %v4348 = vsel %vm1111, %v4342, 0
        %4350 = vmatprep.subr.mxu0 0.0
        %4351 = vmatpush1.msra.mxu0 %v4332
        %4352 = vmatprep.subr.mxu0 0.0
        %4353 = vmatpush1.msra.mxu0 %v4333
        %4354 = vmatprep.subr.mxu0 0.0
        %4355 = vmatpush1.msra.mxu0 %v4334
        %4356 = vmatprep.subr.mxu0 0.0
        %4357 = vmatpush1.msra.mxu0 %v4335
        %4358 = vmatprep.subr.mxu0 0.0
        %4359 = vmatpush1.msra.mxu0 %v4336
        %4360 = vmatprep.subr.mxu0 0.0
        %4361 = vmatpush1.msra.mxu0 %v4337
        %4362 = vmatprep.subr.mxu0 0.0
        %4363 = vmatpush1.msra.mxu0 %v4338
        %4364 = vmatprep.subr.mxu0 0.0
        %4365 = vmatpush1.msra.mxu0 %v4339
        %4366 = vmatprep.subr.mxu0 0.0
        %4367 = vmatpush1.msra.mxu0 %v4340
        %4368 = vmatprep.subr.mxu0 0.0
        %4369 = vmatpush1.msra.mxu0 %v4341
        %4370 = vmatprep.subr.mxu0 0.0
        %4371 = vmatpush1.msra.mxu0 %v4348
        %4372 = vmatprep.subr.mxu0 0.0
        %4373 = vmatpush1.msra.mxu0 0.0
        %4374 = vmatprep.subr.mxu0 0.0
        %4375 = vmatpush1.msra.mxu0 0.0
        %4376 = vmatprep.subr.mxu0 0.0
        %4377 = vmatpush1.msra.mxu0 0.0
        %4378 = vmatprep.subr.mxu0 0.0
        %4379 = vmatpush1.msra.mxu0 0.0
        %4380 = vmatprep.subr.mxu0 0.0
        %4381 = vmatpush1.msra.mxu0 0.0
        %4382 = vmatprep.subr.mxu0 0.0
        %4383 = vmatpush1.msra.mxu0 0.0
        %4384 = vmatprep.subr.mxu0 0.0
        %4385 = vmatpush1.msra.mxu0 0.0
        %4386 = vmatprep.subr.mxu0 0.0
        %4387 = vmatpush1.msra.mxu0 0.0
        %4388 = vmatprep.subr.mxu0 0.0
        %4389 = vmatpush1.msra.mxu0 0.0
        %4390 = vmatprep.subr.mxu0 0.0
        %4391 = vmatpush1.msra.mxu0 0.0
        %4392 = vmatprep.subr.mxu0 0.0
        %4393 = vmatpush1.msra.mxu0 0.0
        %4394 = vmatprep.subr.mxu0 0.0
        %4395 = vmatpush1.msra.mxu0 0.0
        %4396 = vmatprep.subr.mxu0 0.0
        %4397 = vmatpush1.msra.mxu0 0.0
        %4398 = vmatprep.subr.mxu0 0.0
        %4399 = vmatpush1.msra.mxu0 0.0
        %4400 = vmatprep.subr.mxu0 0.0
        %4401 = vmatpush1.msra.mxu0 0.0
        %4402 = vmatprep.subr.mxu0 0.0
        %4403 = vmatpush1.msra.mxu0 0.0
        %4404 = vmatprep.subr.mxu0 0.0
        %4405 = vmatpush1.msra.mxu0 0.0
        %4406 = vmatprep.subr.mxu0 0.0
        %4407 = vmatpush1.msra.mxu0 0.0
        %4408 = vmatprep.subr.mxu0 0.0
        %4409 = vmatpush1.msra.mxu0 0.0
        %4410 = vmatprep.subr.mxu0 0.0
        %4411 = vmatpush1.msra.mxu0 0.0
        %4412 = vmatprep.subr.mxu0 0.0
        %4413 = vmatpush1.msra.mxu0 0.0
        %4414 = vmatprep.mubr.f32.mxu0 0.0
        %4415 = vmatmul.mubr.f32.gmra.mrb[0].mxu0 %v4345
        %v4416 = vpop.f32.mrb[0].mxu0
        %v4417 = vadd.f32 %v4343, %v4416
        %v4418 = vpop.f32.mrb[0].mxu0
        %4419 = vdwg.mxu0
        %vm4420 = vcmask 73728
        %4421 = vst.msk [vmem:[%s624] sm:$0x1] %vm4420, %v4417
        %s4422 = sand.u32 %s447, 1
        %s4423 = scalar_lea.sflag [#allocation4], %s4422
        %s4424 = sand.u32 %s447, 1
        %s4425 = scalar_lea.vmem [#allocation7], %s4424
        // Predicated region
        $region105: #{lenet5_forward.1} parent=95 // pred_check
          %p4426 = pneg %p457
        $region106: #{lenet5_forward.1} parent=95 // pred_check_branch
          %4428 = sbr.rel (%p4426) target = $region108
        $region107: #{lenet5_forward.1} parent=95 // pred_region
          %s4430 = ssub.s32 16, 16
          %4431 = vsyncadd %s4423, %s4430
          %s4432 = smul.addr %s35, 16
          %s4433 = scalar_lea.hbm %s19, %s4432
          %s4435 = sshll.u32 %s4425, 4
          %s4436 = int_to_ptr.vmem [resolvable:$true] %s4435
          %4438 = dma.vmem_to_hbm [thread:$0]  %s4436, 16, %s4433, %s4423
        $region108: #{lenet5_forward.1} parent=95 // pred_fallthru
          _
      $region96: #{lenet5_forward.1} parent=5 // pred_fallthru
        _
      %p4439 = scmp.le.s32.totalorder 2, %s30
      // Predicated region
      $region109: #{lenet5_forward.1} parent=5 // pred_check
        %p4440 = pneg %p4439
      $region110: #{lenet5_forward.1} parent=5 // pred_check_branch
        %4442 = sbr.rel (%p4440) target = $region112
      $region111: #{lenet5_forward.1} parent=5 // pred_region
        %s4443 = ssub.s32 %s30, 2
        // Predicated region
        $region113: #{lenet5_forward.1} parent=111 // pred_check
          %p4444 = pneg %p463
        $region114: #{lenet5_forward.1} parent=111 // pred_check_branch
          %4446 = sbr.rel (%p4444) target = $region116
        $region115: #{lenet5_forward.1} parent=111 // pred_region
          %s4447 = sand.u32 %s448, 1
          %s4448 = scalar_lea.sflag [#allocation4], %s4447
          %s4449 = sand.u32 %s448, 1
          %s4450 = scalar_lea.vmem [#allocation7], %s4449
          %4451 = dma.done %s4448, 16
        $region116: #{lenet5_forward.1} parent=111 // pred_fallthru
          _
      $region112: #{lenet5_forward.1} parent=5 // pred_fallthru
        _
    $region6: #{lenet5_forward.1} parent=1 // loop_footer
      %s34 = sadd.s32 1, %s30
    $region7: #{lenet5_forward.1} parent=1 // loop_footer_branch
      %29 = sbr.rel target = $region3
    $region8: #{lenet5_forward.1} parent=1 // loop_exit
      _
    %4452 = vsyncpa [#allocation3], 1
    %s4453 = scalar_lea.sflag [#allocation3], 1
    %4454 = vsyncpa %s4453, 1
    %4455 = vsyncpa [#allocation6], 1
    %4456 = vsyncpa [#allocation4], 1
    %s4457 = scalar_lea.sflag [#allocation4], 1
    %4458 = vsyncpa %s4457, 1

</llo_original>
